<compile_context>
chip_gen: v7x
topology: tpu7x:2x2x1
jax: 0.10.0
libtpu: 0.0.40
codegen_flags: <defaults>
</compile_context>

<pallas_src>
import functools

import jax
import jax.numpy as jnp
from jax.experimental import pallas as pl
from jax.experimental.pallas import tpu as pltpu


# ----------------------------------------------------------------------------
# Small helpers
# ----------------------------------------------------------------------------
_CP_CLS = getattr(pltpu, "CompilerParams", None) or getattr(pltpu, "TPUCompilerParams", None)


def _compiler_params(**kwargs):
    """Build Mosaic compiler params; degrade gracefully on older jax versions."""
    if _CP_CLS is None:
        return None
    try:
        return _CP_CLS(**kwargs)
    except TypeError:
        return None


def _cost(flops, transcendentals, bytes_accessed):
    ce_cls = getattr(pl, "CostEstimate", None)
    if ce_cls is None:
        return None
    try:
        return ce_cls(flops=int(flops), transcendentals=int(transcendentals),
                      bytes_accessed=int(bytes_accessed))
    except TypeError:
        return None


def _round_up(x, m):
    return (x + m - 1) // m * m


def _pad_rows(a, rows):
    pad = rows - a.shape[0]
    if pad == 0:
        return a
    widths = [(0, pad)] + [(0, 0)] * (a.ndim - 1)
    return jnp.pad(a, widths)


def _row_tiles(n_rows, block_rows, min_tiles=2):
    """Pad rows to a sublane-friendly multiple of the tile.

    Guarantees >= `min_tiles` grid steps whenever the row count allows it so the
    'parallel' grid axis can be split across both v7x TensorCores instead of
    collapsing to a single-tile grid.
    """
    padded = _round_up(max(n_rows, 8), 8)
    tile = min(block_rows, padded)
    if padded // tile < min_tiles and padded > 8:
        tile = max(8, _round_up(-(-padded // min_tiles), 8))
    padded = _round_up(padded, tile)
    return padded, tile


# ----------------------------------------------------------------------------
# Pallas kernels
# ----------------------------------------------------------------------------
def _linear_kernel(x_ref, w_ref, b_ref, o_ref, *, relu):
    acc = jnp.dot(x_ref[...].astype(jnp.bfloat16), w_ref[...],
                  preferred_element_type=jnp.float32)
    acc = acc + b_ref[...]
    if relu:
        acc = jnp.maximum(acc, 0.0)
    o_ref[...] = acc.astype(o_ref.dtype)


def linear(x, w_bf16, b, relu=False, out_dtype=jnp.float32, block_rows=512):
    """y = x @ w + b (optional ReLU), tiled over rows, bf16 MXU operands."""
    M, K = x.shape
    F = w_bf16.shape[1]
    Mp, tm = _row_tiles(M, block_rows)
    xp = _pad_rows(x, Mp)
    out = pl.pallas_call(
        functools.partial(_linear_kernel, relu=relu),
        grid=(Mp // tm,),
        in_specs=[
            pl.BlockSpec((tm, K), lambda i: (i, 0)),
            pl.BlockSpec((K, F), lambda i: (0, 0)),
            pl.BlockSpec((1, F), lambda i: (0, 0)),
        ],
        out_specs=pl.BlockSpec((tm, F), lambda i: (i, 0)),
        out_shape=jax.ShapeDtypeStruct((Mp, F), out_dtype),
        compiler_params=_compiler_params(dimension_semantics=("parallel",)),
    )(xp, w_bf16, b.reshape(1, F))
    return out[:M]


def _message_kernel(x_ref, eh_ref, w2_ref, b2m_ref, o_ref, g_ref):
    """Fused NNConv message for one edge tile.

        msgs[e, k] = sum_h x[e, h] * (e_hid[e, :] @ W2 + b2)[h*H + k]

    Stage 1: G = e_hid @ W2 (full H*H columns) -- one wide MXU matmul per
             128-row chunk into the VMEM scratch (never written to HBM).
    Stage 2: acc = x @ B2 -- the per-h bias adds hoisted into one small matmul.
    Stage 3: acc += sum_h x[:, h] * G[:, h*H:(h+1)*H] -- VPU weighted sum over
             h, processed in 64-row chunks to bound vreg live ranges.
    """
    H = o_ref.shape[1]
    TE = x_ref.shape[0]

    MM_RC = 128          # row chunk for the wide matmul (keeps each dot result <= 2 MiB)
    for r0 in range(0, TE, MM_RC):
        rc = min(MM_RC, TE - r0)
        g_ref[r0:r0 + rc, :] = jnp.dot(eh_ref[r0:r0 + rc, :], w2_ref[...],
                                       preferred_element_type=jnp.float32)

    FMA_RC = 64          # row chunk for the weighted-sum loop (vreg safety)
    for r0 in range(0, TE, FMA_RC):
        rc = min(FMA_RC, TE - r0)
        x = x_ref[r0:r0 + rc, :]                                   # (rc, H) bf16
        acc = jnp.dot(x, b2m_ref[...], preferred_element_type=jnp.float32)
        xf = x.astype(jnp.float32)
        for h in range(H):
            acc = acc + xf[:, h:h + 1] * g_ref[r0:r0 + rc, h * H:(h + 1) * H]
        o_ref[r0:r0 + rc, :] = acc


def edge_messages(x_src_bf16, e_hid_bf16, w2_bf16, b2m_bf16, block_edges=256):
    E, H = x_src_bf16.shape
    C = e_hid_bf16.shape[1]
    Ep, te = _row_tiles(E, block_edges)
    xp = _pad_rows(x_src_bf16, Ep)
    ep = _pad_rows(e_hid_bf16, Ep)
    flops = 2 * Ep * C * H * H + 4 * Ep * H * H
    bytes_accessed = (Ep * H * 2 + Ep * C * 2 + C * H * H * 2
                      + H * H * 2 + Ep * H * 4)
    out = pl.pallas_call(
        _message_kernel,
        grid=(Ep // te,),
        in_specs=[
            pl.BlockSpec((te, H), lambda i: (i, 0)),
            pl.BlockSpec((te, C), lambda i: (i, 0)),
            pl.BlockSpec((C, H * H), lambda i: (0, 0)),   # resident weights, 1 MiB bf16
            pl.BlockSpec((H, H), lambda i: (0, 0)),
        ],
        out_specs=pl.BlockSpec((te, H), lambda i: (i, 0)),
        out_shape=jax.ShapeDtypeStruct((Ep, H), jnp.float32),
        scratch_shapes=[pltpu.VMEM((te, H * H), jnp.float32)],
        compiler_params=_compiler_params(dimension_semantics=("parallel",)),
        cost_estimate=_cost(flops, 0, bytes_accessed),
    )(xp, ep, w2_bf16, b2m_bf16)
    return out[:E]


def _gru_kernel(agg_ref, inv_ref, h_ref, w_ref, cb_ref, gb_ref, o_ref):
    """Fused: m = relu(mean_agg + conv_bias); h' = GRUCell(m, h).

    All gate pre-activations come from ONE (tm, 2H) @ (2H, 4H) MXU matmul with
    packed columns [r | z | n_m | n_h] (n-gate input/hidden parts kept separate
    because r gates only the hidden contribution).
    """
    H = h_ref.shape[1]
    m = jnp.maximum(agg_ref[...] * inv_ref[...] + cb_ref[...], 0.0)
    h = h_ref[...]
    mh = jnp.concatenate([m, h], axis=-1).astype(jnp.bfloat16)          # (tm, 2H)
    pre = jnp.dot(mh, w_ref[...], preferred_element_type=jnp.float32) + gb_ref[...]
    r = jax.nn.sigmoid(pre[:, 0:H])
    z = jax.nn.sigmoid(pre[:, H:2 * H])
    n = jnp.tanh(pre[:, 2 * H:3 * H] + r * pre[:, 3 * H:4 * H])
    o_ref[...] = (1.0 - z) * n + z * h


def gru_step(agg, inv_deg, h, gru_w_bf16, conv_b, gate_b, block_rows=512):
    N, H = h.shape
    Np, tm = _row_tiles(N, block_rows)
    aggp = _pad_rows(agg, Np)
    invp = _pad_rows(inv_deg, Np)
    hp = _pad_rows(h, Np)
    flops = 2 * Np * (2 * H) * (4 * H) + 12 * Np * H
    bytes_accessed = Np * (3 * H + 1) * 4 + (2 * H) * (4 * H) * 2 + Np * H * 4
    out = pl.pallas_call(
        _gru_kernel,
        grid=(Np // tm,),
        in_specs=[
            pl.BlockSpec((tm, H), lambda i: (i, 0)),
            pl.BlockSpec((tm, 1), lambda i: (i, 0)),
            pl.BlockSpec((tm, H), lambda i: (i, 0)),
            pl.BlockSpec((2 * H, 4 * H), lambda i: (0, 0)),
            pl.BlockSpec((1, H), lambda i: (0, 0)),
            pl.BlockSpec((1, 4 * H), lambda i: (0, 0)),
        ],
        out_specs=pl.BlockSpec((tm, H), lambda i: (i, 0)),
        out_shape=jax.ShapeDtypeStruct((Np, H), jnp.float32),
        compiler_params=_compiler_params(dimension_semantics=("parallel",)),
        cost_estimate=_cost(flops, 3 * Np * H, bytes_accessed),
    )(aggp, invp, hp, gru_w_bf16, conv_b, gate_b)
    return out[:N]


def _lstm_kernel(x_ref, h_ref, c_ref, w_ref, b_ref, h_out_ref, c_out_ref):
    """LSTM cell; all 4 gates from ONE (tb, 3H) @ (3H, 4H) matmul ([i|f|g|o])."""
    H = h_ref.shape[1]
    h = h_ref[...]
    c = c_ref[...]
    xh = jnp.concatenate([x_ref[...], h], axis=-1).astype(jnp.bfloat16)  # (tb, 2H+H)
    pre = jnp.dot(xh, w_ref[...], preferred_element_type=jnp.float32) + b_ref[...]
    i = jax.nn.sigmoid(pre[:, 0:H])
    f = jax.nn.sigmoid(pre[:, H:2 * H])
    g = jnp.tanh(pre[:, 2 * H:3 * H])
    o = jax.nn.sigmoid(pre[:, 3 * H:4 * H])
    c_new = f * c + i * g
    h_out_ref[...] = o * jnp.tanh(c_new)
    c_out_ref[...] = c_new


def lstm_step(x, h, c, lstm_w_bf16, b, block_rows=512):
    B, H = h.shape
    D = x.shape[1]
    Bp, tb = _row_tiles(B, block_rows)
    xp, hp, cp = _pad_rows(x, Bp), _pad_rows(h, Bp), _pad_rows(c, Bp)
    h_new, c_new = pl.pallas_call(
        _lstm_kernel,
        grid=(Bp // tb,),
        in_specs=[
            pl.BlockSpec((tb, D), lambda i: (i, 0)),
            pl.BlockSpec((tb, H), lambda i: (i, 0)),
            pl.BlockSpec((tb, H), lambda i: (i, 0)),
            pl.BlockSpec((D + H, 4 * H), lambda i: (0, 0)),
            pl.BlockSpec((1, 4 * H), lambda i: (0, 0)),
        ],
        out_specs=(
            pl.BlockSpec((tb, H), lambda i: (i, 0)),
            pl.BlockSpec((tb, H), lambda i: (i, 0)),
        ),
        out_shape=(
            jax.ShapeDtypeStruct((Bp, H), jnp.float32),
            jax.ShapeDtypeStruct((Bp, H), jnp.float32),
        ),
        compiler_params=_compiler_params(dimension_semantics=("parallel",)),
    )(xp, hp, cp, lstm_w_bf16, b)
    return h_new[:B], c_new[:B]


def _head_kernel(q_ref, w1_ref, b1_ref, w2_ref, b2_ref, o_ref):
    f32 = jnp.float32
    hid = jnp.maximum(
        jnp.dot(q_ref[...].astype(jnp.bfloat16), w1_ref[...], preferred_element_type=f32)
        + b1_ref[...], 0.0)
    y = jnp.dot(hid.astype(jnp.bfloat16), w2_ref[...], preferred_element_type=f32) + b2_ref[...]
    o_ref[...] = y


def output_head(q_star, w1_bf16, b1, w2_bf16, b2, block_rows=512):
    B, D = q_star.shape
    H = w1_bf16.shape[1]
    O = w2_bf16.shape[1]
    Bp, tb = _row_tiles(B, block_rows)
    qp = _pad_rows(q_star, Bp)
    y = pl.pallas_call(
        _head_kernel,
        grid=(Bp // tb,),
        in_specs=[
            pl.BlockSpec((tb, D), lambda i: (i, 0)),
            pl.BlockSpec((D, H), lambda i: (0, 0)),
            pl.BlockSpec((1, H), lambda i: (0, 0)),
            pl.BlockSpec((H, O), lambda i: (0, 0)),
            pl.BlockSpec((1, O), lambda i: (0, 0)),
        ],
        out_specs=pl.BlockSpec((tb, O), lambda i: (i, 0)),
        out_shape=jax.ShapeDtypeStruct((Bp, O), jnp.float32),
        compiler_params=_compiler_params(dimension_semantics=("parallel",)),
    )(qp, w1_bf16, b1.reshape(1, H), w2_bf16, b2.reshape(1, O))
    return y[:B]


# ----------------------------------------------------------------------------
# Parameters (deterministic synthetic init; shapes follow the PyTorch module)
# ----------------------------------------------------------------------------
def init_params(key, node_in=15, edge_in=5, H=64, edge_hidden=128, out_dim=12):
    ks = jax.random.split(key, 12)

    def w(k, shape, fan_in):
        return jax.random.normal(k, shape, jnp.float32) / jnp.sqrt(float(fan_in))

    p = {}
    p["lin0_w"] = w(ks[0], (node_in, H), node_in)
    p["lin0_b"] = jnp.zeros((H,), jnp.float32)
    # edge network: Linear(edge_in, edge_hidden) -> ReLU -> Linear(edge_hidden, H*H)
    p["edge1_w"] = w(ks[1], (edge_in, edge_hidden), edge_in)
    p["edge1_b"] = jnp.zeros((edge_hidden,), jnp.float32)
    p["edge2_w"] = w(ks[2], (edge_hidden, H * H), edge_hidden) * 0.1
    p["edge2_b"] = jnp.zeros((H * H,), jnp.float32)
    p["conv_b"] = jnp.zeros((H,), jnp.float32)             # NNConv bias (root_weight=False)
    # GRU(H, H): per-gate weights [r, z, n], stored transposed for x @ W
    p["gru_wi"] = w(ks[3], (3, H, H), H)
    p["gru_wh"] = w(ks[4], (3, H, H), H)
    p["gru_bi"] = jnp.zeros((3, H), jnp.float32)
    p["gru_bh"] = jnp.zeros((3, H), jnp.float32)
    # Set2Set LSTM(2H -> H): per-gate weights [i, f, g, o]
    p["lstm_wi"] = w(ks[5], (4, 2 * H, H), 2 * H)
    p["lstm_wh"] = w(ks[6], (4, H, H), H)
    p["lstm_bi"] = jnp.zeros((4, H), jnp.float32)
    p["lstm_bh"] = jnp.zeros((4, H), jnp.float32)
    # output head
    p["lin1_w"] = w(ks[7], (2 * H, H), 2 * H)
    p["lin1_b"] = jnp.zeros((H,), jnp.float32)
    p["lin2_w"] = w(ks[8], (H, out_dim), H)
    p["lin2_b"] = jnp.zeros((out_dim,), jnp.float32)
    return p


# ----------------------------------------------------------------------------
# MPNN forward
# ----------------------------------------------------------------------------
def mpnn_forward(params, x, edge_index, edge_attr, batch, num_graphs,
                 num_step_message_passing=6, num_step_set2set=6, H=64,
                 block_nodes=512, block_edges=256):
    bf16 = jnp.bfloat16
    N = x.shape[0]
    E = edge_attr.shape[0]
    C = params["edge1_w"].shape[1]
    src = edge_index[0]
    dst = edge_index[1]

    # ---- one-time weight preparation (loop-invariant, plain JAX) ----
    lin0_w = params["lin0_w"].astype(bf16)
    edge1_w = params["edge1_w"].astype(bf16)
    # edge-net second layer stays flat (C, H*H): regenerated per edge on the MXU
    w2_full = params["edge2_w"].astype(bf16)
    b2m = params["edge2_b"].reshape(H, H).astype(bf16)

    # GRU packed weights: rows [m | h] (K=2H), cols [r | z | n_m | n_h] (N=4H)
    Zhh = jnp.zeros((H, H), jnp.float32)
    gi, gh = params["gru_wi"], params["gru_wh"]
    gru_w = jnp.concatenate([
        jnp.concatenate([gi[0], gi[1], gi[2], Zhh], axis=1),
        jnp.concatenate([gh[0], gh[1], Zhh, gh[2]], axis=1),
    ], axis=0).astype(bf16)                                 # (2H, 4H)
    gru_gb = jnp.concatenate([
        params["gru_bi"][0] + params["gru_bh"][0],
        params["gru_bi"][1] + params["gru_bh"][1],
        params["gru_bi"][2],
        params["gru_bh"][2],
    ]).reshape(1, 4 * H)
    conv_b = params["conv_b"].reshape(1, H)

    # Set2Set LSTM packed weights: rows [q_star | h] (K=3H), cols [i | f | g | o]
    lstm_w = jnp.concatenate([
        params["lstm_wi"].transpose(1, 0, 2).reshape(2 * H, 4 * H),
        params["lstm_wh"].transpose(1, 0, 2).reshape(H, 4 * H),
    ], axis=0).astype(bf16)                                 # (3H, 4H)
    lstm_b = (params["lstm_bi"] + params["lstm_bh"]).reshape(1, 4 * H)

    lin1_w = params["lin1_w"].astype(bf16)
    lin2_w = params["lin2_w"].astype(bf16)

    # ---- node embedding: out = relu(lin0(x)) ----
    out = linear(x, lin0_w, params["lin0_b"], relu=True, block_rows=block_nodes)   # (N, H)

    # ---- edge-network hidden layer (hoisted out of the message-passing loop) ----
    e_hid = linear(edge_attr, edge1_w, params["edge1_b"], relu=True,
                   out_dtype=bf16, block_rows=block_edges)                          # (E, C)

    # in-degree for 'mean' aggregation (empty segments -> divide by 1)
    deg = jax.ops.segment_sum(jnp.ones((E,), jnp.float32), dst, num_segments=N)
    inv_deg = (1.0 / jnp.maximum(deg, 1.0))[:, None]                                # (N, 1)

    h = out
    for _ in range(num_step_message_passing):
        # TODO(synk): fold the src gather + dst segment-sum into the message kernel
        # via CSR edge ordering + PrefetchScalarGridSpec scalar prefetch; kept as
        # XLA glue here (data-dependent gather/scatter).
        x_src = out.astype(bf16)[src]                                               # (E, H) bf16 gather
        msgs = edge_messages(x_src, e_hid, w2_full, b2m, block_edges)               # (E, H) f32
        agg = jax.ops.segment_sum(msgs, dst, num_segments=N)                        # (N, H) f32 accum
        # mean-scaling + conv bias + ReLU are fused into the GRU kernel
        out = gru_step(agg, inv_deg, h, gru_w, conv_b, gru_gb, block_rows=block_nodes)
        h = out

    # ---- Set2Set pooling ----
    # TODO(synk): the per-graph softmax attention (segment_max/segment_sum) could be
    # fused into the LSTM step with scalar-prefetched graph offsets; kept as XLA glue.
    B = num_graphs
    q_star = jnp.zeros((B, 2 * H), jnp.float32)
    hs = jnp.zeros((B, H), jnp.float32)
    cs = jnp.zeros((B, H), jnp.float32)
    for _ in range(num_step_set2set):
        hs, cs = lstm_step(q_star, hs, cs, lstm_w, lstm_b)
        q = hs                                                                      # (B, H)
        e = jnp.sum(out * q[batch], axis=-1)                                        # (N,)
        e_max = jax.ops.segment_max(e, batch, num_segments=B)
        e_max = jnp.where(jnp.isfinite(e_max), e_max, 0.0)                          # empty-graph guard
        a = jnp.exp(e - e_max[batch])
        denom = jax.ops.segment_sum(a, batch, num_segments=B)
        a = a / jnp.maximum(denom, 1e-16)[batch]                                    # per-graph softmax
        r = jax.ops.segment_sum(a[:, None] * out, batch, num_segments=B)            # (B, H)
        q_star = jnp.concatenate([q, r], axis=-1)                                   # (B, 2H)

    # ---- output head: lin2(relu(lin1(q_star))) fused into one kernel ----
    y = output_head(q_star, lin1_w, params["lin1_b"], lin2_w, params["lin2_b"])
    return y


# ----------------------------------------------------------------------------
# Example run
# ----------------------------------------------------------------------------
if __name__ == "__main__":
    key = jax.random.PRNGKey(0)
    k_par, k_x, k_ea, k_s0, k_d0, k_s1, k_d1 = jax.random.split(key, 7)

    NODE_IN, EDGE_IN, H, OUT = 15, 5, 64, 12
    N_NODES, N_EDGES, N_GRAPHS = 10, 20, 2

    params = init_params(k_par, NODE_IN, EDGE_IN, H, 128, OUT)

    x = jax.random.normal(k_x, (N_NODES, NODE_IN), jnp.float32)
    edge_attr = jax.random.normal(k_ea, (N_EDGES, EDGE_IN), jnp.float32)

    # two graphs of 5 nodes each; edges stay within their graph
    src0 = jax.random.randint(k_s0, (N_EDGES // 2,), 0, 5)
    dst0 = jax.random.randint(k_d0, (N_EDGES // 2,), 0, 5)
    src1 = jax.random.randint(k_s1, (N_EDGES // 2,), 0, 5) + 5
    dst1 = jax.random.randint(k_d1, (N_EDGES // 2,), 0, 5) + 5
    edge_index = jnp.stack([jnp.concatenate([src0, src1]),
                            jnp.concatenate([dst0, dst1])], axis=0)       # (2, E)
    batch = jnp.array([0] * 5 + [1] * 5, dtype=jnp.int32)                 # (N,)

    fwd = jax.jit(functools.partial(mpnn_forward, num_graphs=N_GRAPHS))
    y = fwd(params, x, edge_index, edge_attr, batch)
    y = jax.block_until_ready(y)
    assert y.shape == (N_GRAPHS, OUT), y.shape
    assert bool(jnp.all(jnp.isfinite(y)))
    print("KERNEL_OK")
</pallas_src>

<mosaic_0001>
module attributes {stable_mosaic.version = 11 : i64} {
  func.func @_linear_kernel(%arg0: i32, %arg1: memref<8x15xf32, #tpu.memory_space<vmem>>, %arg2: memref<15x64xbf16, #tpu.memory_space<vmem>>, %arg3: memref<1x64xf32, #tpu.memory_space<vmem>>, %arg4: memref<8x64xf32, #tpu.memory_space<vmem>>) attributes {dimension_semantics = [#tpu.dimension_semantics<parallel>], iteration_bounds = array<i64: 2>, scalar_prefetch = 0 : i64, scratch_operands = 0 : i64, tpu.core_type = #tpu.core_type<tc>, window_params = [{transform_indices = @transform_0, window_bounds = array<i64: 8, 15>}, {pipeline_mode = #tpu.pipeline_mode<synchronous>, transform_indices = @transform_1, window_bounds = array<i64: 15, 64>}, {pipeline_mode = #tpu.pipeline_mode<synchronous>, transform_indices = @transform_2, window_bounds = array<i64: 1, 64>}, {transform_indices = @transform_3, window_bounds = array<i64: 8, 64>}]} {
    %c0 = arith.constant 0 : index
    %c0_0 = arith.constant 0 : index
    %0 = vector.load %arg1[%c0, %c0_0] : memref<8x15xf32, #tpu.memory_space<vmem>>, vector<8x15xf32>
    %1 = arith.truncf %0 : vector<8x15xf32> to vector<8x15xbf16>
    %c0_1 = arith.constant 0 : index
    %c0_2 = arith.constant 0 : index
    %2 = vector.load %arg2[%c0_1, %c0_2] : memref<15x64xbf16, #tpu.memory_space<vmem>>, vector<15x64xbf16>
    %cst = arith.constant dense<0.000000e+00> : vector<8x64xf32>
    %3 = tpu.matmul %1, %2, %cst {dimension_numbers = #tpu.dot_dimension_numbers<[1], [0], [0], [1], [0, 0, 1, 1], [], []>} : vector<8x15xbf16>, vector<15x64xbf16>, vector<8x64xf32> -> vector<8x64xf32>
    %c0_3 = arith.constant 0 : index
    %c0_4 = arith.constant 0 : index
    %4 = vector.load %arg3[%c0_3, %c0_4] : memref<1x64xf32, #tpu.memory_space<vmem>>, vector<1x64xf32>
    %5 = vector.broadcast %4 : vector<1x64xf32> to vector<8x64xf32>
    %6 = arith.addf %3, %5 : vector<8x64xf32>
    %cst_5 = arith.constant 0.000000e+00 : f32
    %7 = vector.broadcast %cst_5 : f32 to vector<8x64xf32>
    %8 = arith.maximumf %6, %7 : vector<8x64xf32>
    %c0_6 = arith.constant 0 : index
    %c0_7 = arith.constant 0 : index
    %9 = vector.load %arg4[%c0_6, %c0_7] : memref<8x64xf32, #tpu.memory_space<vmem>>, vector<8x64xf32>
    tpu.vector_store %arg4[%c0_6, %c0_7], %8 {strides = array<i32>} : memref<8x64xf32, #tpu.memory_space<vmem>>, vector<8x64xf32>,
    return
  }
  func.func @transform_0(%arg0: i32) -> (i32, i32) {
    %c0_i32 = arith.constant 0 : i32
    %c0_i32_0 = arith.constant 0 : i32
    return %arg0, %c0_i32 : i32, i32
  }
  func.func @transform_1(%arg0: i32) -> (i32, i32) {
    %c0_i32 = arith.constant 0 : i32
    %c0_i32_0 = arith.constant 0 : i32
    %c0_i32_1 = arith.constant 0 : i32
    return %c0_i32, %c0_i32_0 : i32, i32
  }
  func.func @transform_2(%arg0: i32) -> (i32, i32) {
    %c0_i32 = arith.constant 0 : i32
    %c0_i32_0 = arith.constant 0 : i32
    %c0_i32_1 = arith.constant 0 : i32
    return %c0_i32, %c0_i32_0 : i32, i32
  }
  func.func @transform_3(%arg0: i32) -> (i32, i32) {
    %c0_i32 = arith.constant 0 : i32
    %c0_i32_0 = arith.constant 0 : i32
    return %arg0, %c0_i32 : i32, i32
  }
}

module attributes {stable_mosaic.version = 11 : i64} {
  func.func @_linear_kernel(%arg0: i32, %arg1: memref<16x5xf32, #tpu.memory_space<vmem>>, %arg2: memref<5x128xbf16, #tpu.memory_space<vmem>>, %arg3: memref<1x128xf32, #tpu.memory_space<vmem>>, %arg4: memref<16x128xbf16, #tpu.memory_space<vmem>>) attributes {dimension_semantics = [#tpu.dimension_semantics<parallel>], iteration_bounds = array<i64: 2>, scalar_prefetch = 0 : i64, scratch_operands = 0 : i64, tpu.core_type = #tpu.core_type<tc>, window_params = [{transform_indices = @transform_0, window_bounds = array<i64: 16, 5>}, {pipeline_mode = #tpu.pipeline_mode<synchronous>, transform_indices = @transform_1, window_bounds = array<i64: 5, 128>}, {pipeline_mode = #tpu.pipeline_mode<synchronous>, transform_indices = @transform_2, window_bounds = array<i64: 1, 128>}, {transform_indices = @transform_3, window_bounds = array<i64: 16, 128>}]} {
    %c0 = arith.constant 0 : index
    %c0_0 = arith.constant 0 : index
    %0 = vector.load %arg1[%c0, %c0_0] : memref<16x5xf32, #tpu.memory_space<vmem>>, vector<16x5xf32>
    %1 = arith.truncf %0 : vector<16x5xf32> to vector<16x5xbf16>
    %c0_1 = arith.constant 0 : index
    %c0_2 = arith.constant 0 : index
    %2 = vector.load %arg2[%c0_1, %c0_2] : memref<5x128xbf16, #tpu.memory_space<vmem>>, vector<5x128xbf16>
    %cst = arith.constant dense<0.000000e+00> : vector<16x128xf32>
    %3 = tpu.matmul %1, %2, %cst {dimension_numbers = #tpu.dot_dimension_numbers<[1], [0], [0], [1], [0, 0, 1, 1], [], []>} : vector<16x5xbf16>, vector<5x128xbf16>, vector<16x128xf32> -> vector<16x128xf32>
    %c0_3 = arith.constant 0 : index
    %c0_4 = arith.constant 0 : index
    %4 = vector.load %arg3[%c0_3, %c0_4] : memref<1x128xf32, #tpu.memory_space<vmem>>, vector<1x128xf32>
    %5 = vector.broadcast %4 : vector<1x128xf32> to vector<16x128xf32>
    %6 = arith.addf %3, %5 : vector<16x128xf32>
    %cst_5 = arith.constant 0.000000e+00 : f32
    %7 = vector.broadcast %cst_5 : f32 to vector<16x128xf32>
    %8 = arith.maximumf %6, %7 : vector<16x128xf32>
    %9 = arith.truncf %8 : vector<16x128xf32> to vector<16x128xbf16>
    %c0_6 = arith.constant 0 : index
    %c0_7 = arith.constant 0 : index
    %10 = vector.load %arg4[%c0_6, %c0_7] : memref<16x128xbf16, #tpu.memory_space<vmem>>, vector<16x128xbf16>
    tpu.vector_store %arg4[%c0_6, %c0_7], %9 {strides = array<i32>} : memref<16x128xbf16, #tpu.memory_space<vmem>>, vector<16x128xbf16>,
    return
  }
  func.func @transform_0(%arg0: i32) -> (i32, i32) {
    %c0_i32 = arith.constant 0 : i32
    %c0_i32_0 = arith.constant 0 : i32
    return %arg0, %c0_i32 : i32, i32
  }
  func.func @transform_1(%arg0: i32) -> (i32, i32) {
    %c0_i32 = arith.constant 0 : i32
    %c0_i32_0 = arith.constant 0 : i32
    %c0_i32_1 = arith.constant 0 : i32
    return %c0_i32, %c0_i32_0 : i32, i32
  }
  func.func @transform_2(%arg0: i32) -> (i32, i32) {
    %c0_i32 = arith.constant 0 : i32
    %c0_i32_0 = arith.constant 0 : i32
    %c0_i32_1 = arith.constant 0 : i32
    return %c0_i32, %c0_i32_0 : i32, i32
  }
  func.func @transform_3(%arg0: i32) -> (i32, i32) {
    %c0_i32 = arith.constant 0 : i32
    %c0_i32_0 = arith.constant 0 : i32
    return %arg0, %c0_i32 : i32, i32
  }
}

module attributes {stable_mosaic.version = 11 : i64} {
  func.func @_message_kernel(%arg0: i32, %arg1: memref<16x64xbf16, #tpu.memory_space<vmem>>, %arg2: memref<16x128xbf16, #tpu.memory_space<vmem>>, %arg3: memref<128x4096xbf16, #tpu.memory_space<vmem>>, %arg4: memref<64x64xbf16, #tpu.memory_space<vmem>>, %arg5: memref<16x64xf32, #tpu.memory_space<vmem>>, %arg6: memref<16x4096xf32, #tpu.memory_space<vmem>>) attributes {dimension_semantics = [#tpu.dimension_semantics<parallel>], iteration_bounds = array<i64: 2>, scalar_prefetch = 0 : i64, scratch_operands = 1 : i64, tpu.core_type = #tpu.core_type<tc>, window_params = [{transform_indices = @transform_0, window_bounds = array<i64: 16, 64>}, {transform_indices = @transform_1, window_bounds = array<i64: 16, 128>}, {pipeline_mode = #tpu.pipeline_mode<synchronous>, transform_indices = @transform_2, window_bounds = array<i64: 128, 4096>}, {pipeline_mode = #tpu.pipeline_mode<synchronous>, transform_indices = @transform_3, window_bounds = array<i64: 64, 64>}, {transform_indices = @transform_4, window_bounds = array<i64: 16, 64>}]} {
    %c0 = arith.constant 0 : index
    %c0_0 = arith.constant 0 : index
    %0 = vector.load %arg2[%c0, %c0_0] : memref<16x128xbf16, #tpu.memory_space<vmem>>, vector<16x128xbf16>
    %c0_1 = arith.constant 0 : index
    %c0_2 = arith.constant 0 : index
    %1 = vector.load %arg3[%c0_1, %c0_2] : memref<128x4096xbf16, #tpu.memory_space<vmem>>, vector<128x4096xbf16>
    %cst = arith.constant dense<0.000000e+00> : vector<16x4096xf32>
    %2 = tpu.matmul %0, %1, %cst {dimension_numbers = #tpu.dot_dimension_numbers<[1], [0], [0], [1], [0, 0, 1, 1], [], []>} : vector<16x128xbf16>, vector<128x4096xbf16>, vector<16x4096xf32> -> vector<16x4096xf32>
    %c0_3 = arith.constant 0 : index
    %c0_4 = arith.constant 0 : index
    %3 = vector.load %arg6[%c0_3, %c0_4] : memref<16x4096xf32, #tpu.memory_space<vmem>>, vector<16x4096xf32>
    tpu.vector_store %arg6[%c0_3, %c0_4], %2 {strides = array<i32>} : memref<16x4096xf32, #tpu.memory_space<vmem>>, vector<16x4096xf32>,
    %c0_5 = arith.constant 0 : index
    %c0_6 = arith.constant 0 : index
    %4 = vector.load %arg1[%c0_5, %c0_6] : memref<16x64xbf16, #tpu.memory_space<vmem>>, vector<16x64xbf16>
    %c0_7 = arith.constant 0 : index
    %c0_8 = arith.constant 0 : index
    %5 = vector.load %arg4[%c0_7, %c0_8] : memref<64x64xbf16, #tpu.memory_space<vmem>>, vector<64x64xbf16>
    %cst_9 = arith.constant dense<0.000000e+00> : vector<16x64xf32>
    %6 = tpu.matmul %4, %5, %cst_9 {dimension_numbers = #tpu.dot_dimension_numbers<[1], [0], [0], [1], [0, 0, 1, 1], [], []>} : vector<16x64xbf16>, vector<64x64xbf16>, vector<16x64xf32> -> vector<16x64xf32>
    %7 = arith.extf %4 : vector<16x64xbf16> to vector<16x64xf32>
    %8 = vector.extract_strided_slice %7 {offsets = [0, 0], sizes = [16, 1], strides = [1, 1]} : vector<16x64xf32> to vector<16x1xf32>
    %c0_10 = arith.constant 0 : index
    %c0_11 = arith.constant 0 : index
    %9 = vector.load %arg6[%c0_10, %c0_11] : memref<16x4096xf32, #tpu.memory_space<vmem>>, vector<16x64xf32>
    %10 = vector.broadcast %8 : vector<16x1xf32> to vector<16x64xf32>
    %11 = arith.mulf %10, %9 : vector<16x64xf32>
    %12 = arith.addf %6, %11 : vector<16x64xf32>
    %13 = vector.extract_strided_slice %7 {offsets = [0, 1], sizes = [16, 1], strides = [1, 1]} : vector<16x64xf32> to vector<16x1xf32>
    %c0_12 = arith.constant 0 : index
    %c64 = arith.constant 64 : index
    %14 = vector.load %arg6[%c0_12, %c64] : memref<16x4096xf32, #tpu.memory_space<vmem>>, vector<16x64xf32>
    %15 = vector.broadcast %13 : vector<16x1xf32> to vector<16x64xf32>
    %16 = arith.mulf %15, %14 : vector<16x64xf32>
    %17 = arith.addf %12, %16 : vector<16x64xf32>
    %18 = vector.extract_strided_slice %7 {offsets = [0, 2], sizes = [16, 1], strides = [1, 1]} : vector<16x64xf32> to vector<16x1xf32>
    %c0_13 = arith.constant 0 : index
    %c128 = arith.constant 128 : index
    %19 = vector.load %arg6[%c0_13, %c128] : memref<16x4096xf32, #tpu.memory_space<vmem>>, vector<16x64xf32>
    %20 = vector.broadcast %18 : vector<16x1xf32> to vector<16x64xf32>
    %21 = arith.mulf %20, %19 : vector<16x64xf32>
    %22 = arith.addf %17, %21 : vector<16x64xf32>
    %23 = vector.extract_strided_slice %7 {offsets = [0, 3], sizes = [16, 1], strides = [1, 1]} : vector<16x64xf32> to vector<16x1xf32>
    %c0_14 = arith.constant 0 : index
    %c192 = arith.constant 192 : index
    %24 = vector.load %arg6[%c0_14, %c192] : memref<16x4096xf32, #tpu.memory_space<vmem>>, vector<16x64xf32>
    %25 = vector.broadcast %23 : vector<16x1xf32> to vector<16x64xf32>
    %26 = arith.mulf %25, %24 : vector<16x64xf32>
    %27 = arith.addf %22, %26 : vector<16x64xf32>
    %28 = vector.extract_strided_slice %7 {offsets = [0, 4], sizes = [16, 1], strides = [1, 1]} : vector<16x64xf32> to vector<16x1xf32>
    %c0_15 = arith.constant 0 : index
    %c256 = arith.constant 256 : index
    %29 = vector.load %arg6[%c0_15, %c256] : memref<16x4096xf32, #tpu.memory_space<vmem>>, vector<16x64xf32>
    %30 = vector.broadcast %28 : vector<16x1xf32> to vector<16x64xf32>
    %31 = arith.mulf %30, %29 : vector<16x64xf32>
    %32 = arith.addf %27, %31 : vector<16x64xf32>
    %33 = vector.extract_strided_slice %7 {offsets = [0, 5], sizes = [16, 1], strides = [1, 1]} : vector<16x64xf32> to vector<16x1xf32>
    %c0_16 = arith.constant 0 : index
    %c320 = arith.constant 320 : index
    %34 = vector.load %arg6[%c0_16, %c320] : memref<16x4096xf32, #tpu.memory_space<vmem>>, vector<16x64xf32>
    %35 = vector.broadcast %33 : vector<16x1xf32> to vector<16x64xf32>
    %36 = arith.mulf %35, %34 : vector<16x64xf32>
    %37 = arith.addf %32, %36 : vector<16x64xf32>
    %38 = vector.extract_strided_slice %7 {offsets = [0, 6], sizes = [16, 1], strides = [1, 1]} : vector<16x64xf32> to vector<16x1xf32>
    %c0_17 = arith.constant 0 : index
    %c384 = arith.constant 384 : index
    %39 = vector.load %arg6[%c0_17, %c384] : memref<16x4096xf32, #tpu.memory_space<vmem>>, vector<16x64xf32>
    %40 = vector.broadcast %38 : vector<16x1xf32> to vector<16x64xf32>
    %41 = arith.mulf %40, %39 : vector<16x64xf32>
    %42 = arith.addf %37, %41 : vector<16x64xf32>
    %43 = vector.extract_strided_slice %7 {offsets = [0, 7], sizes = [16, 1], strides = [1, 1]} : vector<16x64xf32> to vector<16x1xf32>
    %c0_18 = arith.constant 0 : index
    %c448 = arith.constant 448 : index
    %44 = vector.load %arg6[%c0_18, %c448] : memref<16x4096xf32, #tpu.memory_space<vmem>>, vector<16x64xf32>
    %45 = vector.broadcast %43 : vector<16x1xf32> to vector<16x64xf32>
    %46 = arith.mulf %45, %44 : vector<16x64xf32>
    %47 = arith.addf %42, %46 : vector<16x64xf32>
    %48 = vector.extract_strided_slice %7 {offsets = [0, 8], sizes = [16, 1], strides = [1, 1]} : vector<16x64xf32> to vector<16x1xf32>
    %c0_19 = arith.constant 0 : index
    %c512 = arith.constant 512 : index
    %49 = vector.load %arg6[%c0_19, %c512] : memref<16x4096xf32, #tpu.memory_space<vmem>>, vector<16x64xf32>
    %50 = vector.broadcast %48 : vector<16x1xf32> to vector<16x64xf32>
    %51 = arith.mulf %50, %49 : vector<16x64xf32>
    %52 = arith.addf %47, %51 : vector<16x64xf32>
    %53 = vector.extract_strided_slice %7 {offsets = [0, 9], sizes = [16, 1], strides = [1, 1]} : vector<16x64xf32> to vector<16x1xf32>
    %c0_20 = arith.constant 0 : index
    %c576 = arith.constant 576 : index
    %54 = vector.load %arg6[%c0_20, %c576] : memref<16x4096xf32, #tpu.memory_space<vmem>>, vector<16x64xf32>
    %55 = vector.broadcast %53 : vector<16x1xf32> to vector<16x64xf32>
    %56 = arith.mulf %55, %54 : vector<16x64xf32>
    %57 = arith.addf %52, %56 : vector<16x64xf32>
    %58 = vector.extract_strided_slice %7 {offsets = [0, 10], sizes = [16, 1], strides = [1, 1]} : vector<16x64xf32> to vector<16x1xf32>
    %c0_21 = arith.constant 0 : index
    %c640 = arith.constant 640 : index
    %59 = vector.load %arg6[%c0_21, %c640] : memref<16x4096xf32, #tpu.memory_space<vmem>>, vector<16x64xf32>
    %60 = vector.broadcast %58 : vector<16x1xf32> to vector<16x64xf32>
    %61 = arith.mulf %60, %59 : vector<16x64xf32>
    %62 = arith.addf %57, %61 : vector<16x64xf32>
    %63 = vector.extract_strided_slice %7 {offsets = [0, 11], sizes = [16, 1], strides = [1, 1]} : vector<16x64xf32> to vector<16x1xf32>
    %c0_22 = arith.constant 0 : index
    %c704 = arith.constant 704 : index
    %64 = vector.load %arg6[%c0_22, %c704] : memref<16x4096xf32, #tpu.memory_space<vmem>>, vector<16x64xf32>
    %65 = vector.broadcast %63 : vector<16x1xf32> to vector<16x64xf32>
    %66 = arith.mulf %65, %64 : vector<16x64xf32>
    %67 = arith.addf %62, %66 : vector<16x64xf32>
    %68 = vector.extract_strided_slice %7 {offsets = [0, 12], sizes = [16, 1], strides = [1, 1]} : vector<16x64xf32> to vector<16x1xf32>
    %c0_23 = arith.constant 0 : index
    %c768 = arith.constant 768 : index
    %69 = vector.load %arg6[%c0_23, %c768] : memref<16x4096xf32, #tpu.memory_space<vmem>>, vector<16x64xf32>
    %70 = vector.broadcast %68 : vector<16x1xf32> to vector<16x64xf32>
    %71 = arith.mulf %70, %69 : vector<16x64xf32>
    %72 = arith.addf %67, %71 : vector<16x64xf32>
    %73 = vector.extract_strided_slice %7 {offsets = [0, 13], sizes = [16, 1], strides = [1, 1]} : vector<16x64xf32> to vector<16x1xf32>
    %c0_24 = arith.constant 0 : index
    %c832 = arith.constant 832 : index
    %74 = vector.load %arg6[%c0_24, %c832] : memref<16x4096xf32, #tpu.memory_space<vmem>>, vector<16x64xf32>
    %75 = vector.broadcast %73 : vector<16x1xf32> to vector<16x64xf32>
    %76 = arith.mulf %75, %74 : vector<16x64xf32>
    %77 = arith.addf %72, %76 : vector<16x64xf32>
    %78 = vector.extract_strided_slice %7 {offsets = [0, 14], sizes = [16, 1], strides = [1, 1]} : vector<16x64xf32> to vector<16x1xf32>
    %c0_25 = arith.constant 0 : index
    %c896 = arith.constant 896 : index
    %79 = vector.load %arg6[%c0_25, %c896] : memref<16x4096xf32, #tpu.memory_space<vmem>>, vector<16x64xf32>
    %80 = vector.broadcast %78 : vector<16x1xf32> to vector<16x64xf32>
    %81 = arith.mulf %80, %79 : vector<16x64xf32>
    %82 = arith.addf %77, %81 : vector<16x64xf32>
    %83 = vector.extract_strided_slice %7 {offsets = [0, 15], sizes = [16, 1], strides = [1, 1]} : vector<16x64xf32> to vector<16x1xf32>
    %c0_26 = arith.constant 0 : index
    %c960 = arith.constant 960 : index
    %84 = vector.load %arg6[%c0_26, %c960] : memref<16x4096xf32, #tpu.memory_space<vmem>>, vector<16x64xf32>
    %85 = vector.broadcast %83 : vector<16x1xf32> to vector<16x64xf32>
    %86 = arith.mulf %85, %84 : vector<16x64xf32>
    %87 = arith.addf %82, %86 : vector<16x64xf32>
    %88 = vector.extract_strided_slice %7 {offsets = [0, 16], sizes = [16, 1], strides = [1, 1]} : vector<16x64xf32> to vector<16x1xf32>
    %c0_27 = arith.constant 0 : index
    %c1024 = arith.constant 1024 : index
    %89 = vector.load %arg6[%c0_27, %c1024] : memref<16x4096xf32, #tpu.memory_space<vmem>>, vector<16x64xf32>
    %90 = vector.broadcast %88 : vector<16x1xf32> to vector<16x64xf32>
    %91 = arith.mulf %90, %89 : vector<16x64xf32>
    %92 = arith.addf %87, %91 : vector<16x64xf32>
    %93 = vector.extract_strided_slice %7 {offsets = [0, 17], sizes = [16, 1], strides = [1, 1]} : vector<16x64xf32> to vector<16x1xf32>
    %c0_28 = arith.constant 0 : index
    %c1088 = arith.constant 1088 : index
    %94 = vector.load %arg6[%c0_28, %c1088] : memref<16x4096xf32, #tpu.memory_space<vmem>>, vector<16x64xf32>
    %95 = vector.broadcast %93 : vector<16x1xf32> to vector<16x64xf32>
    %96 = arith.mulf %95, %94 : vector<16x64xf32>
    %97 = arith.addf %92, %96 : vector<16x64xf32>
    %98 = vector.extract_strided_slice %7 {offsets = [0, 18], sizes = [16, 1], strides = [1, 1]} : vector<16x64xf32> to vector<16x1xf32>
    %c0_29 = arith.constant 0 : index
    %c1152 = arith.constant 1152 : index
    %99 = vector.load %arg6[%c0_29, %c1152] : memref<16x4096xf32, #tpu.memory_space<vmem>>, vector<16x64xf32>
    %100 = vector.broadcast %98 : vector<16x1xf32> to vector<16x64xf32>
    %101 = arith.mulf %100, %99 : vector<16x64xf32>
    %102 = arith.addf %97, %101 : vector<16x64xf32>
    %103 = vector.extract_strided_slice %7 {offsets = [0, 19], sizes = [16, 1], strides = [1, 1]} : vector<16x64xf32> to vector<16x1xf32>
    %c0_30 = arith.constant 0 : index
    %c1216 = arith.constant 1216 : index
    %104 = vector.load %arg6[%c0_30, %c1216] : memref<16x4096xf32, #tpu.memory_space<vmem>>, vector<16x64xf32>
    %105 = vector.broadcast %103 : vector<16x1xf32> to vector<16x64xf32>
    %106 = arith.mulf %105, %104 : vector<16x64xf32>
    %107 = arith.addf %102, %106 : vector<16x64xf32>
    %108 = vector.extract_strided_slice %7 {offsets = [0, 20], sizes = [16, 1], strides = [1, 1]} : vector<16x64xf32> to vector<16x1xf32>
    %c0_31 = arith.constant 0 : index
    %c1280 = arith.constant 1280 : index
    %109 = vector.load %arg6[%c0_31, %c1280] : memref<16x4096xf32, #tpu.memory_space<vmem>>, vector<16x64xf32>
    %110 = vector.broadcast %108 : vector<16x1xf32> to vector<16x64xf32>
    %111 = arith.mulf %110, %109 : vector<16x64xf32>
    %112 = arith.addf %107, %111 : vector<16x64xf32>
    %113 = vector.extract_strided_slice %7 {offsets = [0, 21], sizes = [16, 1], strides = [1, 1]} : vector<16x64xf32> to vector<16x1xf32>
    %c0_32 = arith.constant 0 : index
    %c1344 = arith.constant 1344 : index
    %114 = vector.load %arg6[%c0_32, %c1344] : memref<16x4096xf32, #tpu.memory_space<vmem>>, vector<16x64xf32>
    %115 = vector.broadcast %113 : vector<16x1xf32> to vector<16x64xf32>
    %116 = arith.mulf %115, %114 : vector<16x64xf32>
    %117 = arith.addf %112, %116 : vector<16x64xf32>
    %118 = vector.extract_strided_slice %7 {offsets = [0, 22], sizes = [16, 1], strides = [1, 1]} : vector<16x64xf32> to vector<16x1xf32>
    %c0_33 = arith.constant 0 : index
    %c1408 = arith.constant 1408 : index
    %119 = vector.load %arg6[%c0_33, %c1408] : memref<16x4096xf32, #tpu.memory_space<vmem>>, vector<16x64xf32>
    %120 = vector.broadcast %118 : vector<16x1xf32> to vector<16x64xf32>
    %121 = arith.mulf %120, %119 : vector<16x64xf32>
    %122 = arith.addf %117, %121 : vector<16x64xf32>
    %123 = vector.extract_strided_slice %7 {offsets = [0, 23], sizes = [16, 1], strides = [1, 1]} : vector<16x64xf32> to vector<16x1xf32>
    %c0_34 = arith.constant 0 : index
    %c1472 = arith.constant 1472 : index
    %124 = vector.load %arg6[%c0_34, %c1472] : memref<16x4096xf32, #tpu.memory_space<vmem>>, vector<16x64xf32>
    %125 = vector.broadcast %123 : vector<16x1xf32> to vector<16x64xf32>
    %126 = arith.mulf %125, %124 : vector<16x64xf32>
    %127 = arith.addf %122, %126 : vector<16x64xf32>
    %128 = vector.extract_strided_slice %7 {offsets = [0, 24], sizes = [16, 1], strides = [1, 1]} : vector<16x64xf32> to vector<16x1xf32>
    %c0_35 = arith.constant 0 : index
    %c1536 = arith.constant 1536 : index
    %129 = vector.load %arg6[%c0_35, %c1536] : memref<16x4096xf32, #tpu.memory_space<vmem>>, vector<16x64xf32>
    %130 = vector.broadcast %128 : vector<16x1xf32> to vector<16x64xf32>
    %131 = arith.mulf %130, %129 : vector<16x64xf32>
    %132 = arith.addf %127, %131 : vector<16x64xf32>
    %133 = vector.extract_strided_slice %7 {offsets = [0, 25], sizes = [16, 1], strides = [1, 1]} : vector<16x64xf32> to vector<16x1xf32>
    %c0_36 = arith.constant 0 : index
    %c1600 = arith.constant 1600 : index
    %134 = vector.load %arg6[%c0_36, %c1600] : memref<16x4096xf32, #tpu.memory_space<vmem>>, vector<16x64xf32>
    %135 = vector.broadcast %133 : vector<16x1xf32> to vector<16x64xf32>
    %136 = arith.mulf %135, %134 : vector<16x64xf32>
    %137 = arith.addf %132, %136 : vector<16x64xf32>
    %138 = vector.extract_strided_slice %7 {offsets = [0, 26], sizes = [16, 1], strides = [1, 1]} : vector<16x64xf32> to vector<16x1xf32>
    %c0_37 = arith.constant 0 : index
    %c1664 = arith.constant 1664 : index
    %139 = vector.load %arg6[%c0_37, %c1664] : memref<16x4096xf32, #tpu.memory_space<vmem>>, vector<16x64xf32>
    %140 = vector.broadcast %138 : vector<16x1xf32> to vector<16x64xf32>
    %141 = arith.mulf %140, %139 : vector<16x64xf32>
    %142 = arith.addf %137, %141 : vector<16x64xf32>
    %143 = vector.extract_strided_slice %7 {offsets = [0, 27], sizes = [16, 1], strides = [1, 1]} : vector<16x64xf32> to vector<16x1xf32>
    %c0_38 = arith.constant 0 : index
    %c1728 = arith.constant 1728 : index
    %144 = vector.load %arg6[%c0_38, %c1728] : memref<16x4096xf32, #tpu.memory_space<vmem>>, vector<16x64xf32>
    %145 = vector.broadcast %143 : vector<16x1xf32> to vector<16x64xf32>
    %146 = arith.mulf %145, %144 : vector<16x64xf32>
    %147 = arith.addf %142, %146 : vector<16x64xf32>
    %148 = vector.extract_strided_slice %7 {offsets = [0, 28], sizes = [16, 1], strides = [1, 1]} : vector<16x64xf32> to vector<16x1xf32>
    %c0_39 = arith.constant 0 : index
    %c1792 = arith.constant 1792 : index
    %149 = vector.load %arg6[%c0_39, %c1792] : memref<16x4096xf32, #tpu.memory_space<vmem>>, vector<16x64xf32>
    %150 = vector.broadcast %148 : vector<16x1xf32> to vector<16x64xf32>
    %151 = arith.mulf %150, %149 : vector<16x64xf32>
    %152 = arith.addf %147, %151 : vector<16x64xf32>
    %153 = vector.extract_strided_slice %7 {offsets = [0, 29], sizes = [16, 1], strides = [1, 1]} : vector<16x64xf32> to vector<16x1xf32>
    %c0_40 = arith.constant 0 : index
    %c1856 = arith.constant 1856 : index
    %154 = vector.load %arg6[%c0_40, %c1856] : memref<16x4096xf32, #tpu.memory_space<vmem>>, vector<16x64xf32>
    %155 = vector.broadcast %153 : vector<16x1xf32> to vector<16x64xf32>
    %156 = arith.mulf %155, %154 : vector<16x64xf32>
    %157 = arith.addf %152, %156 : vector<16x64xf32>
    %158 = vector.extract_strided_slice %7 {offsets = [0, 30], sizes = [16, 1], strides = [1, 1]} : vector<16x64xf32> to vector<16x1xf32>
    %c0_41 = arith.constant 0 : index
    %c1920 = arith.constant 1920 : index
    %159 = vector.load %arg6[%c0_41, %c1920] : memref<16x4096xf32, #tpu.memory_space<vmem>>, vector<16x64xf32>
    %160 = vector.broadcast %158 : vector<16x1xf32> to vector<16x64xf32>
    %161 = arith.mulf %160, %159 : vector<16x64xf32>
    %162 = arith.addf %157, %161 : vector<16x64xf32>
    %163 = vector.extract_strided_slice %7 {offsets = [0, 31], sizes = [16, 1], strides = [1, 1]} : vector<16x64xf32> to vector<16x1xf32>
    %c0_42 = arith.constant 0 : index
    %c1984 = arith.constant 1984 : index
    %164 = vector.load %arg6[%c0_42, %c1984] : memref<16x4096xf32, #tpu.memory_space<vmem>>, vector<16x64xf32>
    %165 = vector.broadcast %163 : vector<16x1xf32> to vector<16x64xf32>
    %166 = arith.mulf %165, %164 : vector<16x64xf32>
    %167 = arith.addf %162, %166 : vector<16x64xf32>
    %168 = vector.extract_strided_slice %7 {offsets = [0, 32], sizes = [16, 1], strides = [1, 1]} : vector<16x64xf32> to vector<16x1xf32>
    %c0_43 = arith.constant 0 : index
    %c2048 = arith.constant 2048 : index
    %169 = vector.load %arg6[%c0_43, %c2048] : memref<16x4096xf32, #tpu.memory_space<vmem>>, vector<16x64xf32>
    %170 = vector.broadcast %168 : vector<16x1xf32> to vector<16x64xf32>
    %171 = arith.mulf %170, %169 : vector<16x64xf32>
    %172 = arith.addf %167, %171 : vector<16x64xf32>
    %173 = vector.extract_strided_slice %7 {offsets = [0, 33], sizes = [16, 1], strides = [1, 1]} : vector<16x64xf32> to vector<16x1xf32>
    %c0_44 = arith.constant 0 : index
    %c2112 = arith.constant 2112 : index
    %174 = vector.load %arg6[%c0_44, %c2112] : memref<16x4096xf32, #tpu.memory_space<vmem>>, vector<16x64xf32>
    %175 = vector.broadcast %173 : vector<16x1xf32> to vector<16x64xf32>
    %176 = arith.mulf %175, %174 : vector<16x64xf32>
    %177 = arith.addf %172, %176 : vector<16x64xf32>
    %178 = vector.extract_strided_slice %7 {offsets = [0, 34], sizes = [16, 1], strides = [1, 1]} : vector<16x64xf32> to vector<16x1xf32>
    %c0_45 = arith.constant 0 : index
    %c2176 = arith.constant 2176 : index
    %179 = vector.load %arg6[%c0_45, %c2176] : memref<16x4096xf32, #tpu.memory_space<vmem>>, vector<16x64xf32>
    %180 = vector.broadcast %178 : vector<16x1xf32> to vector<16x64xf32>
    %181 = arith.mulf %180, %179 : vector<16x64xf32>
    %182 = arith.addf %177, %181 : vector<16x64xf32>
    %183 = vector.extract_strided_slice %7 {offsets = [0, 35], sizes = [16, 1], strides = [1, 1]} : vector<16x64xf32> to vector<16x1xf32>
    %c0_46 = arith.constant 0 : index
    %c2240 = arith.constant 2240 : index
    %184 = vector.load %arg6[%c0_46, %c2240] : memref<16x4096xf32, #tpu.memory_space<vmem>>, vector<16x64xf32>
    %185 = vector.broadcast %183 : vector<16x1xf32> to vector<16x64xf32>
    %186 = arith.mulf %185, %184 : vector<16x64xf32>
    %187 = arith.addf %182, %186 : vector<16x64xf32>
    %188 = vector.extract_strided_slice %7 {offsets = [0, 36], sizes = [16, 1], strides = [1, 1]} : vector<16x64xf32> to vector<16x1xf32>
    %c0_47 = arith.constant 0 : index
    %c2304 = arith.constant 2304 : index
    %189 = vector.load %arg6[%c0_47, %c2304] : memref<16x4096xf32, #tpu.memory_space<vmem>>, vector<16x64xf32>
    %190 = vector.broadcast %188 : vector<16x1xf32> to vector<16x64xf32>
    %191 = arith.mulf %190, %189 : vector<16x64xf32>
    %192 = arith.addf %187, %191 : vector<16x64xf32>
    %193 = vector.extract_strided_slice %7 {offsets = [0, 37], sizes = [16, 1], strides = [1, 1]} : vector<16x64xf32> to vector<16x1xf32>
    %c0_48 = arith.constant 0 : index
    %c2368 = arith.constant 2368 : index
    %194 = vector.load %arg6[%c0_48, %c2368] : memref<16x4096xf32, #tpu.memory_space<vmem>>, vector<16x64xf32>
    %195 = vector.broadcast %193 : vector<16x1xf32> to vector<16x64xf32>
    %196 = arith.mulf %195, %194 : vector<16x64xf32>
    %197 = arith.addf %192, %196 : vector<16x64xf32>
    %198 = vector.extract_strided_slice %7 {offsets = [0, 38], sizes = [16, 1], strides = [1, 1]} : vector<16x64xf32> to vector<16x1xf32>
    %c0_49 = arith.constant 0 : index
    %c2432 = arith.constant 2432 : index
    %199 = vector.load %arg6[%c0_49, %c2432] : memref<16x4096xf32, #tpu.memory_space<vmem>>, vector<16x64xf32>
    %200 = vector.broadcast %198 : vector<16x1xf32> to vector<16x64xf32>
    %201 = arith.mulf %200, %199 : vector<16x64xf32>
    %202 = arith.addf %197, %201 : vector<16x64xf32>
    %203 = vector.extract_strided_slice %7 {offsets = [0, 39], sizes = [16, 1], strides = [1, 1]} : vector<16x64xf32> to vector<16x1xf32>
    %c0_50 = arith.constant 0 : index
    %c2496 = arith.constant 2496 : index
    %204 = vector.load %arg6[%c0_50, %c2496] : memref<16x4096xf32, #tpu.memory_space<vmem>>, vector<16x64xf32>
    %205 = vector.broadcast %203 : vector<16x1xf32> to vector<16x64xf32>
    %206 = arith.mulf %205, %204 : vector<16x64xf32>
    %207 = arith.addf %202, %206 : vector<16x64xf32>
    %208 = vector.extract_strided_slice %7 {offsets = [0, 40], sizes = [16, 1], strides = [1, 1]} : vector<16x64xf32> to vector<16x1xf32>
    %c0_51 = arith.constant 0 : index
    %c2560 = arith.constant 2560 : index
    %209 = vector.load %arg6[%c0_51, %c2560] : memref<16x4096xf32, #tpu.memory_space<vmem>>, vector<16x64xf32>
    %210 = vector.broadcast %208 : vector<16x1xf32> to vector<16x64xf32>
    %211 = arith.mulf %210, %209 : vector<16x64xf32>
    %212 = arith.addf %207, %211 : vector<16x64xf32>
    %213 = vector.extract_strided_slice %7 {offsets = [0, 41], sizes = [16, 1], strides = [1, 1]} : vector<16x64xf32> to vector<16x1xf32>
    %c0_52 = arith.constant 0 : index
    %c2624 = arith.constant 2624 : index
    %214 = vector.load %arg6[%c0_52, %c2624] : memref<16x4096xf32, #tpu.memory_space<vmem>>, vector<16x64xf32>
    %215 = vector.broadcast %213 : vector<16x1xf32> to vector<16x64xf32>
    %216 = arith.mulf %215, %214 : vector<16x64xf32>
    %217 = arith.addf %212, %216 : vector<16x64xf32>
    %218 = vector.extract_strided_slice %7 {offsets = [0, 42], sizes = [16, 1], strides = [1, 1]} : vector<16x64xf32> to vector<16x1xf32>
    %c0_53 = arith.constant 0 : index
    %c2688 = arith.constant 2688 : index
    %219 = vector.load %arg6[%c0_53, %c2688] : memref<16x4096xf32, #tpu.memory_space<vmem>>, vector<16x64xf32>
    %220 = vector.broadcast %218 : vector<16x1xf32> to vector<16x64xf32>
    %221 = arith.mulf %220, %219 : vector<16x64xf32>
    %222 = arith.addf %217, %221 : vector<16x64xf32>
    %223 = vector.extract_strided_slice %7 {offsets = [0, 43], sizes = [16, 1], strides = [1, 1]} : vector<16x64xf32> to vector<16x1xf32>
    %c0_54 = arith.constant 0 : index
    %c2752 = arith.constant 2752 : index
    %224 = vector.load %arg6[%c0_54, %c2752] : memref<16x4096xf32, #tpu.memory_space<vmem>>, vector<16x64xf32>
    %225 = vector.broadcast %223 : vector<16x1xf32> to vector<16x64xf32>
    %226 = arith.mulf %225, %224 : vector<16x64xf32>
    %227 = arith.addf %222, %226 : vector<16x64xf32>
    %228 = vector.extract_strided_slice %7 {offsets = [0, 44], sizes = [16, 1], strides = [1, 1]} : vector<16x64xf32> to vector<16x1xf32>
    %c0_55 = arith.constant 0 : index
    %c2816 = arith.constant 2816 : index
    %229 = vector.load %arg6[%c0_55, %c2816] : memref<16x4096xf32, #tpu.memory_space<vmem>>, vector<16x64xf32>
    %230 = vector.broadcast %228 : vector<16x1xf32> to vector<16x64xf32>
    %231 = arith.mulf %230, %229 : vector<16x64xf32>
    %232 = arith.addf %227, %231 : vector<16x64xf32>
    %233 = vector.extract_strided_slice %7 {offsets = [0, 45], sizes = [16, 1], strides = [1, 1]} : vector<16x64xf32> to vector<16x1xf32>
    %c0_56 = arith.constant 0 : index
    %c2880 = arith.constant 2880 : index
    %234 = vector.load %arg6[%c0_56, %c2880] : memref<16x4096xf32, #tpu.memory_space<vmem>>, vector<16x64xf32>
    %235 = vector.broadcast %233 : vector<16x1xf32> to vector<16x64xf32>
    %236 = arith.mulf %235, %234 : vector<16x64xf32>
    %237 = arith.addf %232, %236 : vector<16x64xf32>
    %238 = vector.extract_strided_slice %7 {offsets = [0, 46], sizes = [16, 1], strides = [1, 1]} : vector<16x64xf32> to vector<16x1xf32>
    %c0_57 = arith.constant 0 : index
    %c2944 = arith.constant 2944 : index
    %239 = vector.load %arg6[%c0_57, %c2944] : memref<16x4096xf32, #tpu.memory_space<vmem>>, vector<16x64xf32>
    %240 = vector.broadcast %238 : vector<16x1xf32> to vector<16x64xf32>
    %241 = arith.mulf %240, %239 : vector<16x64xf32>
    %242 = arith.addf %237, %241 : vector<16x64xf32>
    %243 = vector.extract_strided_slice %7 {offsets = [0, 47], sizes = [16, 1], strides = [1, 1]} : vector<16x64xf32> to vector<16x1xf32>
    %c0_58 = arith.constant 0 : index
    %c3008 = arith.constant 3008 : index
    %244 = vector.load %arg6[%c0_58, %c3008] : memref<16x4096xf32, #tpu.memory_space<vmem>>, vector<16x64xf32>
    %245 = vector.broadcast %243 : vector<16x1xf32> to vector<16x64xf32>
    %246 = arith.mulf %245, %244 : vector<16x64xf32>
    %247 = arith.addf %242, %246 : vector<16x64xf32>
    %248 = vector.extract_strided_slice %7 {offsets = [0, 48], sizes = [16, 1], strides = [1, 1]} : vector<16x64xf32> to vector<16x1xf32>
    %c0_59 = arith.constant 0 : index
    %c3072 = arith.constant 3072 : index
    %249 = vector.load %arg6[%c0_59, %c3072] : memref<16x4096xf32, #tpu.memory_space<vmem>>, vector<16x64xf32>
    %250 = vector.broadcast %248 : vector<16x1xf32> to vector<16x64xf32>
    %251 = arith.mulf %250, %249 : vector<16x64xf32>
    %252 = arith.addf %247, %251 : vector<16x64xf32>
    %253 = vector.extract_strided_slice %7 {offsets = [0, 49], sizes = [16, 1], strides = [1, 1]} : vector<16x64xf32> to vector<16x1xf32>
    %c0_60 = arith.constant 0 : index
    %c3136 = arith.constant 3136 : index
    %254 = vector.load %arg6[%c0_60, %c3136] : memref<16x4096xf32, #tpu.memory_space<vmem>>, vector<16x64xf32>
    %255 = vector.broadcast %253 : vector<16x1xf32> to vector<16x64xf32>
    %256 = arith.mulf %255, %254 : vector<16x64xf32>
    %257 = arith.addf %252, %256 : vector<16x64xf32>
    %258 = vector.extract_strided_slice %7 {offsets = [0, 50], sizes = [16, 1], strides = [1, 1]} : vector<16x64xf32> to vector<16x1xf32>
    %c0_61 = arith.constant 0 : index
    %c3200 = arith.constant 3200 : index
    %259 = vector.load %arg6[%c0_61, %c3200] : memref<16x4096xf32, #tpu.memory_space<vmem>>, vector<16x64xf32>
    %260 = vector.broadcast %258 : vector<16x1xf32> to vector<16x64xf32>
    %261 = arith.mulf %260, %259 : vector<16x64xf32>
    %262 = arith.addf %257, %261 : vector<16x64xf32>
    %263 = vector.extract_strided_slice %7 {offsets = [0, 51], sizes = [16, 1], strides = [1, 1]} : vector<16x64xf32> to vector<16x1xf32>
    %c0_62 = arith.constant 0 : index
    %c3264 = arith.constant 3264 : index
    %264 = vector.load %arg6[%c0_62, %c3264] : memref<16x4096xf32, #tpu.memory_space<vmem>>, vector<16x64xf32>
    %265 = vector.broadcast %263 : vector<16x1xf32> to vector<16x64xf32>
    %266 = arith.mulf %265, %264 : vector<16x64xf32>
    %267 = arith.addf %262, %266 : vector<16x64xf32>
    %268 = vector.extract_strided_slice %7 {offsets = [0, 52], sizes = [16, 1], strides = [1, 1]} : vector<16x64xf32> to vector<16x1xf32>
    %c0_63 = arith.constant 0 : index
    %c3328 = arith.constant 3328 : index
    %269 = vector.load %arg6[%c0_63, %c3328] : memref<16x4096xf32, #tpu.memory_space<vmem>>, vector<16x64xf32>
    %270 = vector.broadcast %268 : vector<16x1xf32> to vector<16x64xf32>
    %271 = arith.mulf %270, %269 : vector<16x64xf32>
    %272 = arith.addf %267, %271 : vector<16x64xf32>
    %273 = vector.extract_strided_slice %7 {offsets = [0, 53], sizes = [16, 1], strides = [1, 1]} : vector<16x64xf32> to vector<16x1xf32>
    %c0_64 = arith.constant 0 : index
    %c3392 = arith.constant 3392 : index
    %274 = vector.load %arg6[%c0_64, %c3392] : memref<16x4096xf32, #tpu.memory_space<vmem>>, vector<16x64xf32>
    %275 = vector.broadcast %273 : vector<16x1xf32> to vector<16x64xf32>
    %276 = arith.mulf %275, %274 : vector<16x64xf32>
    %277 = arith.addf %272, %276 : vector<16x64xf32>
    %278 = vector.extract_strided_slice %7 {offsets = [0, 54], sizes = [16, 1], strides = [1, 1]} : vector<16x64xf32> to vector<16x1xf32>
    %c0_65 = arith.constant 0 : index
    %c3456 = arith.constant 3456 : index
    %279 = vector.load %arg6[%c0_65, %c3456] : memref<16x4096xf32, #tpu.memory_space<vmem>>, vector<16x64xf32>
    %280 = vector.broadcast %278 : vector<16x1xf32> to vector<16x64xf32>
    %281 = arith.mulf %280, %279 : vector<16x64xf32>
    %282 = arith.addf %277, %281 : vector<16x64xf32>
    %283 = vector.extract_strided_slice %7 {offsets = [0, 55], sizes = [16, 1], strides = [1, 1]} : vector<16x64xf32> to vector<16x1xf32>
    %c0_66 = arith.constant 0 : index
    %c3520 = arith.constant 3520 : index
    %284 = vector.load %arg6[%c0_66, %c3520] : memref<16x4096xf32, #tpu.memory_space<vmem>>, vector<16x64xf32>
    %285 = vector.broadcast %283 : vector<16x1xf32> to vector<16x64xf32>
    %286 = arith.mulf %285, %284 : vector<16x64xf32>
    %287 = arith.addf %282, %286 : vector<16x64xf32>
    %288 = vector.extract_strided_slice %7 {offsets = [0, 56], sizes = [16, 1], strides = [1, 1]} : vector<16x64xf32> to vector<16x1xf32>
    %c0_67 = arith.constant 0 : index
    %c3584 = arith.constant 3584 : index
    %289 = vector.load %arg6[%c0_67, %c3584] : memref<16x4096xf32, #tpu.memory_space<vmem>>, vector<16x64xf32>
    %290 = vector.broadcast %288 : vector<16x1xf32> to vector<16x64xf32>
    %291 = arith.mulf %290, %289 : vector<16x64xf32>
    %292 = arith.addf %287, %291 : vector<16x64xf32>
    %293 = vector.extract_strided_slice %7 {offsets = [0, 57], sizes = [16, 1], strides = [1, 1]} : vector<16x64xf32> to vector<16x1xf32>
    %c0_68 = arith.constant 0 : index
    %c3648 = arith.constant 3648 : index
    %294 = vector.load %arg6[%c0_68, %c3648] : memref<16x4096xf32, #tpu.memory_space<vmem>>, vector<16x64xf32>
    %295 = vector.broadcast %293 : vector<16x1xf32> to vector<16x64xf32>
    %296 = arith.mulf %295, %294 : vector<16x64xf32>
    %297 = arith.addf %292, %296 : vector<16x64xf32>
    %298 = vector.extract_strided_slice %7 {offsets = [0, 58], sizes = [16, 1], strides = [1, 1]} : vector<16x64xf32> to vector<16x1xf32>
    %c0_69 = arith.constant 0 : index
    %c3712 = arith.constant 3712 : index
    %299 = vector.load %arg6[%c0_69, %c3712] : memref<16x4096xf32, #tpu.memory_space<vmem>>, vector<16x64xf32>
    %300 = vector.broadcast %298 : vector<16x1xf32> to vector<16x64xf32>
    %301 = arith.mulf %300, %299 : vector<16x64xf32>
    %302 = arith.addf %297, %301 : vector<16x64xf32>
    %303 = vector.extract_strided_slice %7 {offsets = [0, 59], sizes = [16, 1], strides = [1, 1]} : vector<16x64xf32> to vector<16x1xf32>
    %c0_70 = arith.constant 0 : index
    %c3776 = arith.constant 3776 : index
    %304 = vector.load %arg6[%c0_70, %c3776] : memref<16x4096xf32, #tpu.memory_space<vmem>>, vector<16x64xf32>
    %305 = vector.broadcast %303 : vector<16x1xf32> to vector<16x64xf32>
    %306 = arith.mulf %305, %304 : vector<16x64xf32>
    %307 = arith.addf %302, %306 : vector<16x64xf32>
    %308 = vector.extract_strided_slice %7 {offsets = [0, 60], sizes = [16, 1], strides = [1, 1]} : vector<16x64xf32> to vector<16x1xf32>
    %c0_71 = arith.constant 0 : index
    %c3840 = arith.constant 3840 : index
    %309 = vector.load %arg6[%c0_71, %c3840] : memref<16x4096xf32, #tpu.memory_space<vmem>>, vector<16x64xf32>
    %310 = vector.broadcast %308 : vector<16x1xf32> to vector<16x64xf32>
    %311 = arith.mulf %310, %309 : vector<16x64xf32>
    %312 = arith.addf %307, %311 : vector<16x64xf32>
    %313 = vector.extract_strided_slice %7 {offsets = [0, 61], sizes = [16, 1], strides = [1, 1]} : vector<16x64xf32> to vector<16x1xf32>
    %c0_72 = arith.constant 0 : index
    %c3904 = arith.constant 3904 : index
    %314 = vector.load %arg6[%c0_72, %c3904] : memref<16x4096xf32, #tpu.memory_space<vmem>>, vector<16x64xf32>
    %315 = vector.broadcast %313 : vector<16x1xf32> to vector<16x64xf32>
    %316 = arith.mulf %315, %314 : vector<16x64xf32>
    %317 = arith.addf %312, %316 : vector<16x64xf32>
    %318 = vector.extract_strided_slice %7 {offsets = [0, 62], sizes = [16, 1], strides = [1, 1]} : vector<16x64xf32> to vector<16x1xf32>
    %c0_73 = arith.constant 0 : index
    %c3968 = arith.constant 3968 : index
    %319 = vector.load %arg6[%c0_73, %c3968] : memref<16x4096xf32, #tpu.memory_space<vmem>>, vector<16x64xf32>
    %320 = vector.broadcast %318 : vector<16x1xf32> to vector<16x64xf32>
    %321 = arith.mulf %320, %319 : vector<16x64xf32>
    %322 = arith.addf %317, %321 : vector<16x64xf32>
    %323 = vector.extract_strided_slice %7 {offsets = [0, 63], sizes = [16, 1], strides = [1, 1]} : vector<16x64xf32> to vector<16x1xf32>
    %c0_74 = arith.constant 0 : index
    %c4032 = arith.constant 4032 : index
    %324 = vector.load %arg6[%c0_74, %c4032] : memref<16x4096xf32, #tpu.memory_space<vmem>>, vector<16x64xf32>
    %325 = vector.broadcast %323 : vector<16x1xf32> to vector<16x64xf32>
    %326 = arith.mulf %325, %324 : vector<16x64xf32>
    %327 = arith.addf %322, %326 : vector<16x64xf32>
    %c0_75 = arith.constant 0 : index
    %c0_76 = arith.constant 0 : index
    %328 = vector.load %arg5[%c0_75, %c0_76] : memref<16x64xf32, #tpu.memory_space<vmem>>, vector<16x64xf32>
    tpu.vector_store %arg5[%c0_75, %c0_76], %327 {strides = array<i32>} : memref<16x64xf32, #tpu.memory_space<vmem>>, vector<16x64xf32>,
    return
  }
  func.func @transform_0(%arg0: i32) -> (i32, i32) {
    %c0_i32 = arith.constant 0 : i32
    %c0_i32_0 = arith.constant 0 : i32
    return %arg0, %c0_i32 : i32, i32
  }
  func.func @transform_1(%arg0: i32) -> (i32, i32) {
    %c0_i32 = arith.constant 0 : i32
    %c0_i32_0 = arith.constant 0 : i32
    return %arg0, %c0_i32 : i32, i32
  }
  func.func @transform_2(%arg0: i32) -> (i32, i32) {
    %c0_i32 = arith.constant 0 : i32
    %c0_i32_0 = arith.constant 0 : i32
    %c0_i32_1 = arith.constant 0 : i32
    return %c0_i32, %c0_i32_0 : i32, i32
  }
  func.func @transform_3(%arg0: i32) -> (i32, i32) {
    %c0_i32 = arith.constant 0 : i32
    %c0_i32_0 = arith.constant 0 : i32
    %c0_i32_1 = arith.constant 0 : i32
    return %c0_i32, %c0_i32_0 : i32, i32
  }
  func.func @transform_4(%arg0: i32) -> (i32, i32) {
    %c0_i32 = arith.constant 0 : i32
    %c0_i32_0 = arith.constant 0 : i32
    return %arg0, %c0_i32 : i32, i32
  }
}

module attributes {stable_mosaic.version = 11 : i64} {
  func.func @_gru_kernel(%arg0: i32, %arg1: memref<8x64xf32, #tpu.memory_space<vmem>>, %arg2: memref<8x1xf32, #tpu.memory_space<vmem>>, %arg3: memref<8x64xf32, #tpu.memory_space<vmem>>, %arg4: memref<128x256xbf16, #tpu.memory_space<vmem>>, %arg5: memref<1x64xf32, #tpu.memory_space<vmem>>, %arg6: memref<1x256xf32, #tpu.memory_space<vmem>>, %arg7: memref<8x64xf32, #tpu.memory_space<vmem>>) attributes {dimension_semantics = [#tpu.dimension_semantics<parallel>], iteration_bounds = array<i64: 2>, scalar_prefetch = 0 : i64, scratch_operands = 0 : i64, tpu.core_type = #tpu.core_type<tc>, window_params = [{transform_indices = @transform_0, window_bounds = array<i64: 8, 64>}, {transform_indices = @transform_1, window_bounds = array<i64: 8, 1>}, {transform_indices = @transform_2, window_bounds = array<i64: 8, 64>}, {pipeline_mode = #tpu.pipeline_mode<synchronous>, transform_indices = @transform_3, window_bounds = array<i64: 128, 256>}, {pipeline_mode = #tpu.pipeline_mode<synchronous>, transform_indices = @transform_4, window_bounds = array<i64: 1, 64>}, {pipeline_mode = #tpu.pipeline_mode<synchronous>, transform_indices = @transform_5, window_bounds = array<i64: 1, 256>}, {transform_indices = @transform_6, window_bounds = array<i64: 8, 64>}]} {
    %c0 = arith.constant 0 : index
    %c0_0 = arith.constant 0 : index
    %0 = vector.load %arg1[%c0, %c0_0] : memref<8x64xf32, #tpu.memory_space<vmem>>, vector<8x64xf32>
    %c0_1 = arith.constant 0 : index
    %c0_2 = arith.constant 0 : index
    %1 = vector.load %arg2[%c0_1, %c0_2] : memref<8x1xf32, #tpu.memory_space<vmem>>, vector<8x1xf32>
    %2 = vector.broadcast %1 : vector<8x1xf32> to vector<8x64xf32>
    %3 = arith.mulf %0, %2 : vector<8x64xf32>
    %c0_3 = arith.constant 0 : index
    %c0_4 = arith.constant 0 : index
    %4 = vector.load %arg5[%c0_3, %c0_4] : memref<1x64xf32, #tpu.memory_space<vmem>>, vector<1x64xf32>
    %5 = vector.broadcast %4 : vector<1x64xf32> to vector<8x64xf32>
    %6 = arith.addf %3, %5 : vector<8x64xf32>
    %cst = arith.constant 0.000000e+00 : f32
    %7 = vector.broadcast %cst : f32 to vector<8x64xf32>
    %8 = arith.maximumf %6, %7 : vector<8x64xf32>
    %c0_5 = arith.constant 0 : index
    %c0_6 = arith.constant 0 : index
    %9 = vector.load %arg3[%c0_5, %c0_6] : memref<8x64xf32, #tpu.memory_space<vmem>>, vector<8x64xf32>
    %10 = tpu.concatenate %8, %9 in 1 : vector<8x64xf32>, vector<8x64xf32> -> vector<8x128xf32>
    %11 = arith.truncf %10 : vector<8x128xf32> to vector<8x128xbf16>
    %c0_7 = arith.constant 0 : index
    %c0_8 = arith.constant 0 : index
    %12 = vector.load %arg4[%c0_7, %c0_8] : memref<128x256xbf16, #tpu.memory_space<vmem>>, vector<128x256xbf16>
    %cst_9 = arith.constant dense<0.000000e+00> : vector<8x256xf32>
    %13 = tpu.matmul %11, %12, %cst_9 {dimension_numbers = #tpu.dot_dimension_numbers<[1], [0], [0], [1], [0, 0, 1, 1], [], []>} : vector<8x128xbf16>, vector<128x256xbf16>, vector<8x256xf32> -> vector<8x256xf32>
    %c0_10 = arith.constant 0 : index
    %c0_11 = arith.constant 0 : index
    %14 = vector.load %arg6[%c0_10, %c0_11] : memref<1x256xf32, #tpu.memory_space<vmem>>, vector<1x256xf32>
    %15 = vector.broadcast %14 : vector<1x256xf32> to vector<8x256xf32>
    %16 = arith.addf %13, %15 : vector<8x256xf32>
    %17 = vector.extract_strided_slice %16 {offsets = [0, 0], sizes = [8, 64], strides = [1, 1]} : vector<8x256xf32> to vector<8x64xf32>
    %18 = arith.negf %17 : vector<8x64xf32>
    %19 = math.exp %18 : vector<8x64xf32>
    %cst_12 = arith.constant 1.000000e+00 : f32
    %20 = vector.broadcast %cst_12 : f32 to vector<8x64xf32>
    %21 = arith.addf %20, %19 : vector<8x64xf32>
    %22 = arith.divf %20, %21 : vector<8x64xf32>
    %23 = vector.extract_strided_slice %16 {offsets = [0, 64], sizes = [8, 64], strides = [1, 1]} : vector<8x256xf32> to vector<8x64xf32>
    %24 = arith.negf %23 : vector<8x64xf32>
    %25 = math.exp %24 : vector<8x64xf32>
    %cst_13 = arith.constant 1.000000e+00 : f32
    %26 = vector.broadcast %cst_13 : f32 to vector<8x64xf32>
    %27 = arith.addf %26, %25 : vector<8x64xf32>
    %28 = arith.divf %26, %27 : vector<8x64xf32>
    %29 = vector.extract_strided_slice %16 {offsets = [0, 128], sizes = [8, 64], strides = [1, 1]} : vector<8x256xf32> to vector<8x64xf32>
    %30 = vector.extract_strided_slice %16 {offsets = [0, 192], sizes = [8, 64], strides = [1, 1]} : vector<8x256xf32> to vector<8x64xf32>
    %31 = arith.mulf %22, %30 : vector<8x64xf32>
    %32 = arith.addf %29, %31 : vector<8x64xf32>
    %33 = math.tanh %32 : vector<8x64xf32>
    %cst_14 = arith.constant 1.000000e+00 : f32
    %34 = vector.broadcast %cst_14 : f32 to vector<8x64xf32>
    %35 = arith.subf %34, %28 : vector<8x64xf32>
    %36 = arith.mulf %35, %33 : vector<8x64xf32>
    %37 = arith.mulf %28, %9 : vector<8x64xf32>
    %38 = arith.addf %36, %37 : vector<8x64xf32>
    %c0_15 = arith.constant 0 : index
    %c0_16 = arith.constant 0 : index
    %39 = vector.load %arg7[%c0_15, %c0_16] : memref<8x64xf32, #tpu.memory_space<vmem>>, vector<8x64xf32>
    tpu.vector_store %arg7[%c0_15, %c0_16], %38 {strides = array<i32>} : memref<8x64xf32, #tpu.memory_space<vmem>>, vector<8x64xf32>,
    return
  }
  func.func @transform_0(%arg0: i32) -> (i32, i32) {
    %c0_i32 = arith.constant 0 : i32
    %c0_i32_0 = arith.constant 0 : i32
    return %arg0, %c0_i32 : i32, i32
  }
  func.func @transform_1(%arg0: i32) -> (i32, i32) {
    %c0_i32 = arith.constant 0 : i32
    %c0_i32_0 = arith.constant 0 : i32
    return %arg0, %c0_i32 : i32, i32
  }
  func.func @transform_2(%arg0: i32) -> (i32, i32) {
    %c0_i32 = arith.constant 0 : i32
    %c0_i32_0 = arith.constant 0 : i32
    return %arg0, %c0_i32 : i32, i32
  }
  func.func @transform_3(%arg0: i32) -> (i32, i32) {
    %c0_i32 = arith.constant 0 : i32
    %c0_i32_0 = arith.constant 0 : i32
    %c0_i32_1 = arith.constant 0 : i32
    return %c0_i32, %c0_i32_0 : i32, i32
  }
  func.func @transform_4(%arg0: i32) -> (i32, i32) {
    %c0_i32 = arith.constant 0 : i32
    %c0_i32_0 = arith.constant 0 : i32
    %c0_i32_1 = arith.constant 0 : i32
    return %c0_i32, %c0_i32_0 : i32, i32
  }
  func.func @transform_5(%arg0: i32) -> (i32, i32) {
    %c0_i32 = arith.constant 0 : i32
    %c0_i32_0 = arith.constant 0 : i32
    %c0_i32_1 = arith.constant 0 : i32
    return %c0_i32, %c0_i32_0 : i32, i32
  }
  func.func @transform_6(%arg0: i32) -> (i32, i32) {
    %c0_i32 = arith.constant 0 : i32
    %c0_i32_0 = arith.constant 0 : i32
    return %arg0, %c0_i32 : i32, i32
  }
}

module attributes {stable_mosaic.version = 11 : i64} {
  func.func @_lstm_kernel(%arg0: i32, %arg1: memref<8x128xf32, #tpu.memory_space<vmem>>, %arg2: memref<8x64xf32, #tpu.memory_space<vmem>>, %arg3: memref<8x64xf32, #tpu.memory_space<vmem>>, %arg4: memref<192x256xbf16, #tpu.memory_space<vmem>>, %arg5: memref<1x256xf32, #tpu.memory_space<vmem>>, %arg6: memref<8x64xf32, #tpu.memory_space<vmem>>, %arg7: memref<8x64xf32, #tpu.memory_space<vmem>>) attributes {dimension_semantics = [#tpu.dimension_semantics<parallel>], iteration_bounds = array<i64: 1>, scalar_prefetch = 0 : i64, scratch_operands = 0 : i64, tpu.core_type = #tpu.core_type<tc>, window_params = [{transform_indices = @transform_0, window_bounds = array<i64: 8, 128>}, {transform_indices = @transform_1, window_bounds = array<i64: 8, 64>}, {transform_indices = @transform_2, window_bounds = array<i64: 8, 64>}, {pipeline_mode = #tpu.pipeline_mode<synchronous>, transform_indices = @transform_3, window_bounds = array<i64: 192, 256>}, {pipeline_mode = #tpu.pipeline_mode<synchronous>, transform_indices = @transform_4, window_bounds = array<i64: 1, 256>}, {transform_indices = @transform_5, window_bounds = array<i64: 8, 64>}, {transform_indices = @transform_6, window_bounds = array<i64: 8, 64>}]} {
    %c0 = arith.constant 0 : index
    %c0_0 = arith.constant 0 : index
    %0 = vector.load %arg2[%c0, %c0_0] : memref<8x64xf32, #tpu.memory_space<vmem>>, vector<8x64xf32>
    %c0_1 = arith.constant 0 : index
    %c0_2 = arith.constant 0 : index
    %1 = vector.load %arg3[%c0_1, %c0_2] : memref<8x64xf32, #tpu.memory_space<vmem>>, vector<8x64xf32>
    %c0_3 = arith.constant 0 : index
    %c0_4 = arith.constant 0 : index
    %2 = vector.load %arg1[%c0_3, %c0_4] : memref<8x128xf32, #tpu.memory_space<vmem>>, vector<8x128xf32>
    %3 = tpu.concatenate %2, %0 in 1 : vector<8x128xf32>, vector<8x64xf32> -> vector<8x192xf32>
    %4 = arith.truncf %3 : vector<8x192xf32> to vector<8x192xbf16>
    %c0_5 = arith.constant 0 : index
    %c0_6 = arith.constant 0 : index
    %5 = vector.load %arg4[%c0_5, %c0_6] : memref<192x256xbf16, #tpu.memory_space<vmem>>, vector<192x256xbf16>
    %cst = arith.constant dense<0.000000e+00> : vector<8x256xf32>
    %6 = tpu.matmul %4, %5, %cst {dimension_numbers = #tpu.dot_dimension_numbers<[1], [0], [0], [1], [0, 0, 1, 1], [], []>} : vector<8x192xbf16>, vector<192x256xbf16>, vector<8x256xf32> -> vector<8x256xf32>
    %c0_7 = arith.constant 0 : index
    %c0_8 = arith.constant 0 : index
    %7 = vector.load %arg5[%c0_7, %c0_8] : memref<1x256xf32, #tpu.memory_space<vmem>>, vector<1x256xf32>
    %8 = vector.broadcast %7 : vector<1x256xf32> to vector<8x256xf32>
    %9 = arith.addf %6, %8 : vector<8x256xf32>
    %10 = vector.extract_strided_slice %9 {offsets = [0, 0], sizes = [8, 64], strides = [1, 1]} : vector<8x256xf32> to vector<8x64xf32>
    %11 = arith.negf %10 : vector<8x64xf32>
    %12 = math.exp %11 : vector<8x64xf32>
    %cst_9 = arith.constant 1.000000e+00 : f32
    %13 = vector.broadcast %cst_9 : f32 to vector<8x64xf32>
    %14 = arith.addf %13, %12 : vector<8x64xf32>
    %15 = arith.divf %13, %14 : vector<8x64xf32>
    %16 = vector.extract_strided_slice %9 {offsets = [0, 64], sizes = [8, 64], strides = [1, 1]} : vector<8x256xf32> to vector<8x64xf32>
    %17 = arith.negf %16 : vector<8x64xf32>
    %18 = math.exp %17 : vector<8x64xf32>
    %cst_10 = arith.constant 1.000000e+00 : f32
    %19 = vector.broadcast %cst_10 : f32 to vector<8x64xf32>
    %20 = arith.addf %19, %18 : vector<8x64xf32>
    %21 = arith.divf %19, %20 : vector<8x64xf32>
    %22 = vector.extract_strided_slice %9 {offsets = [0, 128], sizes = [8, 64], strides = [1, 1]} : vector<8x256xf32> to vector<8x64xf32>
    %23 = math.tanh %22 : vector<8x64xf32>
    %24 = vector.extract_strided_slice %9 {offsets = [0, 192], sizes = [8, 64], strides = [1, 1]} : vector<8x256xf32> to vector<8x64xf32>
    %25 = arith.negf %24 : vector<8x64xf32>
    %26 = math.exp %25 : vector<8x64xf32>
    %cst_11 = arith.constant 1.000000e+00 : f32
    %27 = vector.broadcast %cst_11 : f32 to vector<8x64xf32>
    %28 = arith.addf %27, %26 : vector<8x64xf32>
    %29 = arith.divf %27, %28 : vector<8x64xf32>
    %30 = arith.mulf %21, %1 : vector<8x64xf32>
    %31 = arith.mulf %15, %23 : vector<8x64xf32>
    %32 = arith.addf %30, %31 : vector<8x64xf32>
    %33 = math.tanh %32 : vector<8x64xf32>
    %34 = arith.mulf %29, %33 : vector<8x64xf32>
    %c0_12 = arith.constant 0 : index
    %c0_13 = arith.constant 0 : index
    %35 = vector.load %arg6[%c0_12, %c0_13] : memref<8x64xf32, #tpu.memory_space<vmem>>, vector<8x64xf32>
    tpu.vector_store %arg6[%c0_12, %c0_13], %34 {strides = array<i32>} : memref<8x64xf32, #tpu.memory_space<vmem>>, vector<8x64xf32>,
    %c0_14 = arith.constant 0 : index
    %c0_15 = arith.constant 0 : index
    %36 = vector.load %arg7[%c0_14, %c0_15] : memref<8x64xf32, #tpu.memory_space<vmem>>, vector<8x64xf32>
    tpu.vector_store %arg7[%c0_14, %c0_15], %32 {strides = array<i32>} : memref<8x64xf32, #tpu.memory_space<vmem>>, vector<8x64xf32>,
    return
  }
  func.func @transform_0(%arg0: i32) -> (i32, i32) {
    %c0_i32 = arith.constant 0 : i32
    %c0_i32_0 = arith.constant 0 : i32
    return %arg0, %c0_i32 : i32, i32
  }
  func.func @transform_1(%arg0: i32) -> (i32, i32) {
    %c0_i32 = arith.constant 0 : i32
    %c0_i32_0 = arith.constant 0 : i32
    return %arg0, %c0_i32 : i32, i32
  }
  func.func @transform_2(%arg0: i32) -> (i32, i32) {
    %c0_i32 = arith.constant 0 : i32
    %c0_i32_0 = arith.constant 0 : i32
    return %arg0, %c0_i32 : i32, i32
  }
  func.func @transform_3(%arg0: i32) -> (i32, i32) {
    %c0_i32 = arith.constant 0 : i32
    %c0_i32_0 = arith.constant 0 : i32
    %c0_i32_1 = arith.constant 0 : i32
    return %c0_i32, %c0_i32_0 : i32, i32
  }
  func.func @transform_4(%arg0: i32) -> (i32, i32) {
    %c0_i32 = arith.constant 0 : i32
    %c0_i32_0 = arith.constant 0 : i32
    %c0_i32_1 = arith.constant 0 : i32
    return %c0_i32, %c0_i32_0 : i32, i32
  }
  func.func @transform_5(%arg0: i32) -> (i32, i32) {
    %c0_i32 = arith.constant 0 : i32
    %c0_i32_0 = arith.constant 0 : i32
    return %arg0, %c0_i32 : i32, i32
  }
  func.func @transform_6(%arg0: i32) -> (i32, i32) {
    %c0_i32 = arith.constant 0 : i32
    %c0_i32_0 = arith.constant 0 : i32
    return %arg0, %c0_i32 : i32, i32
  }
}

module attributes {stable_mosaic.version = 11 : i64} {
  func.func @_lstm_kernel(%arg0: i32, %arg1: memref<8x128xf32, #tpu.memory_space<vmem>>, %arg2: memref<8x64xf32, #tpu.memory_space<vmem>>, %arg3: memref<8x64xf32, #tpu.memory_space<vmem>>, %arg4: memref<192x256xbf16, #tpu.memory_space<vmem>>, %arg5: memref<1x256xf32, #tpu.memory_space<vmem>>, %arg6: memref<8x64xf32, #tpu.memory_space<vmem>>, %arg7: memref<8x64xf32, #tpu.memory_space<vmem>>) attributes {dimension_semantics = [#tpu.dimension_semantics<parallel>], iteration_bounds = array<i64: 1>, scalar_prefetch = 0 : i64, scratch_operands = 0 : i64, tpu.core_type = #tpu.core_type<tc>, window_params = [{transform_indices = @transform_0, window_bounds = array<i64: 8, 128>}, {transform_indices = @transform_1, window_bounds = array<i64: 8, 64>}, {transform_indices = @transform_2, window_bounds = array<i64: 8, 64>}, {pipeline_mode = #tpu.pipeline_mode<synchronous>, transform_indices = @transform_3, window_bounds = array<i64: 192, 256>}, {pipeline_mode = #tpu.pipeline_mode<synchronous>, transform_indices = @transform_4, window_bounds = array<i64: 1, 256>}, {transform_indices = @transform_5, window_bounds = array<i64: 8, 64>}, {transform_indices = @transform_6, window_bounds = array<i64: 8, 64>}]} {
    %c0 = arith.constant 0 : index
    %c0_0 = arith.constant 0 : index
    %0 = vector.load %arg2[%c0, %c0_0] : memref<8x64xf32, #tpu.memory_space<vmem>>, vector<8x64xf32>
    %c0_1 = arith.constant 0 : index
    %c0_2 = arith.constant 0 : index
    %1 = vector.load %arg3[%c0_1, %c0_2] : memref<8x64xf32, #tpu.memory_space<vmem>>, vector<8x64xf32>
    %c0_3 = arith.constant 0 : index
    %c0_4 = arith.constant 0 : index
    %2 = vector.load %arg1[%c0_3, %c0_4] : memref<8x128xf32, #tpu.memory_space<vmem>>, vector<8x128xf32>
    %3 = tpu.concatenate %2, %0 in 1 : vector<8x128xf32>, vector<8x64xf32> -> vector<8x192xf32>
    %4 = arith.truncf %3 : vector<8x192xf32> to vector<8x192xbf16>
    %c0_5 = arith.constant 0 : index
    %c0_6 = arith.constant 0 : index
    %5 = vector.load %arg4[%c0_5, %c0_6] : memref<192x256xbf16, #tpu.memory_space<vmem>>, vector<192x256xbf16>
    %cst = arith.constant dense<0.000000e+00> : vector<8x256xf32>
    %6 = tpu.matmul %4, %5, %cst {dimension_numbers = #tpu.dot_dimension_numbers<[1], [0], [0], [1], [0, 0, 1, 1], [], []>} : vector<8x192xbf16>, vector<192x256xbf16>, vector<8x256xf32> -> vector<8x256xf32>
    %c0_7 = arith.constant 0 : index
    %c0_8 = arith.constant 0 : index
    %7 = vector.load %arg5[%c0_7, %c0_8] : memref<1x256xf32, #tpu.memory_space<vmem>>, vector<1x256xf32>
    %8 = vector.broadcast %7 : vector<1x256xf32> to vector<8x256xf32>
    %9 = arith.addf %6, %8 : vector<8x256xf32>
    %10 = vector.extract_strided_slice %9 {offsets = [0, 0], sizes = [8, 64], strides = [1, 1]} : vector<8x256xf32> to vector<8x64xf32>
    %11 = arith.negf %10 : vector<8x64xf32>
    %12 = math.exp %11 : vector<8x64xf32>
    %cst_9 = arith.constant 1.000000e+00 : f32
    %13 = vector.broadcast %cst_9 : f32 to vector<8x64xf32>
    %14 = arith.addf %13, %12 : vector<8x64xf32>
    %15 = arith.divf %13, %14 : vector<8x64xf32>
    %16 = vector.extract_strided_slice %9 {offsets = [0, 64], sizes = [8, 64], strides = [1, 1]} : vector<8x256xf32> to vector<8x64xf32>
    %17 = arith.negf %16 : vector<8x64xf32>
    %18 = math.exp %17 : vector<8x64xf32>
    %cst_10 = arith.constant 1.000000e+00 : f32
    %19 = vector.broadcast %cst_10 : f32 to vector<8x64xf32>
    %20 = arith.addf %19, %18 : vector<8x64xf32>
    %21 = arith.divf %19, %20 : vector<8x64xf32>
    %22 = vector.extract_strided_slice %9 {offsets = [0, 128], sizes = [8, 64], strides = [1, 1]} : vector<8x256xf32> to vector<8x64xf32>
    %23 = math.tanh %22 : vector<8x64xf32>
    %24 = vector.extract_strided_slice %9 {offsets = [0, 192], sizes = [8, 64], strides = [1, 1]} : vector<8x256xf32> to vector<8x64xf32>
    %25 = arith.negf %24 : vector<8x64xf32>
    %26 = math.exp %25 : vector<8x64xf32>
    %cst_11 = arith.constant 1.000000e+00 : f32
    %27 = vector.broadcast %cst_11 : f32 to vector<8x64xf32>
    %28 = arith.addf %27, %26 : vector<8x64xf32>
    %29 = arith.divf %27, %28 : vector<8x64xf32>
    %30 = arith.mulf %21, %1 : vector<8x64xf32>
    %31 = arith.mulf %15, %23 : vector<8x64xf32>
    %32 = arith.addf %30, %31 : vector<8x64xf32>
    %33 = math.tanh %32 : vector<8x64xf32>
    %34 = arith.mulf %29, %33 : vector<8x64xf32>
    %c0_12 = arith.constant 0 : index
    %c0_13 = arith.constant 0 : index
    %35 = vector.load %arg6[%c0_12, %c0_13] : memref<8x64xf32, #tpu.memory_space<vmem>>, vector<8x64xf32>
    tpu.vector_store %arg6[%c0_12, %c0_13], %34 {strides = array<i32>} : memref<8x64xf32, #tpu.memory_space<vmem>>, vector<8x64xf32>,
    %c0_14 = arith.constant 0 : index
    %c0_15 = arith.constant 0 : index
    %36 = vector.load %arg7[%c0_14, %c0_15] : memref<8x64xf32, #tpu.memory_space<vmem>>, vector<8x64xf32>
    tpu.vector_store %arg7[%c0_14, %c0_15], %32 {strides = array<i32>} : memref<8x64xf32, #tpu.memory_space<vmem>>, vector<8x64xf32>,
    return
  }
  func.func @transform_0(%arg0: i32) -> (i32, i32) {
    %c0_i32 = arith.constant 0 : i32
    %c0_i32_0 = arith.constant 0 : i32
    return %arg0, %c0_i32 : i32, i32
  }
  func.func @transform_1(%arg0: i32) -> (i32, i32) {
    %c0_i32 = arith.constant 0 : i32
    %c0_i32_0 = arith.constant 0 : i32
    return %arg0, %c0_i32 : i32, i32
  }
  func.func @transform_2(%arg0: i32) -> (i32, i32) {
    %c0_i32 = arith.constant 0 : i32
    %c0_i32_0 = arith.constant 0 : i32
    return %arg0, %c0_i32 : i32, i32
  }
  func.func @transform_3(%arg0: i32) -> (i32, i32) {
    %c0_i32 = arith.constant 0 : i32
    %c0_i32_0 = arith.constant 0 : i32
    %c0_i32_1 = arith.constant 0 : i32
    return %c0_i32, %c0_i32_0 : i32, i32
  }
  func.func @transform_4(%arg0: i32) -> (i32, i32) {
    %c0_i32 = arith.constant 0 : i32
    %c0_i32_0 = arith.constant 0 : i32
    %c0_i32_1 = arith.constant 0 : i32
    return %c0_i32, %c0_i32_0 : i32, i32
  }
  func.func @transform_5(%arg0: i32) -> (i32, i32) {
    %c0_i32 = arith.constant 0 : i32
    %c0_i32_0 = arith.constant 0 : i32
    return %arg0, %c0_i32 : i32, i32
  }
  func.func @transform_6(%arg0: i32) -> (i32, i32) {
    %c0_i32 = arith.constant 0 : i32
    %c0_i32_0 = arith.constant 0 : i32
    return %arg0, %c0_i32 : i32, i32
  }
}

module attributes {stable_mosaic.version = 11 : i64} {
  func.func @_head_kernel(%arg0: i32, %arg1: memref<8x128xf32, #tpu.memory_space<vmem>>, %arg2: memref<128x64xbf16, #tpu.memory_space<vmem>>, %arg3: memref<1x64xf32, #tpu.memory_space<vmem>>, %arg4: memref<64x12xbf16, #tpu.memory_space<vmem>>, %arg5: memref<1x12xf32, #tpu.memory_space<vmem>>, %arg6: memref<8x12xf32, #tpu.memory_space<vmem>>) attributes {dimension_semantics = [#tpu.dimension_semantics<parallel>], iteration_bounds = array<i64: 1>, scalar_prefetch = 0 : i64, scratch_operands = 0 : i64, tpu.core_type = #tpu.core_type<tc>, window_params = [{transform_indices = @transform_0, window_bounds = array<i64: 8, 128>}, {pipeline_mode = #tpu.pipeline_mode<synchronous>, transform_indices = @transform_1, window_bounds = array<i64: 128, 64>}, {pipeline_mode = #tpu.pipeline_mode<synchronous>, transform_indices = @transform_2, window_bounds = array<i64: 1, 64>}, {pipeline_mode = #tpu.pipeline_mode<synchronous>, transform_indices = @transform_3, window_bounds = array<i64: 64, 12>}, {pipeline_mode = #tpu.pipeline_mode<synchronous>, transform_indices = @transform_4, window_bounds = array<i64: 1, 12>}, {transform_indices = @transform_5, window_bounds = array<i64: 8, 12>}]} {
    %c0 = arith.constant 0 : index
    %c0_0 = arith.constant 0 : index
    %0 = vector.load %arg1[%c0, %c0_0] : memref<8x128xf32, #tpu.memory_space<vmem>>, vector<8x128xf32>
    %1 = arith.truncf %0 : vector<8x128xf32> to vector<8x128xbf16>
    %c0_1 = arith.constant 0 : index
    %c0_2 = arith.constant 0 : index
    %2 = vector.load %arg2[%c0_1, %c0_2] : memref<128x64xbf16, #tpu.memory_space<vmem>>, vector<128x64xbf16>
    %cst = arith.constant dense<0.000000e+00> : vector<8x64xf32>
    %3 = tpu.matmul %1, %2, %cst {dimension_numbers = #tpu.dot_dimension_numbers<[1], [0], [0], [1], [0, 0, 1, 1], [], []>} : vector<8x128xbf16>, vector<128x64xbf16>, vector<8x64xf32> -> vector<8x64xf32>
    %c0_3 = arith.constant 0 : index
    %c0_4 = arith.constant 0 : index
    %4 = vector.load %arg3[%c0_3, %c0_4] : memref<1x64xf32, #tpu.memory_space<vmem>>, vector<1x64xf32>
    %5 = vector.broadcast %4 : vector<1x64xf32> to vector<8x64xf32>
    %6 = arith.addf %3, %5 : vector<8x64xf32>
    %cst_5 = arith.constant 0.000000e+00 : f32
    %7 = vector.broadcast %cst_5 : f32 to vector<8x64xf32>
    %8 = arith.maximumf %6, %7 : vector<8x64xf32>
    %9 = arith.truncf %8 : vector<8x64xf32> to vector<8x64xbf16>
    %c0_6 = arith.constant 0 : index
    %c0_7 = arith.constant 0 : index
    %10 = vector.load %arg4[%c0_6, %c0_7] : memref<64x12xbf16, #tpu.memory_space<vmem>>, vector<64x12xbf16>
    %cst_8 = arith.constant dense<0.000000e+00> : vector<8x12xf32>
    %11 = tpu.matmul %9, %10, %cst_8 {dimension_numbers = #tpu.dot_dimension_numbers<[1], [0], [0], [1], [0, 0, 1, 1], [], []>} : vector<8x64xbf16>, vector<64x12xbf16>, vector<8x12xf32> -> vector<8x12xf32>
    %c0_9 = arith.constant 0 : index
    %c0_10 = arith.constant 0 : index
    %12 = vector.load %arg5[%c0_9, %c0_10] : memref<1x12xf32, #tpu.memory_space<vmem>>, vector<1x12xf32>
    %13 = vector.broadcast %12 : vector<1x12xf32> to vector<8x12xf32>
    %14 = arith.addf %11, %13 : vector<8x12xf32>
    %c0_11 = arith.constant 0 : index
    %c0_12 = arith.constant 0 : index
    %15 = vector.load %arg6[%c0_11, %c0_12] : memref<8x12xf32, #tpu.memory_space<vmem>>, vector<8x12xf32>
    tpu.vector_store %arg6[%c0_11, %c0_12], %14 {strides = array<i32>} : memref<8x12xf32, #tpu.memory_space<vmem>>, vector<8x12xf32>,
    return
  }
  func.func @transform_0(%arg0: i32) -> (i32, i32) {
    %c0_i32 = arith.constant 0 : i32
    %c0_i32_0 = arith.constant 0 : i32
    return %arg0, %c0_i32 : i32, i32
  }
  func.func @transform_1(%arg0: i32) -> (i32, i32) {
    %c0_i32 = arith.constant 0 : i32
    %c0_i32_0 = arith.constant 0 : i32
    %c0_i32_1 = arith.constant 0 : i32
    return %c0_i32, %c0_i32_0 : i32, i32
  }
  func.func @transform_2(%arg0: i32) -> (i32, i32) {
    %c0_i32 = arith.constant 0 : i32
    %c0_i32_0 = arith.constant 0 : i32
    %c0_i32_1 = arith.constant 0 : i32
    return %c0_i32, %c0_i32_0 : i32, i32
  }
  func.func @transform_3(%arg0: i32) -> (i32, i32) {
    %c0_i32 = arith.constant 0 : i32
    %c0_i32_0 = arith.constant 0 : i32
    %c0_i32_1 = arith.constant 0 : i32
    return %c0_i32, %c0_i32_0 : i32, i32
  }
  func.func @transform_4(%arg0: i32) -> (i32, i32) {
    %c0_i32 = arith.constant 0 : i32
    %c0_i32_0 = arith.constant 0 : i32
    %c0_i32_1 = arith.constant 0 : i32
    return %c0_i32, %c0_i32_0 : i32, i32
  }
  func.func @transform_5(%arg0: i32) -> (i32, i32) {
    %c0_i32 = arith.constant 0 : i32
    %c0_i32_0 = arith.constant 0 : i32
    return %arg0, %c0_i32 : i32, i32
  }
}

</mosaic_0001>

<llo_original>
// kernel: mpnn_forward.22
$region0: #{mpnn_forward.22}
  #allocation0 [shape = 'u32[]', space=smem, size = 0x4, offset = 0x4, fixed_abs, tag = 'smem constant byte address 0x4 - core index']
  #allocation1 [shape = 'u32[144,128]{1,0:T(1,128)}', space=vmem, size = 0x12000, scoped, tag = 'internal scratch']
  %s0 = inlined_call_operand.vmem [shape: f32[32,5], index: 0, kind: input, shape index: {}]
  %s1 = inlined_call_operand.vmem [shape: bf16[5,128], index: 1, kind: input, shape index: {}]
  %s2 = inlined_call_operand.vmem [shape: f32[1,128], index: 2, kind: input, shape index: {}]
  %s3 = inlined_call_operand.vmem [shape: bf16[32,128], index: 3, kind: output, shape index: {}]
  %s4 = sld [smem:[#allocation0]]
  $region45: #{mpnn_forward.22} parent=0
    _
  %s6 = ssub.s32 1, %s4
  %s7 = scalar_select 0, %s6, %s4
  loop: start=0, step=1, limit=4
  $region2: #{mpnn_forward.22} parent=0 // loop_pre_header
    _
  $region3: #{mpnn_forward.22} parent=0 // loop_header
    %s9 = sphi 0, %s13
    %p10 = scmp.ge.s32.totalorder %s9, 4
    %s19 = sphi 0, %s21
    %s22 = sphi 0, %s19
    %s23 = sphi 0, %s22
    %s39 = sphi 0, %s23
    %s43 = sphi 0, %s43
    %s45 = sphi 0, %s43
    %s46 = sphi 0, %s45
    %s60 = sphi 0, %s46
    %s64 = sphi 0, %s64
    %s66 = sphi 0, %s64
    %s67 = sphi 0, %s66
    %s81 = sphi 0, %s67
    %s87 = sphi 0, %s89
    %s90 = sphi 0, %s87
    %s91 = sphi 0, %s90
    %s107 = sphi 0, %s91
  $region4: #{mpnn_forward.22} parent=0 // loop_header_branch
    %12 = sbr.rel (%p10) target = $region8
  $region5: #{mpnn_forward.22} parent=0 // loop_body
    %s14 = ssub.s32 %s9, 1
    %s15 = ssub.s32 %s9, 2
    %s16 = sadd.s32 %s9, 1
    %s17 = ssub.s32 %s9, %s16
    %p18 = scmp.eq.s32.totalorder %s17, 0
    %s20 = sadd.s32 %s19, 1
    %s21 = scalar_select %p18, %s19, %s20
    %p24 = pneg %p18
    %p25 = scmp.eq.s32.totalorder %s9, 1
    %p26 = por %p24, %p25
    %p27 = scmp.ne.s32.totalorder %s19, %s22
    %p28 = scmp.eq.s32.totalorder %s9, 0
    %p29 = por %p27, %p28
    %p30 = scmp.ne.s32.totalorder %s19, %s22
    %p31 = scmp.eq.s32.totalorder %s14, 1
    %p32 = por %p30, %p31
    %p33 = scmp.ne.s32.totalorder %s22, %s23
    %p34 = scmp.eq.s32.totalorder %s14, 0
    %p35 = por %p33, %p34
    %p36 = scmp.ne.s32.totalorder %s22, %s23
    %p37 = scmp.eq.s32.totalorder %s15, 1
    %p38 = por %p36, %p37
    %p40 = scmp.ne.s32.totalorder %s23, %s39
    %p41 = scmp.eq.s32.totalorder %s15, 0
    %p42 = por %p40, %p41
    %s44 = sadd.s32 %s43, 1
    %p47 = scmp.eq.s32.totalorder %s9, 1
    %p48 = scmp.ne.s32.totalorder %s43, %s45
    %p49 = scmp.eq.s32.totalorder %s9, 0
    %p50 = por %p48, %p49
    %p51 = scmp.ne.s32.totalorder %s43, %s45
    %p52 = scmp.eq.s32.totalorder %s14, 1
    %p53 = por %p51, %p52
    %p54 = scmp.ne.s32.totalorder %s45, %s46
    %p55 = scmp.eq.s32.totalorder %s14, 0
    %p56 = por %p54, %p55
    %p57 = scmp.ne.s32.totalorder %s45, %s46
    %p58 = scmp.eq.s32.totalorder %s15, 1
    %p59 = por %p57, %p58
    %p61 = scmp.ne.s32.totalorder %s46, %s60
    %p62 = scmp.eq.s32.totalorder %s15, 0
    %p63 = por %p61, %p62
    %s65 = sadd.s32 %s64, 1
    %p68 = scmp.eq.s32.totalorder %s9, 1
    %p69 = scmp.ne.s32.totalorder %s64, %s66
    %p70 = scmp.eq.s32.totalorder %s9, 0
    %p71 = por %p69, %p70
    %p72 = scmp.ne.s32.totalorder %s64, %s66
    %p73 = scmp.eq.s32.totalorder %s14, 1
    %p74 = por %p72, %p73
    %p75 = scmp.ne.s32.totalorder %s66, %s67
    %p76 = scmp.eq.s32.totalorder %s14, 0
    %p77 = por %p75, %p76
    %p78 = scmp.ne.s32.totalorder %s66, %s67
    %p79 = scmp.eq.s32.totalorder %s15, 1
    %p80 = por %p78, %p79
    %p82 = scmp.ne.s32.totalorder %s67, %s81
    %p83 = scmp.eq.s32.totalorder %s15, 0
    %p84 = por %p82, %p83
    %s85 = ssub.s32 %s9, %s16
    %p86 = scmp.eq.s32.totalorder %s85, 0
    %s88 = sadd.s32 %s87, 1
    %s89 = scalar_select %p86, %s87, %s88
    %p92 = pneg %p86
    %p93 = scmp.eq.s32.totalorder %s9, 1
    %p94 = por %p92, %p93
    %p95 = scmp.ne.s32.totalorder %s87, %s90
    %p96 = scmp.eq.s32.totalorder %s9, 0
    %p97 = por %p95, %p96
    %p98 = scmp.ne.s32.totalorder %s87, %s90
    %p99 = scmp.eq.s32.totalorder %s14, 1
    %p100 = por %p98, %p99
    %p101 = scmp.ne.s32.totalorder %s90, %s91
    %p102 = scmp.eq.s32.totalorder %s14, 0
    %p103 = por %p101, %p102
    %p104 = scmp.ne.s32.totalorder %s90, %s91
    %p105 = scmp.eq.s32.totalorder %s15, 1
    %p106 = por %p104, %p105
    %p108 = scmp.ne.s32.totalorder %s91, %s107
    %p109 = scmp.eq.s32.totalorder %s15, 0
    %p110 = por %p108, %p109
    %p111 = scmp.le.s32.totalorder 1, %s9
    %p112 = scmp.lt.s32.totalorder %s9, 3
    %p113 = pnand %p111, %p112
    %p114 = pneg %p113
    // Predicated region
    $region9: #{mpnn_forward.22} parent=5 // pred_check
      _
    $region10: #{mpnn_forward.22} parent=5 // pred_check_branch
      %116 = sbr.rel (%p113) target = $region12
    $region11: #{mpnn_forward.22} parent=5 // pred_region
      %s117 = ssub.s32 %s9, 1
      // Predicated region
      $region13: #{mpnn_forward.22} parent=11 // pred_check
        %p118 = pneg %p56
      $region14: #{mpnn_forward.22} parent=11 // pred_check_branch
        %120 = sbr.rel (%p118) target = $region16
      $region15: #{mpnn_forward.22} parent=11 // pred_region
        _
      $region16: #{mpnn_forward.22} parent=11 // pred_fallthru
        _
      // Predicated region
      $region17: #{mpnn_forward.22} parent=11 // pred_check
        %p121 = pneg %p77
      $region18: #{mpnn_forward.22} parent=11 // pred_check_branch
        %123 = sbr.rel (%p121) target = $region20
      $region19: #{mpnn_forward.22} parent=11 // pred_region
        _
      $region20: #{mpnn_forward.22} parent=11 // pred_fallthru
        _
    $region12: #{mpnn_forward.22} parent=5 // pred_fallthru
      _
    %p124 = scmp.lt.s32.totalorder %s9, 2
    // Predicated region
    $region21: #{mpnn_forward.22} parent=5 // pred_check
      %p125 = pneg %p124
    $region22: #{mpnn_forward.22} parent=5 // pred_check_branch
      %127 = sbr.rel (%p125) target = $region24
    $region23: #{mpnn_forward.22} parent=5 // pred_region
      // Predicated region
      $region25: #{mpnn_forward.22} parent=23 // pred_check
        %p128 = pneg %p29
      $region26: #{mpnn_forward.22} parent=23 // pred_check_branch
        %130 = sbr.rel (%p128) target = $region28
      $region27: #{mpnn_forward.22} parent=23 // pred_region
        %s131 = smul.u32 2, %s9
        %p132 = scmp.lt.s32.totalorder %s131, 3
        %s133 = scalar_select %p132, %s131, 3
        %s134 = smul.addr %s133, 8
        %s135 = scalar_lea.vmem %s0, %s134
        %s136 = smul.u32 2, %s9
      $region28: #{mpnn_forward.22} parent=23 // pred_fallthru
        _
    $region24: #{mpnn_forward.22} parent=5 // pred_fallthru
      _
    %p137 = scmp.le.s32.totalorder 1, %s9
    %p138 = scmp.lt.s32.totalorder %s9, 3
    %p139 = pnand %p137, %p138
    %p140 = pneg %p139
    // Predicated region
    $region29: #{mpnn_forward.22} parent=5 // pred_check
      _
    $region30: #{mpnn_forward.22} parent=5 // pred_check_branch
      %142 = sbr.rel (%p139) target = $region32
    $region31: #{mpnn_forward.22} parent=5 // pred_region
      %s143 = ssub.s32 %s9, 1
      %s144 = smul.u32 2, %s14
      %p145 = scmp.lt.s32.totalorder %s144, 3
      %s146 = scalar_select %p145, %s144, 3
      %s147 = smul.addr %s146, 8
      %s148 = scalar_lea.vmem %s0, %s147
      %p149 = pneg %p35
      %p150 = pneg %p32
      %p151 = pneg %p56
      %p152 = pneg %p53
      %p153 = pneg %p77
      %p154 = pneg %p74
      %p155 = pneg %p103
      %p156 = pneg %p100
      %s157 = smul.u32 2, %s14
      %p158 = scmp.lt.s32.totalorder %s157, 3
      %s159 = scalar_select %p158, %s157, 3
      %s160 = smul.addr %s159, 4
      %s161 = scalar_lea.vmem %s3, %s160
      %s162 = smul.u32 2, %s14
      %p163 = scmp.lt.s32.totalorder %s162, 3
      %s164 = scalar_select %p163, %s162, 3
      %s165 = smul.addr %s164, 8
      %s166 = scalar_lea.vmem %s0, %s165
      %s167 = smul.u32 2, %s14
      %s168 = smul.u32 2, %s14
      %p169 = scmp.lt.s32.totalorder %s168, 3
      %s170 = scalar_select %p169, %s168, 3
      %s171 = smul.addr %s170, 4
      %s172 = scalar_lea.vmem %s3, %s171
      %s173 = smul.u32 2, %s14
      %v175 = vld [vmem:[%s166] sm:$0xff]
      %v176 = vld [vmem:[%s166 + $0x8] sm:$0xff]
      %v177 = vpack.c.bf16 %v176, %v175
      %v178 = vld [vmem:[%s1] sm:$0x7]
      %v179 = vld [vmem:[%s2] sm:$0x1]
      %v181 = vlaneseq
      %v182 = vshrl.u32 %v181, 7
      %v183 = vsub.s32 0, %v182
      %v184 = vrot.slane %v179, %v183
      %vm186 = vcmask 39936
      %v188 = vsel %vm186, %v177, 0
      %vm190 = vcmask 1041408
      %vm191 = vcmask 1042432
      %v192 = vsel %vm190, 4294967295, 65535
      %v193 = vsel %vm191, %v192, 0
      %v195 = vand.u32 %v178, %v193
      %197 = vmatprep.subr.bf16.mxu0 0
      %198 = vmatpush1.bf16.msra.mxu0 %v195
      %199 = vmatprep.subr.bf16.mxu0 0
      %200 = vmatpush1.bf16.msra.mxu0 0
      %201 = vmatprep.subr.bf16.mxu0 0
      %202 = vmatpush1.bf16.msra.mxu0 0
      %203 = vmatprep.subr.bf16.mxu0 0
      %204 = vmatpush1.bf16.msra.mxu0 0
      %205 = vmatprep.subr.bf16.mxu0 0
      %206 = vmatpush1.bf16.msra.mxu0 0
      %207 = vmatprep.subr.bf16.mxu0 0
      %208 = vmatpush1.bf16.msra.mxu0 0
      %209 = vmatprep.subr.bf16.mxu0 0
      %210 = vmatpush1.bf16.msra.mxu0 0
      %211 = vmatprep.subr.bf16.mxu0 0
      %212 = vmatpush1.bf16.msra.mxu0 0
      %213 = vmatprep.subr.bf16.mxu0 0
      %214 = vmatpush1.bf16.msra.mxu0 0
      %215 = vmatprep.subr.bf16.mxu0 0
      %216 = vmatpush1.bf16.msra.mxu0 0
      %217 = vmatprep.subr.bf16.mxu0 0
      %218 = vmatpush1.bf16.msra.mxu0 0
      %219 = vmatprep.subr.bf16.mxu0 0
      %220 = vmatpush1.bf16.msra.mxu0 0
      %221 = vmatprep.subr.bf16.mxu0 0
      %222 = vmatpush1.bf16.msra.mxu0 0
      %223 = vmatprep.subr.bf16.mxu0 0
      %224 = vmatpush1.bf16.msra.mxu0 0
      %225 = vmatprep.subr.bf16.mxu0 0
      %226 = vmatpush1.bf16.msra.mxu0 0
      %227 = vmatprep.subr.bf16.mxu0 0
      %228 = vmatpush1.bf16.msra.mxu0 0
      %229 = vmatprep.mubr.bf16.mxu0 0
      %230 = vmatmul.mubr.bf16.gmra.mrb[0].mxu0 %v188
      %v231 = vpop.f32.mrb[0].mxu0
      %v232 = vadd.f32 %v184, %v231
      %v233 = vpop.f32.mrb[0].mxu0
      %v234 = vpop.f32.mrb[0].mxu0
      %v235 = vadd.f32 %v184, %v234
      %v236 = vpop.f32.mrb[0].mxu0
      %237 = vdwg.mxu0
      %v238 = vmax.f32 %v232, 0.0
      %v239 = vmax.f32 %v235, 0.0
      %v240 = vpack.c.bf16 %v239, %v238
      %v242 = vunpack.c.l.b16 %v240
      %v243 = vunpack.c.h.b16 %v240
      %v244 = vpack.c.b16 %v242, %v242
      %v245 = vpack.c.b16 %v243, %v243
      %248 = vst [vmem:[%s172] sm:$0xf] %v244
      %249 = vst [vmem:[%s172 + $0x4] sm:$0xf] %v245
      %s250 = smul.u32 2, %s14
      %p251 = scmp.lt.s32.totalorder %s250, 3
      %s252 = scalar_select %p251, %s250, 3
      %s253 = smul.addr %s252, 4
      %s254 = scalar_lea.vmem %s3, %s253
      // Predicated region
      $region33: #{mpnn_forward.22} parent=31 // pred_check
        %p255 = pneg %p100
      $region34: #{mpnn_forward.22} parent=31 // pred_check_branch
        %257 = sbr.rel (%p255) target = $region36
      $region35: #{mpnn_forward.22} parent=31 // pred_region
        %s258 = smul.u32 2, %s14
      $region36: #{mpnn_forward.22} parent=31 // pred_fallthru
        _
    $region32: #{mpnn_forward.22} parent=5 // pred_fallthru
      _
    %p259 = scmp.le.s32.totalorder 2, %s9
    // Predicated region
    $region37: #{mpnn_forward.22} parent=5 // pred_check
      %p260 = pneg %p259
    $region38: #{mpnn_forward.22} parent=5 // pred_check_branch
      %262 = sbr.rel (%p260) target = $region40
    $region39: #{mpnn_forward.22} parent=5 // pred_region
      %s263 = ssub.s32 %s9, 2
      // Predicated region
      $region41: #{mpnn_forward.22} parent=39 // pred_check
        %p264 = pneg %p106
      $region42: #{mpnn_forward.22} parent=39 // pred_check_branch
        %266 = sbr.rel (%p264) target = $region44
      $region43: #{mpnn_forward.22} parent=39 // pred_region
        %s267 = smul.u32 2, %s15
        %p268 = scmp.lt.s32.totalorder %s267, 3
        %s269 = scalar_select %p268, %s267, 3
        %s270 = smul.addr %s269, 4
        %s271 = scalar_lea.vmem %s3, %s270
      $region44: #{mpnn_forward.22} parent=39 // pred_fallthru
        _
    $region40: #{mpnn_forward.22} parent=5 // pred_fallthru
      _
  $region6: #{mpnn_forward.22} parent=0 // loop_footer
    %s13 = sadd.s32 1, %s9
  $region7: #{mpnn_forward.22} parent=0 // loop_footer_branch
    %8 = sbr.rel target = $region3
  $region8: #{mpnn_forward.22} parent=0 // loop_exit
    _

// kernel: mpnn_forward.21
$region0: #{mpnn_forward.21}
  #allocation0 [shape = 'u32[]', space=smem, size = 0x4, offset = 0x4, fixed_abs, tag = 'smem constant byte address 0x4 - core index']
  #allocation1 [shape = 'u32[144,128]{1,0:T(1,128)}', space=vmem, size = 0x12000, scoped, tag = 'internal scratch']
  %s0 = inlined_call_operand.vmem [shape: f32[16,15], index: 0, kind: input, shape index: {}]
  %s1 = inlined_call_operand.vmem [shape: bf16[15,64], index: 1, kind: input, shape index: {}]
  %s2 = inlined_call_operand.hbm [shape: f32[1,64], index: 2, kind: input, shape index: {}]
  %s3 = inlined_call_operand.vmem [shape: f32[16,64], index: 3, kind: output, shape index: {}]
  %s4 = sld [smem:[#allocation0]]
  $region49: #{mpnn_forward.21} parent=0
    _
  %s6 = ssub.s32 1, %s4
  %s7 = scalar_select 0, %s6, %s4
  $region1: #{mpnn_forward.21} parent=0
    #allocation2 [shape = 'u8[512]{0}', space=vmem, size = 0x400, scoped, tag = 'input window, operand 2, single buffered']
    #allocation3 [shape = 's32[2]{0}', space=sflag, size = 0x8, scoped, tag = 'scoped memory for mpnn_forward.21']
    %8 = vsyncpa [#allocation3], 0
    loop: start=0, step=1, limit=4
    $region2: #{mpnn_forward.21} parent=1 // loop_pre_header
      _
    $region3: #{mpnn_forward.21} parent=1 // loop_header
      %s10 = sphi 0, %s14
      %p11 = scmp.ge.s32.totalorder %s10, 4
      %s20 = sphi 0, %s22
      %s23 = sphi 0, %s20
      %s24 = sphi 0, %s23
      %s40 = sphi 0, %s24
      %s44 = sphi 0, %s44
      %s46 = sphi 0, %s44
      %s47 = sphi 0, %s46
      %s61 = sphi 0, %s47
      %s65 = sphi 0, %s65
      %s67 = sphi 0, %s65
      %s68 = sphi 0, %s67
      %s82 = sphi 0, %s68
      %s88 = sphi 0, %s90
      %s91 = sphi 0, %s88
      %s92 = sphi 0, %s91
      %s108 = sphi 0, %s92
    $region4: #{mpnn_forward.21} parent=1 // loop_header_branch
      %13 = sbr.rel (%p11) target = $region8
    $region5: #{mpnn_forward.21} parent=1 // loop_body
      %s15 = ssub.s32 %s10, 1
      %s16 = ssub.s32 %s10, 2
      %s17 = sadd.s32 %s10, 1
      %s18 = ssub.s32 %s10, %s17
      %p19 = scmp.eq.s32.totalorder %s18, 0
      %s21 = sadd.s32 %s20, 1
      %s22 = scalar_select %p19, %s20, %s21
      %p25 = pneg %p19
      %p26 = scmp.eq.s32.totalorder %s10, 1
      %p27 = por %p25, %p26
      %p28 = scmp.ne.s32.totalorder %s20, %s23
      %p29 = scmp.eq.s32.totalorder %s10, 0
      %p30 = por %p28, %p29
      %p31 = scmp.ne.s32.totalorder %s20, %s23
      %p32 = scmp.eq.s32.totalorder %s15, 1
      %p33 = por %p31, %p32
      %p34 = scmp.ne.s32.totalorder %s23, %s24
      %p35 = scmp.eq.s32.totalorder %s15, 0
      %p36 = por %p34, %p35
      %p37 = scmp.ne.s32.totalorder %s23, %s24
      %p38 = scmp.eq.s32.totalorder %s16, 1
      %p39 = por %p37, %p38
      %p41 = scmp.ne.s32.totalorder %s24, %s40
      %p42 = scmp.eq.s32.totalorder %s16, 0
      %p43 = por %p41, %p42
      %s45 = sadd.s32 %s44, 1
      %p48 = scmp.eq.s32.totalorder %s10, 1
      %p49 = scmp.ne.s32.totalorder %s44, %s46
      %p50 = scmp.eq.s32.totalorder %s10, 0
      %p51 = por %p49, %p50
      %p52 = scmp.ne.s32.totalorder %s44, %s46
      %p53 = scmp.eq.s32.totalorder %s15, 1
      %p54 = por %p52, %p53
      %p55 = scmp.ne.s32.totalorder %s46, %s47
      %p56 = scmp.eq.s32.totalorder %s15, 0
      %p57 = por %p55, %p56
      %p58 = scmp.ne.s32.totalorder %s46, %s47
      %p59 = scmp.eq.s32.totalorder %s16, 1
      %p60 = por %p58, %p59
      %p62 = scmp.ne.s32.totalorder %s47, %s61
      %p63 = scmp.eq.s32.totalorder %s16, 0
      %p64 = por %p62, %p63
      %s66 = sadd.s32 %s65, 1
      %p69 = scmp.eq.s32.totalorder %s10, 1
      %p70 = scmp.ne.s32.totalorder %s65, %s67
      %p71 = scmp.eq.s32.totalorder %s10, 0
      %p72 = por %p70, %p71
      %p73 = scmp.ne.s32.totalorder %s65, %s67
      %p74 = scmp.eq.s32.totalorder %s15, 1
      %p75 = por %p73, %p74
      %p76 = scmp.ne.s32.totalorder %s67, %s68
      %p77 = scmp.eq.s32.totalorder %s15, 0
      %p78 = por %p76, %p77
      %p79 = scmp.ne.s32.totalorder %s67, %s68
      %p80 = scmp.eq.s32.totalorder %s16, 1
      %p81 = por %p79, %p80
      %p83 = scmp.ne.s32.totalorder %s68, %s82
      %p84 = scmp.eq.s32.totalorder %s16, 0
      %p85 = por %p83, %p84
      %s86 = ssub.s32 %s10, %s17
      %p87 = scmp.eq.s32.totalorder %s86, 0
      %s89 = sadd.s32 %s88, 1
      %s90 = scalar_select %p87, %s88, %s89
      %p93 = pneg %p87
      %p94 = scmp.eq.s32.totalorder %s10, 1
      %p95 = por %p93, %p94
      %p96 = scmp.ne.s32.totalorder %s88, %s91
      %p97 = scmp.eq.s32.totalorder %s10, 0
      %p98 = por %p96, %p97
      %p99 = scmp.ne.s32.totalorder %s88, %s91
      %p100 = scmp.eq.s32.totalorder %s15, 1
      %p101 = por %p99, %p100
      %p102 = scmp.ne.s32.totalorder %s91, %s92
      %p103 = scmp.eq.s32.totalorder %s15, 0
      %p104 = por %p102, %p103
      %p105 = scmp.ne.s32.totalorder %s91, %s92
      %p106 = scmp.eq.s32.totalorder %s16, 1
      %p107 = por %p105, %p106
      %p109 = scmp.ne.s32.totalorder %s92, %s108
      %p110 = scmp.eq.s32.totalorder %s16, 0
      %p111 = por %p109, %p110
      %p112 = scmp.le.s32.totalorder 1, %s10
      %p113 = scmp.lt.s32.totalorder %s10, 3
      %p114 = pnand %p112, %p113
      %p115 = pneg %p114
      // Predicated region
      $region9: #{mpnn_forward.21} parent=5 // pred_check
        _
      $region10: #{mpnn_forward.21} parent=5 // pred_check_branch
        %117 = sbr.rel (%p114) target = $region12
      $region11: #{mpnn_forward.21} parent=5 // pred_region
        %s118 = ssub.s32 %s10, 1
        // Predicated region
        $region13: #{mpnn_forward.21} parent=11 // pred_check
          %p119 = pneg %p57
        $region14: #{mpnn_forward.21} parent=11 // pred_check_branch
          %121 = sbr.rel (%p119) target = $region16
        $region15: #{mpnn_forward.21} parent=11 // pred_region
          _
        $region16: #{mpnn_forward.21} parent=11 // pred_fallthru
          _
        // Predicated region
        $region17: #{mpnn_forward.21} parent=11 // pred_check
          %p122 = pneg %p78
        $region18: #{mpnn_forward.21} parent=11 // pred_check_branch
          %124 = sbr.rel (%p122) target = $region20
        $region19: #{mpnn_forward.21} parent=11 // pred_region
          %s126 = ssub.s32 16, 16
          %127 = vsyncadd [#allocation3], %s126
          %s129 = sshll.u32 [#allocation2], 4
          %s130 = int_to_ptr.vmem [resolvable:$true] %s129
          %132 = dma.hbm_to_vmem [thread:$0]  %s2, 16, %s130, [#allocation3]
        $region20: #{mpnn_forward.21} parent=11 // pred_fallthru
          _
      $region12: #{mpnn_forward.21} parent=5 // pred_fallthru
        _
      %p133 = scmp.lt.s32.totalorder %s10, 2
      // Predicated region
      $region21: #{mpnn_forward.21} parent=5 // pred_check
        %p134 = pneg %p133
      $region22: #{mpnn_forward.21} parent=5 // pred_check_branch
        %136 = sbr.rel (%p134) target = $region24
      $region23: #{mpnn_forward.21} parent=5 // pred_region
        // Predicated region
        $region25: #{mpnn_forward.21} parent=23 // pred_check
          %p137 = pneg %p30
        $region26: #{mpnn_forward.21} parent=23 // pred_check_branch
          %139 = sbr.rel (%p137) target = $region28
        $region27: #{mpnn_forward.21} parent=23 // pred_region
          %p140 = scmp.lt.s32.totalorder %s10, 1
          %s141 = scalar_select %p140, %s10, 1
          %s142 = smul.addr %s141, 8
          %s143 = scalar_lea.vmem %s0, %s142
        $region28: #{mpnn_forward.21} parent=23 // pred_fallthru
          _
      $region24: #{mpnn_forward.21} parent=5 // pred_fallthru
        _
      %p144 = scmp.le.s32.totalorder 1, %s10
      %p145 = scmp.lt.s32.totalorder %s10, 3
      %p146 = pnand %p144, %p145
      %p147 = pneg %p146
      // Predicated region
      $region29: #{mpnn_forward.21} parent=5 // pred_check
        _
      $region30: #{mpnn_forward.21} parent=5 // pred_check_branch
        %149 = sbr.rel (%p146) target = $region32
      $region31: #{mpnn_forward.21} parent=5 // pred_region
        %s150 = ssub.s32 %s10, 1
        // Predicated region
        $region33: #{mpnn_forward.21} parent=31 // pred_check
          %p151 = pneg %p78
        $region34: #{mpnn_forward.21} parent=31 // pred_check_branch
          %153 = sbr.rel (%p151) target = $region36
        $region35: #{mpnn_forward.21} parent=31 // pred_region
          %154 = dma.done [#allocation3], 16
        $region36: #{mpnn_forward.21} parent=31 // pred_fallthru
          _
        %p155 = scmp.lt.s32.totalorder %s15, 1
        %s156 = scalar_select %p155, %s15, 1
        %s157 = smul.addr %s156, 8
        %s158 = scalar_lea.vmem %s0, %s157
        %p159 = pneg %p36
        %p160 = pneg %p33
        %p161 = pneg %p57
        %p162 = pneg %p54
        %p163 = pneg %p78
        %p164 = pneg %p75
        %p165 = pneg %p104
        %p166 = pneg %p101
        %p167 = scmp.lt.s32.totalorder %s15, 1
        %s168 = scalar_select %p167, %s15, 1
        %s169 = smul.addr %s168, 8
        %s170 = scalar_lea.vmem %s3, %s169
        %p171 = scmp.lt.s32.totalorder %s15, 1
        %s172 = scalar_select %p171, %s15, 1
        %s173 = smul.addr %s172, 8
        %s174 = scalar_lea.vmem %s0, %s173
        %p175 = scmp.lt.s32.totalorder %s15, 1
        %s176 = scalar_select %p175, %s15, 1
        %s177 = smul.addr %s176, 8
        %s178 = scalar_lea.vmem %s3, %s177
        %v180 = vld [vmem:[%s174] sm:$0xff]
        %v181 = vpack.c.bf16 %v180, %v180
        %v182 = vld [vmem:[%s1] sm:$0xf]
        %v183 = vld [vmem:[%s1 + $0x4] sm:$0xf]
        %v184 = vld [vmem:[#allocation2] sm:$0x1]
        %v186 = vlaneseq
        %v187 = vshrl.u32 %v186, 7
        %v188 = vsub.s32 0, %v187
        %v189 = vrot.slane %v184, %v188
        %v193 = vunpack.c.l.b16 %v182
        %v194 = vunpack.c.l.b16 %v183
        %v195 = vpack.c.b16 %v194, %v193
        %vm196 = vcmask 121856
        %v198 = vsel %vm196, %v181, 0
        %vm200 = vcmask 1046528
        %vm201 = vcmask 1047552
        %v202 = vsel %vm200, 4294967295, 65535
        %v203 = vsel %vm201, %v202, 0
        %v205 = vand.u32 %v195, %v203
        %207 = vmatprep.subr.bf16.mxu0 0
        %208 = vmatpush1.bf16.msra.mxu0 %v205
        %209 = vmatprep.subr.bf16.mxu0 0
        %210 = vmatpush1.bf16.msra.mxu0 0
        %211 = vmatprep.subr.bf16.mxu0 0
        %212 = vmatpush1.bf16.msra.mxu0 0
        %213 = vmatprep.subr.bf16.mxu0 0
        %214 = vmatpush1.bf16.msra.mxu0 0
        %215 = vmatprep.subr.bf16.mxu0 0
        %216 = vmatpush1.bf16.msra.mxu0 0
        %217 = vmatprep.subr.bf16.mxu0 0
        %218 = vmatpush1.bf16.msra.mxu0 0
        %219 = vmatprep.subr.bf16.mxu0 0
        %220 = vmatpush1.bf16.msra.mxu0 0
        %221 = vmatprep.subr.bf16.mxu0 0
        %222 = vmatpush1.bf16.msra.mxu0 0
        %223 = vmatprep.subr.bf16.mxu0 0
        %224 = vmatpush1.bf16.msra.mxu0 0
        %225 = vmatprep.subr.bf16.mxu0 0
        %226 = vmatpush1.bf16.msra.mxu0 0
        %227 = vmatprep.subr.bf16.mxu0 0
        %228 = vmatpush1.bf16.msra.mxu0 0
        %229 = vmatprep.subr.bf16.mxu0 0
        %230 = vmatpush1.bf16.msra.mxu0 0
        %231 = vmatprep.subr.bf16.mxu0 0
        %232 = vmatpush1.bf16.msra.mxu0 0
        %233 = vmatprep.subr.bf16.mxu0 0
        %234 = vmatpush1.bf16.msra.mxu0 0
        %235 = vmatprep.subr.bf16.mxu0 0
        %236 = vmatpush1.bf16.msra.mxu0 0
        %237 = vmatprep.subr.bf16.mxu0 0
        %238 = vmatpush1.bf16.msra.mxu0 0
        %239 = vmatprep.mubr.bf16.mxu0 0
        %240 = vmatmul.mubr.bf16.gmra.mrb[0].mxu0 %v198
        %v241 = vpop.f32.mrb[0].mxu0
        %v242 = vadd.f32 %v189, %v241
        %v243 = vpop.f32.mrb[0].mxu0
        %v244 = vpop.f32.mrb[0].mxu0
        %v245 = vpop.f32.mrb[0].mxu0
        %246 = vdwg.mxu0
        %v247 = vmax.f32 %v242, 0.0
        %vm248 = vcmask 523264
        %249 = vst.msk [vmem:[%s178] sm:$0xff] %vm248, %v247
        %p250 = scmp.lt.s32.totalorder %s15, 1
        %s251 = scalar_select %p250, %s15, 1
        %s252 = smul.addr %s251, 8
        %s253 = scalar_lea.vmem %s3, %s252
        // Predicated region
        $region37: #{mpnn_forward.21} parent=31 // pred_check
          %p254 = pneg %p101
        $region38: #{mpnn_forward.21} parent=31 // pred_check_branch
          %256 = sbr.rel (%p254) target = $region40
        $region39: #{mpnn_forward.21} parent=31 // pred_region
          _
        $region40: #{mpnn_forward.21} parent=31 // pred_fallthru
          _
      $region32: #{mpnn_forward.21} parent=5 // pred_fallthru
        _
      %p257 = scmp.le.s32.totalorder 2, %s10
      // Predicated region
      $region41: #{mpnn_forward.21} parent=5 // pred_check
        %p258 = pneg %p257
      $region42: #{mpnn_forward.21} parent=5 // pred_check_branch
        %260 = sbr.rel (%p258) target = $region44
      $region43: #{mpnn_forward.21} parent=5 // pred_region
        %s261 = ssub.s32 %s10, 2
        // Predicated region
        $region45: #{mpnn_forward.21} parent=43 // pred_check
          %p262 = pneg %p107
        $region46: #{mpnn_forward.21} parent=43 // pred_check_branch
          %264 = sbr.rel (%p262) target = $region48
        $region47: #{mpnn_forward.21} parent=43 // pred_region
          %p265 = scmp.lt.s32.totalorder %s16, 1
          %s266 = scalar_select %p265, %s16, 1
          %s267 = smul.addr %s266, 8
          %s268 = scalar_lea.vmem %s3, %s267
        $region48: #{mpnn_forward.21} parent=43 // pred_fallthru
          _
      $region44: #{mpnn_forward.21} parent=5 // pred_fallthru
        _
    $region6: #{mpnn_forward.21} parent=1 // loop_footer
      %s14 = sadd.s32 1, %s10
    $region7: #{mpnn_forward.21} parent=1 // loop_footer_branch
      %9 = sbr.rel target = $region3
    $region8: #{mpnn_forward.21} parent=1 // loop_exit
      _
    %269 = vsyncpa [#allocation3], 1
    %s270 = scalar_lea.sflag [#allocation3], 1
    %271 = vsyncpa %s270, 1

// kernel: mpnn_forward.24
$region0: #{mpnn_forward.24}
  #allocation0 [shape = 'u32[]', space=smem, size = 0x4, offset = 0x4, fixed_abs, tag = 'smem constant byte address 0x4 - core index']
  #allocation1 [shape = 'u32[144,128]{1,0:T(1,128)}', space=vmem, size = 0x12000, scoped, tag = 'internal scratch']
  %s0 = inlined_call_operand.vmem [shape: f32[16,64], index: 0, kind: input, shape index: {}]
  %s1 = inlined_call_operand.vmem [shape: f32[16,1], index: 1, kind: input, shape index: {}]
  %s2 = inlined_call_operand.vmem [shape: f32[16,64], index: 2, kind: input, shape index: {}]
  %s3 = inlined_call_operand.vmem [shape: bf16[128,256], index: 3, kind: input, shape index: {}]
  %s4 = inlined_call_operand.vmem [shape: f32[1,64], index: 4, kind: input, shape index: {}]
  %s5 = inlined_call_operand.vmem [shape: f32[1,256], index: 5, kind: input, shape index: {}]
  %s6 = inlined_call_operand.vmem [shape: f32[16,64], index: 6, kind: output, shape index: {}]
  %s7 = sld [smem:[#allocation0]]
  $region57: #{mpnn_forward.24} parent=0
    _
  %s9 = ssub.s32 1, %s7
  %s10 = scalar_select 0, %s9, %s7
  loop: start=0, step=1, limit=4
  $region2: #{mpnn_forward.24} parent=0 // loop_pre_header
    _
  $region3: #{mpnn_forward.24} parent=0 // loop_header
    %s12 = sphi 0, %s16
    %p13 = scmp.ge.s32.totalorder %s12, 4
    %s22 = sphi 0, %s24
    %s25 = sphi 0, %s22
    %s26 = sphi 0, %s25
    %s42 = sphi 0, %s26
    %s48 = sphi 0, %s50
    %s51 = sphi 0, %s48
    %s52 = sphi 0, %s51
    %s68 = sphi 0, %s52
    %s74 = sphi 0, %s76
    %s77 = sphi 0, %s74
    %s78 = sphi 0, %s77
    %s94 = sphi 0, %s78
    %s98 = sphi 0, %s98
    %s100 = sphi 0, %s98
    %s101 = sphi 0, %s100
    %s115 = sphi 0, %s101
    %s119 = sphi 0, %s119
    %s121 = sphi 0, %s119
    %s122 = sphi 0, %s121
    %s136 = sphi 0, %s122
    %s140 = sphi 0, %s140
    %s142 = sphi 0, %s140
    %s143 = sphi 0, %s142
    %s157 = sphi 0, %s143
    %s163 = sphi 0, %s165
    %s166 = sphi 0, %s163
    %s167 = sphi 0, %s166
    %s183 = sphi 0, %s167
  $region4: #{mpnn_forward.24} parent=0 // loop_header_branch
    %15 = sbr.rel (%p13) target = $region8
  $region5: #{mpnn_forward.24} parent=0 // loop_body
    %s17 = ssub.s32 %s12, 1
    %s18 = ssub.s32 %s12, 2
    %s19 = sadd.s32 %s12, 1
    %s20 = ssub.s32 %s12, %s19
    %p21 = scmp.eq.s32.totalorder %s20, 0
    %s23 = sadd.s32 %s22, 1
    %s24 = scalar_select %p21, %s22, %s23
    %p27 = pneg %p21
    %p28 = scmp.eq.s32.totalorder %s12, 1
    %p29 = por %p27, %p28
    %p30 = scmp.ne.s32.totalorder %s22, %s25
    %p31 = scmp.eq.s32.totalorder %s12, 0
    %p32 = por %p30, %p31
    %p33 = scmp.ne.s32.totalorder %s22, %s25
    %p34 = scmp.eq.s32.totalorder %s17, 1
    %p35 = por %p33, %p34
    %p36 = scmp.ne.s32.totalorder %s25, %s26
    %p37 = scmp.eq.s32.totalorder %s17, 0
    %p38 = por %p36, %p37
    %p39 = scmp.ne.s32.totalorder %s25, %s26
    %p40 = scmp.eq.s32.totalorder %s18, 1
    %p41 = por %p39, %p40
    %p43 = scmp.ne.s32.totalorder %s26, %s42
    %p44 = scmp.eq.s32.totalorder %s18, 0
    %p45 = por %p43, %p44
    %s46 = ssub.s32 %s12, %s19
    %p47 = scmp.eq.s32.totalorder %s46, 0
    %s49 = sadd.s32 %s48, 1
    %s50 = scalar_select %p47, %s48, %s49
    %p53 = pneg %p47
    %p54 = scmp.eq.s32.totalorder %s12, 1
    %p55 = por %p53, %p54
    %p56 = scmp.ne.s32.totalorder %s48, %s51
    %p57 = scmp.eq.s32.totalorder %s12, 0
    %p58 = por %p56, %p57
    %p59 = scmp.ne.s32.totalorder %s48, %s51
    %p60 = scmp.eq.s32.totalorder %s17, 1
    %p61 = por %p59, %p60
    %p62 = scmp.ne.s32.totalorder %s51, %s52
    %p63 = scmp.eq.s32.totalorder %s17, 0
    %p64 = por %p62, %p63
    %p65 = scmp.ne.s32.totalorder %s51, %s52
    %p66 = scmp.eq.s32.totalorder %s18, 1
    %p67 = por %p65, %p66
    %p69 = scmp.ne.s32.totalorder %s52, %s68
    %p70 = scmp.eq.s32.totalorder %s18, 0
    %p71 = por %p69, %p70
    %s72 = ssub.s32 %s12, %s19
    %p73 = scmp.eq.s32.totalorder %s72, 0
    %s75 = sadd.s32 %s74, 1
    %s76 = scalar_select %p73, %s74, %s75
    %p79 = pneg %p73
    %p80 = scmp.eq.s32.totalorder %s12, 1
    %p81 = por %p79, %p80
    %p82 = scmp.ne.s32.totalorder %s74, %s77
    %p83 = scmp.eq.s32.totalorder %s12, 0
    %p84 = por %p82, %p83
    %p85 = scmp.ne.s32.totalorder %s74, %s77
    %p86 = scmp.eq.s32.totalorder %s17, 1
    %p87 = por %p85, %p86
    %p88 = scmp.ne.s32.totalorder %s77, %s78
    %p89 = scmp.eq.s32.totalorder %s17, 0
    %p90 = por %p88, %p89
    %p91 = scmp.ne.s32.totalorder %s77, %s78
    %p92 = scmp.eq.s32.totalorder %s18, 1
    %p93 = por %p91, %p92
    %p95 = scmp.ne.s32.totalorder %s78, %s94
    %p96 = scmp.eq.s32.totalorder %s18, 0
    %p97 = por %p95, %p96
    %s99 = sadd.s32 %s98, 1
    %p102 = scmp.eq.s32.totalorder %s12, 1
    %p103 = scmp.ne.s32.totalorder %s98, %s100
    %p104 = scmp.eq.s32.totalorder %s12, 0
    %p105 = por %p103, %p104
    %p106 = scmp.ne.s32.totalorder %s98, %s100
    %p107 = scmp.eq.s32.totalorder %s17, 1
    %p108 = por %p106, %p107
    %p109 = scmp.ne.s32.totalorder %s100, %s101
    %p110 = scmp.eq.s32.totalorder %s17, 0
    %p111 = por %p109, %p110
    %p112 = scmp.ne.s32.totalorder %s100, %s101
    %p113 = scmp.eq.s32.totalorder %s18, 1
    %p114 = por %p112, %p113
    %p116 = scmp.ne.s32.totalorder %s101, %s115
    %p117 = scmp.eq.s32.totalorder %s18, 0
    %p118 = por %p116, %p117
    %s120 = sadd.s32 %s119, 1
    %p123 = scmp.eq.s32.totalorder %s12, 1
    %p124 = scmp.ne.s32.totalorder %s119, %s121
    %p125 = scmp.eq.s32.totalorder %s12, 0
    %p126 = por %p124, %p125
    %p127 = scmp.ne.s32.totalorder %s119, %s121
    %p128 = scmp.eq.s32.totalorder %s17, 1
    %p129 = por %p127, %p128
    %p130 = scmp.ne.s32.totalorder %s121, %s122
    %p131 = scmp.eq.s32.totalorder %s17, 0
    %p132 = por %p130, %p131
    %p133 = scmp.ne.s32.totalorder %s121, %s122
    %p134 = scmp.eq.s32.totalorder %s18, 1
    %p135 = por %p133, %p134
    %p137 = scmp.ne.s32.totalorder %s122, %s136
    %p138 = scmp.eq.s32.totalorder %s18, 0
    %p139 = por %p137, %p138
    %s141 = sadd.s32 %s140, 1
    %p144 = scmp.eq.s32.totalorder %s12, 1
    %p145 = scmp.ne.s32.totalorder %s140, %s142
    %p146 = scmp.eq.s32.totalorder %s12, 0
    %p147 = por %p145, %p146
    %p148 = scmp.ne.s32.totalorder %s140, %s142
    %p149 = scmp.eq.s32.totalorder %s17, 1
    %p150 = por %p148, %p149
    %p151 = scmp.ne.s32.totalorder %s142, %s143
    %p152 = scmp.eq.s32.totalorder %s17, 0
    %p153 = por %p151, %p152
    %p154 = scmp.ne.s32.totalorder %s142, %s143
    %p155 = scmp.eq.s32.totalorder %s18, 1
    %p156 = por %p154, %p155
    %p158 = scmp.ne.s32.totalorder %s143, %s157
    %p159 = scmp.eq.s32.totalorder %s18, 0
    %p160 = por %p158, %p159
    %s161 = ssub.s32 %s12, %s19
    %p162 = scmp.eq.s32.totalorder %s161, 0
    %s164 = sadd.s32 %s163, 1
    %s165 = scalar_select %p162, %s163, %s164
    %p168 = pneg %p162
    %p169 = scmp.eq.s32.totalorder %s12, 1
    %p170 = por %p168, %p169
    %p171 = scmp.ne.s32.totalorder %s163, %s166
    %p172 = scmp.eq.s32.totalorder %s12, 0
    %p173 = por %p171, %p172
    %p174 = scmp.ne.s32.totalorder %s163, %s166
    %p175 = scmp.eq.s32.totalorder %s17, 1
    %p176 = por %p174, %p175
    %p177 = scmp.ne.s32.totalorder %s166, %s167
    %p178 = scmp.eq.s32.totalorder %s17, 0
    %p179 = por %p177, %p178
    %p180 = scmp.ne.s32.totalorder %s166, %s167
    %p181 = scmp.eq.s32.totalorder %s18, 1
    %p182 = por %p180, %p181
    %p184 = scmp.ne.s32.totalorder %s167, %s183
    %p185 = scmp.eq.s32.totalorder %s18, 0
    %p186 = por %p184, %p185
    %p187 = scmp.le.s32.totalorder 1, %s12
    %p188 = scmp.lt.s32.totalorder %s12, 3
    %p189 = pnand %p187, %p188
    %p190 = pneg %p189
    // Predicated region
    $region9: #{mpnn_forward.24} parent=5 // pred_check
      _
    $region10: #{mpnn_forward.24} parent=5 // pred_check_branch
      %192 = sbr.rel (%p189) target = $region12
    $region11: #{mpnn_forward.24} parent=5 // pred_region
      %s193 = ssub.s32 %s12, 1
      // Predicated region
      $region13: #{mpnn_forward.24} parent=11 // pred_check
        %p194 = pneg %p111
      $region14: #{mpnn_forward.24} parent=11 // pred_check_branch
        %196 = sbr.rel (%p194) target = $region16
      $region15: #{mpnn_forward.24} parent=11 // pred_region
        _
      $region16: #{mpnn_forward.24} parent=11 // pred_fallthru
        _
      // Predicated region
      $region17: #{mpnn_forward.24} parent=11 // pred_check
        %p197 = pneg %p132
      $region18: #{mpnn_forward.24} parent=11 // pred_check_branch
        %199 = sbr.rel (%p197) target = $region20
      $region19: #{mpnn_forward.24} parent=11 // pred_region
        _
      $region20: #{mpnn_forward.24} parent=11 // pred_fallthru
        _
      // Predicated region
      $region21: #{mpnn_forward.24} parent=11 // pred_check
        %p200 = pneg %p153
      $region22: #{mpnn_forward.24} parent=11 // pred_check_branch
        %202 = sbr.rel (%p200) target = $region24
      $region23: #{mpnn_forward.24} parent=11 // pred_region
        _
      $region24: #{mpnn_forward.24} parent=11 // pred_fallthru
        _
    $region12: #{mpnn_forward.24} parent=5 // pred_fallthru
      _
    %p203 = scmp.lt.s32.totalorder %s12, 2
    // Predicated region
    $region25: #{mpnn_forward.24} parent=5 // pred_check
      %p204 = pneg %p203
    $region26: #{mpnn_forward.24} parent=5 // pred_check_branch
      %206 = sbr.rel (%p204) target = $region28
    $region27: #{mpnn_forward.24} parent=5 // pred_region
      // Predicated region
      $region29: #{mpnn_forward.24} parent=27 // pred_check
        %p207 = pneg %p32
      $region30: #{mpnn_forward.24} parent=27 // pred_check_branch
        %209 = sbr.rel (%p207) target = $region32
      $region31: #{mpnn_forward.24} parent=27 // pred_region
        %p210 = scmp.lt.s32.totalorder %s12, 1
        %s211 = scalar_select %p210, %s12, 1
        %s212 = smul.addr %s211, 8
        %s213 = scalar_lea.vmem %s0, %s212
      $region32: #{mpnn_forward.24} parent=27 // pred_fallthru
        _
      // Predicated region
      $region33: #{mpnn_forward.24} parent=27 // pred_check
        %p214 = pneg %p58
      $region34: #{mpnn_forward.24} parent=27 // pred_check_branch
        %216 = sbr.rel (%p214) target = $region36
      $region35: #{mpnn_forward.24} parent=27 // pred_region
        %p217 = scmp.lt.s32.totalorder %s12, 1
        %s218 = scalar_select %p217, %s12, 1
        %s219 = smul.addr %s218, 8
        %s220 = scalar_lea.vmem %s1, %s219
      $region36: #{mpnn_forward.24} parent=27 // pred_fallthru
        _
      // Predicated region
      $region37: #{mpnn_forward.24} parent=27 // pred_check
        %p221 = pneg %p84
      $region38: #{mpnn_forward.24} parent=27 // pred_check_branch
        %223 = sbr.rel (%p221) target = $region40
      $region39: #{mpnn_forward.24} parent=27 // pred_region
        %p224 = scmp.lt.s32.totalorder %s12, 1
        %s225 = scalar_select %p224, %s12, 1
        %s226 = smul.addr %s225, 8
        %s227 = scalar_lea.vmem %s2, %s226
      $region40: #{mpnn_forward.24} parent=27 // pred_fallthru
        _
    $region28: #{mpnn_forward.24} parent=5 // pred_fallthru
      _
    %p228 = scmp.le.s32.totalorder 1, %s12
    %p229 = scmp.lt.s32.totalorder %s12, 3
    %p230 = pnand %p228, %p229
    %p231 = pneg %p230
    // Predicated region
    $region41: #{mpnn_forward.24} parent=5 // pred_check
      _
    $region42: #{mpnn_forward.24} parent=5 // pred_check_branch
      %233 = sbr.rel (%p230) target = $region44
    $region43: #{mpnn_forward.24} parent=5 // pred_region
      %s234 = ssub.s32 %s12, 1
      %p235 = scmp.lt.s32.totalorder %s17, 1
      %s236 = scalar_select %p235, %s17, 1
      %s237 = smul.addr %s236, 8
      %s238 = scalar_lea.vmem %s0, %s237
      %p239 = pneg %p38
      %p240 = pneg %p35
      %p241 = scmp.lt.s32.totalorder %s17, 1
      %s242 = scalar_select %p241, %s17, 1
      %s243 = smul.addr %s242, 8
      %s244 = scalar_lea.vmem %s1, %s243
      %p245 = pneg %p64
      %p246 = pneg %p61
      %p247 = scmp.lt.s32.totalorder %s17, 1
      %s248 = scalar_select %p247, %s17, 1
      %s249 = smul.addr %s248, 8
      %s250 = scalar_lea.vmem %s2, %s249
      %p251 = pneg %p90
      %p252 = pneg %p87
      %p253 = pneg %p111
      %p254 = pneg %p108
      %p255 = pneg %p132
      %p256 = pneg %p129
      %p257 = pneg %p153
      %p258 = pneg %p150
      %p259 = pneg %p179
      %p260 = pneg %p176
      %p261 = scmp.lt.s32.totalorder %s17, 1
      %s262 = scalar_select %p261, %s17, 1
      %s263 = smul.addr %s262, 8
      %s264 = scalar_lea.vmem %s6, %s263
      %p265 = scmp.lt.s32.totalorder %s17, 1
      %s266 = scalar_select %p265, %s17, 1
      %s267 = smul.addr %s266, 8
      %s268 = scalar_lea.vmem %s0, %s267
      %p269 = scmp.lt.s32.totalorder %s17, 1
      %s270 = scalar_select %p269, %s17, 1
      %s271 = smul.addr %s270, 8
      %s272 = scalar_lea.vmem %s1, %s271
      %p273 = scmp.lt.s32.totalorder %s17, 1
      %s274 = scalar_select %p273, %s17, 1
      %s275 = smul.addr %s274, 8
      %s276 = scalar_lea.vmem %s2, %s275
      %p277 = scmp.lt.s32.totalorder %s17, 1
      %s278 = scalar_select %p277, %s17, 1
      %s279 = smul.addr %s278, 8
      %s280 = scalar_lea.vmem %s6, %s279
      %v282 = vld [vmem:[%s268] sm:$0xff]
      %v283 = vld [vmem:[%s272] sm:$0xff]
      %285 = vset.pattern.permute.xlu0 0
      %286 = vperm.xlu0 %285, %v283
      %v287 = vpop.permute.xlu0 %286
      %v289 = vmul.f32 %v282, %v287
      %v290 = vld [vmem:[%s4] sm:$0x1]
      %v292 = vlaneseq
      %v293 = vshrl.u32 %v292, 7
      %v294 = vsub.s32 0, %v293
      %v295 = vrot.slane %v290, %v294
      %v297 = vadd.f32 %v289, %v295
      %v298 = vmax.f32 %v297, 0.0
      %v299 = vld [vmem:[%s276] sm:$0xff]
      %301 = vrot.lane.b32.xlu0 %v299, 64
      %v302 = vpop.permute.xlu0 %301
      %vm304 = vcmask 523264
      %v305 = vsel %vm304, %v298, %v302
      %v306 = vpack.c.bf16 %v305, %v305
      %v307 = vld [vmem:[%s3] sm:$0xff]
      %v308 = vld [vmem:[%s3 + $0x8] sm:$0xff]
      %v309 = vld [vmem:[%s3 + $0x10] sm:$0xff]
      %v310 = vld [vmem:[%s3 + $0x18] sm:$0xff]
      %v311 = vld [vmem:[%s3 + $0x20] sm:$0xff]
      %v312 = vld [vmem:[%s3 + $0x28] sm:$0xff]
      %v313 = vld [vmem:[%s3 + $0x30] sm:$0xff]
      %v314 = vld [vmem:[%s3 + $0x38] sm:$0xff]
      %v315 = vld [vmem:[%s3 + $0x40] sm:$0xff]
      %v316 = vld [vmem:[%s3 + $0x48] sm:$0xff]
      %v317 = vld [vmem:[%s3 + $0x50] sm:$0xff]
      %v318 = vld [vmem:[%s3 + $0x58] sm:$0xff]
      %v319 = vld [vmem:[%s3 + $0x60] sm:$0xff]
      %v320 = vld [vmem:[%s3 + $0x68] sm:$0xff]
      %v321 = vld [vmem:[%s3 + $0x70] sm:$0xff]
      %v322 = vld [vmem:[%s3 + $0x78] sm:$0xff]
      %v323 = vld [vmem:[%s5] sm:$0x3]
      %v325 = vlaneseq
      %v326 = vshrl.u32 %v325, 7
      %v327 = vsub.s32 0, %v326
      %v328 = vrot.slane %v323, %v327
      %v329 = vlaneseq
      %v330 = vshrl.u32 %v329, 7
      %v331 = vsub.s32 1, %v330
      %v332 = vrot.slane %v323, %v331
      %v351 = vunpack.c.l.b16 %v307
      %v352 = vunpack.c.h.b16 %v307
      %v353 = vunpack.c.l.b16 %v308
      %v354 = vunpack.c.h.b16 %v308
      %v355 = vunpack.c.l.b16 %v309
      %v356 = vunpack.c.h.b16 %v309
      %v357 = vunpack.c.l.b16 %v310
      %v358 = vunpack.c.h.b16 %v310
      %v359 = vunpack.c.l.b16 %v311
      %v360 = vunpack.c.h.b16 %v311
      %v361 = vunpack.c.l.b16 %v312
      %v362 = vunpack.c.h.b16 %v312
      %v363 = vunpack.c.l.b16 %v313
      %v364 = vunpack.c.h.b16 %v313
      %v365 = vunpack.c.l.b16 %v314
      %v366 = vunpack.c.h.b16 %v314
      %v367 = vunpack.c.l.b16 %v315
      %v368 = vunpack.c.h.b16 %v315
      %v369 = vunpack.c.l.b16 %v316
      %v370 = vunpack.c.h.b16 %v316
      %v371 = vunpack.c.l.b16 %v317
      %v372 = vunpack.c.h.b16 %v317
      %v373 = vunpack.c.l.b16 %v318
      %v374 = vunpack.c.h.b16 %v318
      %v375 = vunpack.c.l.b16 %v319
      %v376 = vunpack.c.h.b16 %v319
      %v377 = vunpack.c.l.b16 %v320
      %v378 = vunpack.c.h.b16 %v320
      %v379 = vunpack.c.l.b16 %v321
      %v380 = vunpack.c.h.b16 %v321
      %v381 = vunpack.c.l.b16 %v322
      %v382 = vunpack.c.h.b16 %v322
      %v383 = vpack.c.b16 %v353, %v351
      %v384 = vpack.c.b16 %v354, %v352
      %v385 = vpack.c.b16 %v357, %v355
      %v386 = vpack.c.b16 %v358, %v356
      %v387 = vpack.c.b16 %v361, %v359
      %v388 = vpack.c.b16 %v362, %v360
      %v389 = vpack.c.b16 %v365, %v363
      %v390 = vpack.c.b16 %v366, %v364
      %v391 = vpack.c.b16 %v369, %v367
      %v392 = vpack.c.b16 %v370, %v368
      %v393 = vpack.c.b16 %v373, %v371
      %v394 = vpack.c.b16 %v374, %v372
      %v395 = vpack.c.b16 %v377, %v375
      %v396 = vpack.c.b16 %v378, %v376
      %v397 = vpack.c.b16 %v381, %v379
      %v398 = vpack.c.b16 %v382, %v380
      %415 = vmatprep.subr.bf16.mxu0 %v384
      %416 = vmatpush1.bf16.msra.mxu0 %v383
      %417 = vmatprep.subr.bf16.mxu0 %v386
      %418 = vmatpush1.bf16.msra.mxu0 %v385
      %419 = vmatprep.subr.bf16.mxu0 %v388
      %420 = vmatpush1.bf16.msra.mxu0 %v387
      %421 = vmatprep.subr.bf16.mxu0 %v390
      %422 = vmatpush1.bf16.msra.mxu0 %v389
      %423 = vmatprep.subr.bf16.mxu0 %v392
      %424 = vmatpush1.bf16.msra.mxu0 %v391
      %425 = vmatprep.subr.bf16.mxu0 %v394
      %426 = vmatpush1.bf16.msra.mxu0 %v393
      %427 = vmatprep.subr.bf16.mxu0 %v396
      %428 = vmatpush1.bf16.msra.mxu0 %v395
      %429 = vmatprep.subr.bf16.mxu0 %v398
      %430 = vmatpush1.bf16.msra.mxu0 %v397
      %431 = vmatprep.subr.bf16.mxu0 0
      %432 = vmatpush1.bf16.msra.mxu0 0
      %433 = vmatprep.subr.bf16.mxu0 0
      %434 = vmatpush1.bf16.msra.mxu0 0
      %435 = vmatprep.subr.bf16.mxu0 0
      %436 = vmatpush1.bf16.msra.mxu0 0
      %437 = vmatprep.subr.bf16.mxu0 0
      %438 = vmatpush1.bf16.msra.mxu0 0
      %439 = vmatprep.subr.bf16.mxu0 0
      %440 = vmatpush1.bf16.msra.mxu0 0
      %441 = vmatprep.subr.bf16.mxu0 0
      %442 = vmatpush1.bf16.msra.mxu0 0
      %443 = vmatprep.subr.bf16.mxu0 0
      %444 = vmatpush1.bf16.msra.mxu0 0
      %445 = vmatprep.subr.bf16.mxu0 0
      %446 = vmatpush1.bf16.msra.mxu0 0
      %447 = vmatprep.mubr.bf16.mxu0 0
      %448 = vmatmul.mubr.bf16.gmra.mrb[0].mxu0 %v306
      %v449 = vpop.f32.mrb[0].mxu0
      %v450 = vadd.f32 %v328, %v449
      %v451 = vpop.f32.mrb[0].mxu0
      %v452 = vadd.f32 %v332, %v451
      %v453 = vpop.f32.mrb[0].mxu0
      %v454 = vpop.f32.mrb[0].mxu0
      %455 = vdwg.mxu0
      %v456 = vxor.u32 %v450, 2147483648
      %v457 = vmul.f32 %v456, 1.442695
      %v458 = vpow.pop %v457
      %v459 = vadd.f32 %v458, 1.0
      %v460 = vrcp.pop %v459
      %v461 = vmul.f32 1.0, %v460
      %463 = vrot.lane.b32.xlu0 %v452, 64
      %v464 = vpop.permute.xlu0 %463
      %v466 = vmul.f32 %v461, %v464
      %v467 = vadd.f32 %v452, %v466
      %v468 = vtanh.pop %v467
      %v469 = vsub.f32 1.0, %v461
      %471 = vrot.lane.b32.xlu0 %v468, 64
      %v472 = vpop.permute.xlu0 %471
      %v474 = vmul.f32 %v469, %v472
      %v475 = vmul.f32 %v461, %v302
      %v476 = vadd.f32 %v474, %v475
      %478 = vrot.lane.b32.xlu0 %v476, 64
      %v479 = vpop.permute.xlu0 %478
      %481 = vst.msk [vmem:[%s280] sm:$0xff] %vm304, %v479
      %p482 = scmp.lt.s32.totalorder %s17, 1
      %s483 = scalar_select %p482, %s17, 1
      %s484 = smul.addr %s483, 8
      %s485 = scalar_lea.vmem %s6, %s484
      // Predicated region
      $region45: #{mpnn_forward.24} parent=43 // pred_check
        %p486 = pneg %p176
      $region46: #{mpnn_forward.24} parent=43 // pred_check_branch
        %488 = sbr.rel (%p486) target = $region48
      $region47: #{mpnn_forward.24} parent=43 // pred_region
        _
      $region48: #{mpnn_forward.24} parent=43 // pred_fallthru
        _
    $region44: #{mpnn_forward.24} parent=5 // pred_fallthru
      _
    %p489 = scmp.le.s32.totalorder 2, %s12
    // Predicated region
    $region49: #{mpnn_forward.24} parent=5 // pred_check
      %p490 = pneg %p489
    $region50: #{mpnn_forward.24} parent=5 // pred_check_branch
      %492 = sbr.rel (%p490) target = $region52
    $region51: #{mpnn_forward.24} parent=5 // pred_region
      %s493 = ssub.s32 %s12, 2
      // Predicated region
      $region53: #{mpnn_forward.24} parent=51 // pred_check
        %p494 = pneg %p182
      $region54: #{mpnn_forward.24} parent=51 // pred_check_branch
        %496 = sbr.rel (%p494) target = $region56
      $region55: #{mpnn_forward.24} parent=51 // pred_region
        %p497 = scmp.lt.s32.totalorder %s18, 1
        %s498 = scalar_select %p497, %s18, 1
        %s499 = smul.addr %s498, 8
        %s500 = scalar_lea.vmem %s6, %s499
      $region56: #{mpnn_forward.24} parent=51 // pred_fallthru
        _
    $region52: #{mpnn_forward.24} parent=5 // pred_fallthru
      _
  $region6: #{mpnn_forward.24} parent=0 // loop_footer
    %s16 = sadd.s32 1, %s12
  $region7: #{mpnn_forward.24} parent=0 // loop_footer_branch
    %11 = sbr.rel target = $region3
  $region8: #{mpnn_forward.24} parent=0 // loop_exit
    _

// kernel: mpnn_forward.35
$region0: #{mpnn_forward.35}
  #allocation0 [shape = 'u32[]', space=smem, size = 0x4, offset = 0x4, fixed_abs, tag = 'smem constant byte address 0x4 - core index']
  #allocation1 [shape = 'u32[144,128]{1,0:T(1,128)}', space=vmem, size = 0x12000, scoped, tag = 'internal scratch']
  %s0 = inlined_call_operand.vmem [shape: f32[8,128], index: 0, kind: input, shape index: {}]
  %s1 = inlined_call_operand.vmem [shape: f32[8,64], index: 1, kind: input, shape index: {}, may-alias: {1,2}]
  %s2 = inlined_call_operand.vmem [shape: f32[8,64], index: 2, kind: input, shape index: {}, may-alias: {1,2}]
  %s3 = inlined_call_operand.vmem [shape: bf16[192,256], index: 3, kind: input, shape index: {}]
  %s4 = inlined_call_operand.vmem [shape: f32[1,256], index: 4, kind: input, shape index: {}]
  %s5 = inlined_call_operand.vmem [shape: f32[8,64], index: 5, kind: output, shape index: {0}]
  %s6 = inlined_call_operand.vmem [shape: f32[8,64], index: 6, kind: output, shape index: {1}]
  %7 = xla_tuple %s5, %s6
  %s8 = sld [smem:[#allocation0]]
  $region38: #{mpnn_forward.35} parent=0
    _
  %s10 = ssub.s32 1, %s8
  %s11 = scalar_select 0, %s10, %s8
  // Predicated region
  $region2: #{mpnn_forward.35} parent=0 // pred_check
    _
  $region3: #{mpnn_forward.35} parent=0 // pred_check_branch
    %13 = sbr.rel (0) target = $region5
  $region4: #{mpnn_forward.35} parent=0 // pred_region
    _
  $region5: #{mpnn_forward.35} parent=0 // pred_fallthru
    _
  // Predicated region
  $region6: #{mpnn_forward.35} parent=0 // pred_check
    _
  $region7: #{mpnn_forward.35} parent=0 // pred_check_branch
    %15 = sbr.rel (0) target = $region9
  $region8: #{mpnn_forward.35} parent=0 // pred_region
    _
  $region9: #{mpnn_forward.35} parent=0 // pred_fallthru
    _
  // Predicated region
  $region10: #{mpnn_forward.35} parent=0 // pred_check
    _
  $region11: #{mpnn_forward.35} parent=0 // pred_check_branch
    %17 = sbr.rel (0) target = $region13
  $region12: #{mpnn_forward.35} parent=0 // pred_region
    _
  $region13: #{mpnn_forward.35} parent=0 // pred_fallthru
    _
  // Predicated region
  $region14: #{mpnn_forward.35} parent=0 // pred_check
    _
  $region15: #{mpnn_forward.35} parent=0 // pred_check_branch
    %19 = sbr.rel (0) target = $region17
  $region16: #{mpnn_forward.35} parent=0 // pred_region
    _
  $region17: #{mpnn_forward.35} parent=0 // pred_fallthru
    _
  // Predicated region
  $region18: #{mpnn_forward.35} parent=0 // pred_check
    _
  $region19: #{mpnn_forward.35} parent=0 // pred_check_branch
    %21 = sbr.rel (0) target = $region21
  $region20: #{mpnn_forward.35} parent=0 // pred_region
    _
  $region21: #{mpnn_forward.35} parent=0 // pred_fallthru
    _
  %v23 = vld [vmem:[%s1] sm:$0xff]
  %v24 = vld [vmem:[%s2] sm:$0xff]
  %v25 = vld [vmem:[%s0] sm:$0xff]
  %v26 = vpack.c.bf16 %v25, %v25
  %v27 = vpack.c.bf16 %v23, %v23
  %v28 = vld [vmem:[%s3] sm:$0xff]
  %v29 = vld [vmem:[%s3 + $0x8] sm:$0xff]
  %v30 = vld [vmem:[%s3 + $0x10] sm:$0xff]
  %v31 = vld [vmem:[%s3 + $0x18] sm:$0xff]
  %v32 = vld [vmem:[%s3 + $0x20] sm:$0xff]
  %v33 = vld [vmem:[%s3 + $0x28] sm:$0xff]
  %v34 = vld [vmem:[%s3 + $0x30] sm:$0xff]
  %v35 = vld [vmem:[%s3 + $0x38] sm:$0xff]
  %v36 = vld [vmem:[%s3 + $0x40] sm:$0xff]
  %v37 = vld [vmem:[%s3 + $0x48] sm:$0xff]
  %v38 = vld [vmem:[%s3 + $0x50] sm:$0xff]
  %v39 = vld [vmem:[%s3 + $0x58] sm:$0xff]
  %v40 = vld [vmem:[%s3 + $0x60] sm:$0xff]
  %v41 = vld [vmem:[%s3 + $0x68] sm:$0xff]
  %v42 = vld [vmem:[%s3 + $0x70] sm:$0xff]
  %v43 = vld [vmem:[%s3 + $0x78] sm:$0xff]
  %v44 = vld [vmem:[%s3 + $0x80] sm:$0xff]
  %v45 = vld [vmem:[%s3 + $0x88] sm:$0xff]
  %v46 = vld [vmem:[%s3 + $0x90] sm:$0xff]
  %v47 = vld [vmem:[%s3 + $0x98] sm:$0xff]
  %v48 = vld [vmem:[%s3 + $0xa0] sm:$0xff]
  %v49 = vld [vmem:[%s3 + $0xa8] sm:$0xff]
  %v50 = vld [vmem:[%s3 + $0xb0] sm:$0xff]
  %v51 = vld [vmem:[%s3 + $0xb8] sm:$0xff]
  %v52 = vld [vmem:[%s4] sm:$0x3]
  %v54 = vlaneseq
  %v55 = vshrl.u32 %v54, 7
  %v56 = vsub.s32 0, %v55
  %v57 = vrot.slane %v52, %v56
  %v58 = vlaneseq
  %v59 = vshrl.u32 %v58, 7
  %v60 = vsub.s32 1, %v59
  %v61 = vrot.slane %v52, %v60
  %v88 = vunpack.c.l.b16 %v28
  %v89 = vunpack.c.h.b16 %v28
  %v90 = vunpack.c.l.b16 %v29
  %v91 = vunpack.c.h.b16 %v29
  %v92 = vunpack.c.l.b16 %v30
  %v93 = vunpack.c.h.b16 %v30
  %v94 = vunpack.c.l.b16 %v31
  %v95 = vunpack.c.h.b16 %v31
  %v96 = vunpack.c.l.b16 %v32
  %v97 = vunpack.c.h.b16 %v32
  %v98 = vunpack.c.l.b16 %v33
  %v99 = vunpack.c.h.b16 %v33
  %v100 = vunpack.c.l.b16 %v34
  %v101 = vunpack.c.h.b16 %v34
  %v102 = vunpack.c.l.b16 %v35
  %v103 = vunpack.c.h.b16 %v35
  %v104 = vunpack.c.l.b16 %v36
  %v105 = vunpack.c.h.b16 %v36
  %v106 = vunpack.c.l.b16 %v37
  %v107 = vunpack.c.h.b16 %v37
  %v108 = vunpack.c.l.b16 %v38
  %v109 = vunpack.c.h.b16 %v38
  %v110 = vunpack.c.l.b16 %v39
  %v111 = vunpack.c.h.b16 %v39
  %v112 = vunpack.c.l.b16 %v40
  %v113 = vunpack.c.h.b16 %v40
  %v114 = vunpack.c.l.b16 %v41
  %v115 = vunpack.c.h.b16 %v41
  %v116 = vunpack.c.l.b16 %v42
  %v117 = vunpack.c.h.b16 %v42
  %v118 = vunpack.c.l.b16 %v43
  %v119 = vunpack.c.h.b16 %v43
  %v120 = vunpack.c.l.b16 %v44
  %v121 = vunpack.c.h.b16 %v44
  %v122 = vunpack.c.l.b16 %v45
  %v123 = vunpack.c.h.b16 %v45
  %v124 = vunpack.c.l.b16 %v46
  %v125 = vunpack.c.h.b16 %v46
  %v126 = vunpack.c.l.b16 %v47
  %v127 = vunpack.c.h.b16 %v47
  %v128 = vunpack.c.l.b16 %v48
  %v129 = vunpack.c.h.b16 %v48
  %v130 = vunpack.c.l.b16 %v49
  %v131 = vunpack.c.h.b16 %v49
  %v132 = vunpack.c.l.b16 %v50
  %v133 = vunpack.c.h.b16 %v50
  %v134 = vunpack.c.l.b16 %v51
  %v135 = vunpack.c.h.b16 %v51
  %v136 = vpack.c.b16 %v90, %v88
  %v137 = vpack.c.b16 %v91, %v89
  %v138 = vpack.c.b16 %v94, %v92
  %v139 = vpack.c.b16 %v95, %v93
  %v140 = vpack.c.b16 %v98, %v96
  %v141 = vpack.c.b16 %v99, %v97
  %v142 = vpack.c.b16 %v102, %v100
  %v143 = vpack.c.b16 %v103, %v101
  %v144 = vpack.c.b16 %v106, %v104
  %v145 = vpack.c.b16 %v107, %v105
  %v146 = vpack.c.b16 %v110, %v108
  %v147 = vpack.c.b16 %v111, %v109
  %v148 = vpack.c.b16 %v114, %v112
  %v149 = vpack.c.b16 %v115, %v113
  %v150 = vpack.c.b16 %v118, %v116
  %v151 = vpack.c.b16 %v119, %v117
  %v152 = vpack.c.b16 %v122, %v120
  %v153 = vpack.c.b16 %v123, %v121
  %v154 = vpack.c.b16 %v126, %v124
  %v155 = vpack.c.b16 %v127, %v125
  %v156 = vpack.c.b16 %v130, %v128
  %v157 = vpack.c.b16 %v131, %v129
  %v158 = vpack.c.b16 %v134, %v132
  %v159 = vpack.c.b16 %v135, %v133
  %vm184 = vcmask 523264
  %v186 = vsel %vm184, %v27, 0
  %188 = vmatprep.subr.bf16.mxu0 %v137
  %189 = vmatpush1.bf16.msra.mxu0 %v136
  %190 = vmatprep.subr.bf16.mxu0 %v139
  %191 = vmatpush1.bf16.msra.mxu0 %v138
  %192 = vmatprep.subr.bf16.mxu0 %v141
  %193 = vmatpush1.bf16.msra.mxu0 %v140
  %194 = vmatprep.subr.bf16.mxu0 %v143
  %195 = vmatpush1.bf16.msra.mxu0 %v142
  %196 = vmatprep.subr.bf16.mxu0 %v145
  %197 = vmatpush1.bf16.msra.mxu0 %v144
  %198 = vmatprep.subr.bf16.mxu0 %v147
  %199 = vmatpush1.bf16.msra.mxu0 %v146
  %200 = vmatprep.subr.bf16.mxu0 %v149
  %201 = vmatpush1.bf16.msra.mxu0 %v148
  %202 = vmatprep.subr.bf16.mxu0 %v151
  %203 = vmatpush1.bf16.msra.mxu0 %v150
  %204 = vmatprep.subr.bf16.mxu0 %v153
  %205 = vmatpush1.bf16.msra.mxu0 %v152
  %206 = vmatprep.subr.bf16.mxu0 %v155
  %207 = vmatpush1.bf16.msra.mxu0 %v154
  %208 = vmatprep.subr.bf16.mxu0 %v157
  %209 = vmatpush1.bf16.msra.mxu0 %v156
  %210 = vmatprep.subr.bf16.mxu0 %v159
  %211 = vmatpush1.bf16.msra.mxu0 %v158
  %212 = vmatprep.subr.bf16.mxu0 0
  %213 = vmatpush1.bf16.msra.mxu0 0
  %214 = vmatprep.subr.bf16.mxu0 0
  %215 = vmatpush1.bf16.msra.mxu0 0
  %216 = vmatprep.subr.bf16.mxu0 0
  %217 = vmatpush1.bf16.msra.mxu0 0
  %218 = vmatprep.subr.bf16.mxu0 0
  %219 = vmatpush1.bf16.msra.mxu0 0
  %220 = vmatprep.mubr.bf16.mxu0 %v186
  %221 = vmatmul.mubr.bf16.gmra.mrb[0].mxu0 %v26
  %v222 = vpop.f32.mrb[0].mxu0
  %v223 = vadd.f32 %v57, %v222
  %v224 = vpop.f32.mrb[0].mxu0
  %v225 = vadd.f32 %v61, %v224
  %v226 = vpop.f32.mrb[0].mxu0
  %v227 = vpop.f32.mrb[0].mxu0
  %228 = vdwg.mxu0
  %v229 = vxor.u32 %v223, 2147483648
  %v230 = vmul.f32 %v229, 1.442695
  %v231 = vpow.pop %v230
  %v232 = vadd.f32 %v231, 1.0
  %v233 = vrcp.pop %v232
  %v234 = vmul.f32 1.0, %v233
  %v235 = vtanh.pop %v225
  %v236 = vxor.u32 %v225, 2147483648
  %v237 = vmul.f32 %v236, 1.442695
  %v238 = vpow.pop %v237
  %v239 = vadd.f32 %v238, 1.0
  %v240 = vrcp.pop %v239
  %v241 = vmul.f32 1.0, %v240
  %243 = vrot.lane.b32.xlu0 %v24, 64
  %v244 = vpop.permute.xlu0 %243
  %v246 = vmul.f32 %v234, %v244
  %v247 = vmul.f32 %v234, %v235
  %249 = vrot.lane.b32.xlu0 %v247, 64
  %v250 = vpop.permute.xlu0 %249
  %v252 = vadd.f32 %v246, %v250
  %v253 = vtanh.pop %v252
  %v254 = vmul.f32 %v241, %v253
  %256 = vrot.lane.b32.xlu0 %v254, 64
  %v257 = vpop.permute.xlu0 %256
  %259 = vst.msk [vmem:[%s5] sm:$0xff] %vm184, %v257
  %261 = vrot.lane.b32.xlu0 %v252, 64
  %v262 = vpop.permute.xlu0 %261
  %264 = vst.msk [vmem:[%s6] sm:$0xff] %vm184, %v262
  // Predicated region
  $region22: #{mpnn_forward.35} parent=0 // pred_check
    _
  $region23: #{mpnn_forward.35} parent=0 // pred_check_branch
    %266 = sbr.rel (0) target = $region25
  $region24: #{mpnn_forward.35} parent=0 // pred_region
    _
  $region25: #{mpnn_forward.35} parent=0 // pred_fallthru
    _
  // Predicated region
  $region26: #{mpnn_forward.35} parent=0 // pred_check
    _
  $region27: #{mpnn_forward.35} parent=0 // pred_check_branch
    %268 = sbr.rel (0) target = $region29
  $region28: #{mpnn_forward.35} parent=0 // pred_region
    _
  $region29: #{mpnn_forward.35} parent=0 // pred_fallthru
    _
  // Predicated region
  $region30: #{mpnn_forward.35} parent=0 // pred_check
    _
  $region31: #{mpnn_forward.35} parent=0 // pred_check_branch
    %270 = sbr.rel (0) target = $region33
  $region32: #{mpnn_forward.35} parent=0 // pred_region
    _
  $region33: #{mpnn_forward.35} parent=0 // pred_fallthru
    _
  // Predicated region
  $region34: #{mpnn_forward.35} parent=0 // pred_check
    _
  $region35: #{mpnn_forward.35} parent=0 // pred_check_branch
    %272 = sbr.rel (0) target = $region37
  $region36: #{mpnn_forward.35} parent=0 // pred_region
    _
  $region37: #{mpnn_forward.35} parent=0 // pred_fallthru
    _

// kernel: mpnn_forward.23
$region0: #{mpnn_forward.23}
  #allocation0 [shape = 'u32[]', space=smem, size = 0x4, offset = 0x4, fixed_abs, tag = 'smem constant byte address 0x4 - core index']
  #allocation1 [shape = 'u32[144,128]{1,0:T(1,128)}', space=vmem, size = 0x12000, scoped, tag = 'internal scratch']
  #allocation2 [shape = 'f32[16,4096]{1,0:T(8,128)}', space=vmem, size = 0x40000, scoped, tag = 'scratch operand']
  %s0 = inlined_call_operand.vmem [shape: bf16[32,64], index: 0, kind: input, shape index: {}]
  %s1 = inlined_call_operand.vmem [shape: bf16[32,128], index: 1, kind: input, shape index: {}]
  %s2 = inlined_call_operand.vmem [shape: bf16[128,4096], index: 2, kind: input, shape index: {}]
  %s3 = inlined_call_operand.vmem [shape: bf16[64,64], index: 3, kind: input, shape index: {}]
  %s4 = inlined_call_operand.vmem [shape: f32[32,64], index: 4, kind: output, shape index: {}]
  %s5 = sld [smem:[#allocation0]]
  $region49: #{mpnn_forward.23} parent=0
    _
  %s7 = ssub.s32 1, %s5
  %s8 = scalar_select 0, %s7, %s5
  loop: start=0, step=1, limit=4
  $region2: #{mpnn_forward.23} parent=0 // loop_pre_header
    _
  $region3: #{mpnn_forward.23} parent=0 // loop_header
    %s10 = sphi 0, %s14
    %p11 = scmp.ge.s32.totalorder %s10, 4
    %s20 = sphi 0, %s22
    %s23 = sphi 0, %s20
    %s24 = sphi 0, %s23
    %s40 = sphi 0, %s24
    %s46 = sphi 0, %s48
    %s49 = sphi 0, %s46
    %s50 = sphi 0, %s49
    %s66 = sphi 0, %s50
    %s70 = sphi 0, %s70
    %s72 = sphi 0, %s70
    %s73 = sphi 0, %s72
    %s87 = sphi 0, %s73
    %s91 = sphi 0, %s91
    %s93 = sphi 0, %s91
    %s94 = sphi 0, %s93
    %s108 = sphi 0, %s94
    %s114 = sphi 0, %s116
    %s117 = sphi 0, %s114
    %s118 = sphi 0, %s117
    %s134 = sphi 0, %s118
  $region4: #{mpnn_forward.23} parent=0 // loop_header_branch
    %13 = sbr.rel (%p11) target = $region8
  $region5: #{mpnn_forward.23} parent=0 // loop_body
    %s15 = ssub.s32 %s10, 1
    %s16 = ssub.s32 %s10, 2
    %s17 = sadd.s32 %s10, 1
    %s18 = ssub.s32 %s10, %s17
    %p19 = scmp.eq.s32.totalorder %s18, 0
    %s21 = sadd.s32 %s20, 1
    %s22 = scalar_select %p19, %s20, %s21
    %p25 = pneg %p19
    %p26 = scmp.eq.s32.totalorder %s10, 1
    %p27 = por %p25, %p26
    %p28 = scmp.ne.s32.totalorder %s20, %s23
    %p29 = scmp.eq.s32.totalorder %s10, 0
    %p30 = por %p28, %p29
    %p31 = scmp.ne.s32.totalorder %s20, %s23
    %p32 = scmp.eq.s32.totalorder %s15, 1
    %p33 = por %p31, %p32
    %p34 = scmp.ne.s32.totalorder %s23, %s24
    %p35 = scmp.eq.s32.totalorder %s15, 0
    %p36 = por %p34, %p35
    %p37 = scmp.ne.s32.totalorder %s23, %s24
    %p38 = scmp.eq.s32.totalorder %s16, 1
    %p39 = por %p37, %p38
    %p41 = scmp.ne.s32.totalorder %s24, %s40
    %p42 = scmp.eq.s32.totalorder %s16, 0
    %p43 = por %p41, %p42
    %s44 = ssub.s32 %s10, %s17
    %p45 = scmp.eq.s32.totalorder %s44, 0
    %s47 = sadd.s32 %s46, 1
    %s48 = scalar_select %p45, %s46, %s47
    %p51 = pneg %p45
    %p52 = scmp.eq.s32.totalorder %s10, 1
    %p53 = por %p51, %p52
    %p54 = scmp.ne.s32.totalorder %s46, %s49
    %p55 = scmp.eq.s32.totalorder %s10, 0
    %p56 = por %p54, %p55
    %p57 = scmp.ne.s32.totalorder %s46, %s49
    %p58 = scmp.eq.s32.totalorder %s15, 1
    %p59 = por %p57, %p58
    %p60 = scmp.ne.s32.totalorder %s49, %s50
    %p61 = scmp.eq.s32.totalorder %s15, 0
    %p62 = por %p60, %p61
    %p63 = scmp.ne.s32.totalorder %s49, %s50
    %p64 = scmp.eq.s32.totalorder %s16, 1
    %p65 = por %p63, %p64
    %p67 = scmp.ne.s32.totalorder %s50, %s66
    %p68 = scmp.eq.s32.totalorder %s16, 0
    %p69 = por %p67, %p68
    %s71 = sadd.s32 %s70, 1
    %p74 = scmp.eq.s32.totalorder %s10, 1
    %p75 = scmp.ne.s32.totalorder %s70, %s72
    %p76 = scmp.eq.s32.totalorder %s10, 0
    %p77 = por %p75, %p76
    %p78 = scmp.ne.s32.totalorder %s70, %s72
    %p79 = scmp.eq.s32.totalorder %s15, 1
    %p80 = por %p78, %p79
    %p81 = scmp.ne.s32.totalorder %s72, %s73
    %p82 = scmp.eq.s32.totalorder %s15, 0
    %p83 = por %p81, %p82
    %p84 = scmp.ne.s32.totalorder %s72, %s73
    %p85 = scmp.eq.s32.totalorder %s16, 1
    %p86 = por %p84, %p85
    %p88 = scmp.ne.s32.totalorder %s73, %s87
    %p89 = scmp.eq.s32.totalorder %s16, 0
    %p90 = por %p88, %p89
    %s92 = sadd.s32 %s91, 1
    %p95 = scmp.eq.s32.totalorder %s10, 1
    %p96 = scmp.ne.s32.totalorder %s91, %s93
    %p97 = scmp.eq.s32.totalorder %s10, 0
    %p98 = por %p96, %p97
    %p99 = scmp.ne.s32.totalorder %s91, %s93
    %p100 = scmp.eq.s32.totalorder %s15, 1
    %p101 = por %p99, %p100
    %p102 = scmp.ne.s32.totalorder %s93, %s94
    %p103 = scmp.eq.s32.totalorder %s15, 0
    %p104 = por %p102, %p103
    %p105 = scmp.ne.s32.totalorder %s93, %s94
    %p106 = scmp.eq.s32.totalorder %s16, 1
    %p107 = por %p105, %p106
    %p109 = scmp.ne.s32.totalorder %s94, %s108
    %p110 = scmp.eq.s32.totalorder %s16, 0
    %p111 = por %p109, %p110
    %s112 = ssub.s32 %s10, %s17
    %p113 = scmp.eq.s32.totalorder %s112, 0
    %s115 = sadd.s32 %s114, 1
    %s116 = scalar_select %p113, %s114, %s115
    %p119 = pneg %p113
    %p120 = scmp.eq.s32.totalorder %s10, 1
    %p121 = por %p119, %p120
    %p122 = scmp.ne.s32.totalorder %s114, %s117
    %p123 = scmp.eq.s32.totalorder %s10, 0
    %p124 = por %p122, %p123
    %p125 = scmp.ne.s32.totalorder %s114, %s117
    %p126 = scmp.eq.s32.totalorder %s15, 1
    %p127 = por %p125, %p126
    %p128 = scmp.ne.s32.totalorder %s117, %s118
    %p129 = scmp.eq.s32.totalorder %s15, 0
    %p130 = por %p128, %p129
    %p131 = scmp.ne.s32.totalorder %s117, %s118
    %p132 = scmp.eq.s32.totalorder %s16, 1
    %p133 = por %p131, %p132
    %p135 = scmp.ne.s32.totalorder %s118, %s134
    %p136 = scmp.eq.s32.totalorder %s16, 0
    %p137 = por %p135, %p136
    %p138 = scmp.le.s32.totalorder 1, %s10
    %p139 = scmp.lt.s32.totalorder %s10, 3
    %p140 = pnand %p138, %p139
    %p141 = pneg %p140
    // Predicated region
    $region9: #{mpnn_forward.23} parent=5 // pred_check
      _
    $region10: #{mpnn_forward.23} parent=5 // pred_check_branch
      %143 = sbr.rel (%p140) target = $region12
    $region11: #{mpnn_forward.23} parent=5 // pred_region
      %s144 = ssub.s32 %s10, 1
      // Predicated region
      $region13: #{mpnn_forward.23} parent=11 // pred_check
        %p145 = pneg %p83
      $region14: #{mpnn_forward.23} parent=11 // pred_check_branch
        %147 = sbr.rel (%p145) target = $region16
      $region15: #{mpnn_forward.23} parent=11 // pred_region
        _
      $region16: #{mpnn_forward.23} parent=11 // pred_fallthru
        _
      // Predicated region
      $region17: #{mpnn_forward.23} parent=11 // pred_check
        %p148 = pneg %p104
      $region18: #{mpnn_forward.23} parent=11 // pred_check_branch
        %150 = sbr.rel (%p148) target = $region20
      $region19: #{mpnn_forward.23} parent=11 // pred_region
        _
      $region20: #{mpnn_forward.23} parent=11 // pred_fallthru
        _
    $region12: #{mpnn_forward.23} parent=5 // pred_fallthru
      _
    %p151 = scmp.lt.s32.totalorder %s10, 2
    // Predicated region
    $region21: #{mpnn_forward.23} parent=5 // pred_check
      %p152 = pneg %p151
    $region22: #{mpnn_forward.23} parent=5 // pred_check_branch
      %154 = sbr.rel (%p152) target = $region24
    $region23: #{mpnn_forward.23} parent=5 // pred_region
      // Predicated region
      $region25: #{mpnn_forward.23} parent=23 // pred_check
        %p155 = pneg %p30
      $region26: #{mpnn_forward.23} parent=23 // pred_check_branch
        %157 = sbr.rel (%p155) target = $region28
      $region27: #{mpnn_forward.23} parent=23 // pred_region
        %s158 = smul.u32 2, %s10
        %p159 = scmp.lt.s32.totalorder %s158, 3
        %s160 = scalar_select %p159, %s158, 3
        %s161 = smul.addr %s160, 4
        %s162 = scalar_lea.vmem %s0, %s161
        %s163 = smul.u32 2, %s10
      $region28: #{mpnn_forward.23} parent=23 // pred_fallthru
        _
      // Predicated region
      $region29: #{mpnn_forward.23} parent=23 // pred_check
        %p164 = pneg %p56
      $region30: #{mpnn_forward.23} parent=23 // pred_check_branch
        %166 = sbr.rel (%p164) target = $region32
      $region31: #{mpnn_forward.23} parent=23 // pred_region
        %s167 = smul.u32 2, %s10
        %p168 = scmp.lt.s32.totalorder %s167, 3
        %s169 = scalar_select %p168, %s167, 3
        %s170 = smul.addr %s169, 4
        %s171 = scalar_lea.vmem %s1, %s170
        %s172 = smul.u32 2, %s10
      $region32: #{mpnn_forward.23} parent=23 // pred_fallthru
        _
    $region24: #{mpnn_forward.23} parent=5 // pred_fallthru
      _
    %p173 = scmp.le.s32.totalorder 1, %s10
    %p174 = scmp.lt.s32.totalorder %s10, 3
    %p175 = pnand %p173, %p174
    %p176 = pneg %p175
    // Predicated region
    $region33: #{mpnn_forward.23} parent=5 // pred_check
      _
    $region34: #{mpnn_forward.23} parent=5 // pred_check_branch
      %178 = sbr.rel (%p175) target = $region36
    $region35: #{mpnn_forward.23} parent=5 // pred_region
      %s179 = ssub.s32 %s10, 1
      %s180 = smul.u32 2, %s15
      %p181 = scmp.lt.s32.totalorder %s180, 3
      %s182 = scalar_select %p181, %s180, 3
      %s183 = smul.addr %s182, 4
      %s184 = scalar_lea.vmem %s0, %s183
      %p185 = pneg %p36
      %p186 = pneg %p33
      %s187 = smul.u32 2, %s15
      %p188 = scmp.lt.s32.totalorder %s187, 3
      %s189 = scalar_select %p188, %s187, 3
      %s190 = smul.addr %s189, 4
      %s191 = scalar_lea.vmem %s1, %s190
      %p192 = pneg %p62
      %p193 = pneg %p59
      %p194 = pneg %p83
      %p195 = pneg %p80
      %p196 = pneg %p104
      %p197 = pneg %p101
      %p198 = pneg %p130
      %p199 = pneg %p127
      %s200 = smul.u32 2, %s15
      %p201 = scmp.lt.s32.totalorder %s200, 3
      %s202 = scalar_select %p201, %s200, 3
      %s203 = smul.addr %s202, 8
      %s204 = scalar_lea.vmem %s4, %s203
      %s205 = smul.u32 2, %s15
      %p206 = scmp.lt.s32.totalorder %s205, 3
      %s207 = scalar_select %p206, %s205, 3
      %s208 = smul.addr %s207, 4
      %s209 = scalar_lea.vmem %s0, %s208
      %s210 = smul.u32 2, %s15
      %s211 = smul.u32 2, %s15
      %p212 = scmp.lt.s32.totalorder %s211, 3
      %s213 = scalar_select %p212, %s211, 3
      %s214 = smul.addr %s213, 4
      %s215 = scalar_lea.vmem %s1, %s214
      %s216 = smul.u32 2, %s15
      %s217 = smul.u32 2, %s15
      %p218 = scmp.lt.s32.totalorder %s217, 3
      %s219 = scalar_select %p218, %s217, 3
      %s220 = smul.addr %s219, 8
      %s221 = scalar_lea.vmem %s4, %s220
      %s222 = smul.u32 2, %s15
      %v224 = vld [vmem:[%s215] sm:$0xf]
      %v225 = vld [vmem:[%s215 + $0x4] sm:$0xf]
      %v226 = vld [vmem:[%s2] sm:$0xff]
      %v227 = vld [vmem:[%s2 + $0x8] sm:$0xff]
      %v228 = vld [vmem:[%s2 + $0x10] sm:$0xff]
      %v229 = vld [vmem:[%s2 + $0x18] sm:$0xff]
      %v230 = vld [vmem:[%s2 + $0x20] sm:$0xff]
      %v231 = vld [vmem:[%s2 + $0x28] sm:$0xff]
      %v232 = vld [vmem:[%s2 + $0x30] sm:$0xff]
      %v233 = vld [vmem:[%s2 + $0x38] sm:$0xff]
      %v234 = vld [vmem:[%s2 + $0x40] sm:$0xff]
      %v235 = vld [vmem:[%s2 + $0x48] sm:$0xff]
      %v236 = vld [vmem:[%s2 + $0x50] sm:$0xff]
      %v237 = vld [vmem:[%s2 + $0x58] sm:$0xff]
      %v238 = vld [vmem:[%s2 + $0x60] sm:$0xff]
      %v239 = vld [vmem:[%s2 + $0x68] sm:$0xff]
      %v240 = vld [vmem:[%s2 + $0x70] sm:$0xff]
      %v241 = vld [vmem:[%s2 + $0x78] sm:$0xff]
      %v242 = vld [vmem:[%s2 + $0x80] sm:$0xff]
      %v243 = vld [vmem:[%s2 + $0x88] sm:$0xff]
      %v244 = vld [vmem:[%s2 + $0x90] sm:$0xff]
      %v245 = vld [vmem:[%s2 + $0x98] sm:$0xff]
      %v246 = vld [vmem:[%s2 + $0xa0] sm:$0xff]
      %v247 = vld [vmem:[%s2 + $0xa8] sm:$0xff]
      %v248 = vld [vmem:[%s2 + $0xb0] sm:$0xff]
      %v249 = vld [vmem:[%s2 + $0xb8] sm:$0xff]
      %v250 = vld [vmem:[%s2 + $0xc0] sm:$0xff]
      %v251 = vld [vmem:[%s2 + $0xc8] sm:$0xff]
      %v252 = vld [vmem:[%s2 + $0xd0] sm:$0xff]
      %v253 = vld [vmem:[%s2 + $0xd8] sm:$0xff]
      %v254 = vld [vmem:[%s2 + $0xe0] sm:$0xff]
      %v255 = vld [vmem:[%s2 + $0xe8] sm:$0xff]
      %v256 = vld [vmem:[%s2 + $0xf0] sm:$0xff]
      %v257 = vld [vmem:[%s2 + $0xf8] sm:$0xff]
      %v258 = vld [vmem:[%s2 + $0x100] sm:$0xff]
      %v259 = vld [vmem:[%s2 + $0x108] sm:$0xff]
      %v260 = vld [vmem:[%s2 + $0x110] sm:$0xff]
      %v261 = vld [vmem:[%s2 + $0x118] sm:$0xff]
      %v262 = vld [vmem:[%s2 + $0x120] sm:$0xff]
      %v263 = vld [vmem:[%s2 + $0x128] sm:$0xff]
      %v264 = vld [vmem:[%s2 + $0x130] sm:$0xff]
      %v265 = vld [vmem:[%s2 + $0x138] sm:$0xff]
      %v266 = vld [vmem:[%s2 + $0x140] sm:$0xff]
      %v267 = vld [vmem:[%s2 + $0x148] sm:$0xff]
      %v268 = vld [vmem:[%s2 + $0x150] sm:$0xff]
      %v269 = vld [vmem:[%s2 + $0x158] sm:$0xff]
      %v270 = vld [vmem:[%s2 + $0x160] sm:$0xff]
      %v271 = vld [vmem:[%s2 + $0x168] sm:$0xff]
      %v272 = vld [vmem:[%s2 + $0x170] sm:$0xff]
      %v273 = vld [vmem:[%s2 + $0x178] sm:$0xff]
      %v274 = vld [vmem:[%s2 + $0x180] sm:$0xff]
      %v275 = vld [vmem:[%s2 + $0x188] sm:$0xff]
      %v276 = vld [vmem:[%s2 + $0x190] sm:$0xff]
      %v277 = vld [vmem:[%s2 + $0x198] sm:$0xff]
      %v278 = vld [vmem:[%s2 + $0x1a0] sm:$0xff]
      %v279 = vld [vmem:[%s2 + $0x1a8] sm:$0xff]
      %v280 = vld [vmem:[%s2 + $0x1b0] sm:$0xff]
      %v281 = vld [vmem:[%s2 + $0x1b8] sm:$0xff]
      %v282 = vld [vmem:[%s2 + $0x1c0] sm:$0xff]
      %v283 = vld [vmem:[%s2 + $0x1c8] sm:$0xff]
      %v284 = vld [vmem:[%s2 + $0x1d0] sm:$0xff]
      %v285 = vld [vmem:[%s2 + $0x1d8] sm:$0xff]
      %v286 = vld [vmem:[%s2 + $0x1e0] sm:$0xff]
      %v287 = vld [vmem:[%s2 + $0x1e8] sm:$0xff]
      %v288 = vld [vmem:[%s2 + $0x1f0] sm:$0xff]
      %v289 = vld [vmem:[%s2 + $0x1f8] sm:$0xff]
      %v290 = vld [vmem:[%s2 + $0x200] sm:$0xff]
      %v291 = vld [vmem:[%s2 + $0x208] sm:$0xff]
      %v292 = vld [vmem:[%s2 + $0x210] sm:$0xff]
      %v293 = vld [vmem:[%s2 + $0x218] sm:$0xff]
      %v294 = vld [vmem:[%s2 + $0x220] sm:$0xff]
      %v295 = vld [vmem:[%s2 + $0x228] sm:$0xff]
      %v296 = vld [vmem:[%s2 + $0x230] sm:$0xff]
      %v297 = vld [vmem:[%s2 + $0x238] sm:$0xff]
      %v298 = vld [vmem:[%s2 + $0x240] sm:$0xff]
      %v299 = vld [vmem:[%s2 + $0x248] sm:$0xff]
      %v300 = vld [vmem:[%s2 + $0x250] sm:$0xff]
      %v301 = vld [vmem:[%s2 + $0x258] sm:$0xff]
      %v302 = vld [vmem:[%s2 + $0x260] sm:$0xff]
      %v303 = vld [vmem:[%s2 + $0x268] sm:$0xff]
      %v304 = vld [vmem:[%s2 + $0x270] sm:$0xff]
      %v305 = vld [vmem:[%s2 + $0x278] sm:$0xff]
      %v306 = vld [vmem:[%s2 + $0x280] sm:$0xff]
      %v307 = vld [vmem:[%s2 + $0x288] sm:$0xff]
      %v308 = vld [vmem:[%s2 + $0x290] sm:$0xff]
      %v309 = vld [vmem:[%s2 + $0x298] sm:$0xff]
      %v310 = vld [vmem:[%s2 + $0x2a0] sm:$0xff]
      %v311 = vld [vmem:[%s2 + $0x2a8] sm:$0xff]
      %v312 = vld [vmem:[%s2 + $0x2b0] sm:$0xff]
      %v313 = vld [vmem:[%s2 + $0x2b8] sm:$0xff]
      %v314 = vld [vmem:[%s2 + $0x2c0] sm:$0xff]
      %v315 = vld [vmem:[%s2 + $0x2c8] sm:$0xff]
      %v316 = vld [vmem:[%s2 + $0x2d0] sm:$0xff]
      %v317 = vld [vmem:[%s2 + $0x2d8] sm:$0xff]
      %v318 = vld [vmem:[%s2 + $0x2e0] sm:$0xff]
      %v319 = vld [vmem:[%s2 + $0x2e8] sm:$0xff]
      %v320 = vld [vmem:[%s2 + $0x2f0] sm:$0xff]
      %v321 = vld [vmem:[%s2 + $0x2f8] sm:$0xff]
      %v322 = vld [vmem:[%s2 + $0x300] sm:$0xff]
      %v323 = vld [vmem:[%s2 + $0x308] sm:$0xff]
      %v324 = vld [vmem:[%s2 + $0x310] sm:$0xff]
      %v325 = vld [vmem:[%s2 + $0x318] sm:$0xff]
      %v326 = vld [vmem:[%s2 + $0x320] sm:$0xff]
      %v327 = vld [vmem:[%s2 + $0x328] sm:$0xff]
      %v328 = vld [vmem:[%s2 + $0x330] sm:$0xff]
      %v329 = vld [vmem:[%s2 + $0x338] sm:$0xff]
      %v330 = vld [vmem:[%s2 + $0x340] sm:$0xff]
      %v331 = vld [vmem:[%s2 + $0x348] sm:$0xff]
      %v332 = vld [vmem:[%s2 + $0x350] sm:$0xff]
      %v333 = vld [vmem:[%s2 + $0x358] sm:$0xff]
      %v334 = vld [vmem:[%s2 + $0x360] sm:$0xff]
      %v335 = vld [vmem:[%s2 + $0x368] sm:$0xff]
      %v336 = vld [vmem:[%s2 + $0x370] sm:$0xff]
      %v337 = vld [vmem:[%s2 + $0x378] sm:$0xff]
      %v338 = vld [vmem:[%s2 + $0x380] sm:$0xff]
      %v339 = vld [vmem:[%s2 + $0x388] sm:$0xff]
      %v340 = vld [vmem:[%s2 + $0x390] sm:$0xff]
      %v341 = vld [vmem:[%s2 + $0x398] sm:$0xff]
      %v342 = vld [vmem:[%s2 + $0x3a0] sm:$0xff]
      %v343 = vld [vmem:[%s2 + $0x3a8] sm:$0xff]
      %v344 = vld [vmem:[%s2 + $0x3b0] sm:$0xff]
      %v345 = vld [vmem:[%s2 + $0x3b8] sm:$0xff]
      %v346 = vld [vmem:[%s2 + $0x3c0] sm:$0xff]
      %v347 = vld [vmem:[%s2 + $0x3c8] sm:$0xff]
      %v348 = vld [vmem:[%s2 + $0x3d0] sm:$0xff]
      %v349 = vld [vmem:[%s2 + $0x3d8] sm:$0xff]
      %v350 = vld [vmem:[%s2 + $0x3e0] sm:$0xff]
      %v351 = vld [vmem:[%s2 + $0x3e8] sm:$0xff]
      %v352 = vld [vmem:[%s2 + $0x3f0] sm:$0xff]
      %v353 = vld [vmem:[%s2 + $0x3f8] sm:$0xff]
      %v354 = vld [vmem:[%s2 + $0x400] sm:$0xff]
      %v355 = vld [vmem:[%s2 + $0x408] sm:$0xff]
      %v356 = vld [vmem:[%s2 + $0x410] sm:$0xff]
      %v357 = vld [vmem:[%s2 + $0x418] sm:$0xff]
      %v358 = vld [vmem:[%s2 + $0x420] sm:$0xff]
      %v359 = vld [vmem:[%s2 + $0x428] sm:$0xff]
      %v360 = vld [vmem:[%s2 + $0x430] sm:$0xff]
      %v361 = vld [vmem:[%s2 + $0x438] sm:$0xff]
      %v362 = vld [vmem:[%s2 + $0x440] sm:$0xff]
      %v363 = vld [vmem:[%s2 + $0x448] sm:$0xff]
      %v364 = vld [vmem:[%s2 + $0x450] sm:$0xff]
      %v365 = vld [vmem:[%s2 + $0x458] sm:$0xff]
      %v366 = vld [vmem:[%s2 + $0x460] sm:$0xff]
      %v367 = vld [vmem:[%s2 + $0x468] sm:$0xff]
      %v368 = vld [vmem:[%s2 + $0x470] sm:$0xff]
      %v369 = vld [vmem:[%s2 + $0x478] sm:$0xff]
      %v370 = vld [vmem:[%s2 + $0x480] sm:$0xff]
      %v371 = vld [vmem:[%s2 + $0x488] sm:$0xff]
      %v372 = vld [vmem:[%s2 + $0x490] sm:$0xff]
      %v373 = vld [vmem:[%s2 + $0x498] sm:$0xff]
      %v374 = vld [vmem:[%s2 + $0x4a0] sm:$0xff]
      %v375 = vld [vmem:[%s2 + $0x4a8] sm:$0xff]
      %v376 = vld [vmem:[%s2 + $0x4b0] sm:$0xff]
      %v377 = vld [vmem:[%s2 + $0x4b8] sm:$0xff]
      %v378 = vld [vmem:[%s2 + $0x4c0] sm:$0xff]
      %v379 = vld [vmem:[%s2 + $0x4c8] sm:$0xff]
      %v380 = vld [vmem:[%s2 + $0x4d0] sm:$0xff]
      %v381 = vld [vmem:[%s2 + $0x4d8] sm:$0xff]
      %v382 = vld [vmem:[%s2 + $0x4e0] sm:$0xff]
      %v383 = vld [vmem:[%s2 + $0x4e8] sm:$0xff]
      %v384 = vld [vmem:[%s2 + $0x4f0] sm:$0xff]
      %v385 = vld [vmem:[%s2 + $0x4f8] sm:$0xff]
      %v386 = vld [vmem:[%s2 + $0x500] sm:$0xff]
      %v387 = vld [vmem:[%s2 + $0x508] sm:$0xff]
      %v388 = vld [vmem:[%s2 + $0x510] sm:$0xff]
      %v389 = vld [vmem:[%s2 + $0x518] sm:$0xff]
      %v390 = vld [vmem:[%s2 + $0x520] sm:$0xff]
      %v391 = vld [vmem:[%s2 + $0x528] sm:$0xff]
      %v392 = vld [vmem:[%s2 + $0x530] sm:$0xff]
      %v393 = vld [vmem:[%s2 + $0x538] sm:$0xff]
      %v394 = vld [vmem:[%s2 + $0x540] sm:$0xff]
      %v395 = vld [vmem:[%s2 + $0x548] sm:$0xff]
      %v396 = vld [vmem:[%s2 + $0x550] sm:$0xff]
      %v397 = vld [vmem:[%s2 + $0x558] sm:$0xff]
      %v398 = vld [vmem:[%s2 + $0x560] sm:$0xff]
      %v399 = vld [vmem:[%s2 + $0x568] sm:$0xff]
      %v400 = vld [vmem:[%s2 + $0x570] sm:$0xff]
      %v401 = vld [vmem:[%s2 + $0x578] sm:$0xff]
      %v402 = vld [vmem:[%s2 + $0x580] sm:$0xff]
      %v403 = vld [vmem:[%s2 + $0x588] sm:$0xff]
      %v404 = vld [vmem:[%s2 + $0x590] sm:$0xff]
      %v405 = vld [vmem:[%s2 + $0x598] sm:$0xff]
      %v406 = vld [vmem:[%s2 + $0x5a0] sm:$0xff]
      %v407 = vld [vmem:[%s2 + $0x5a8] sm:$0xff]
      %v408 = vld [vmem:[%s2 + $0x5b0] sm:$0xff]
      %v409 = vld [vmem:[%s2 + $0x5b8] sm:$0xff]
      %v410 = vld [vmem:[%s2 + $0x5c0] sm:$0xff]
      %v411 = vld [vmem:[%s2 + $0x5c8] sm:$0xff]
      %v412 = vld [vmem:[%s2 + $0x5d0] sm:$0xff]
      %v413 = vld [vmem:[%s2 + $0x5d8] sm:$0xff]
      %v414 = vld [vmem:[%s2 + $0x5e0] sm:$0xff]
      %v415 = vld [vmem:[%s2 + $0x5e8] sm:$0xff]
      %v416 = vld [vmem:[%s2 + $0x5f0] sm:$0xff]
      %v417 = vld [vmem:[%s2 + $0x5f8] sm:$0xff]
      %v418 = vld [vmem:[%s2 + $0x600] sm:$0xff]
      %v419 = vld [vmem:[%s2 + $0x608] sm:$0xff]
      %v420 = vld [vmem:[%s2 + $0x610] sm:$0xff]
      %v421 = vld [vmem:[%s2 + $0x618] sm:$0xff]
      %v422 = vld [vmem:[%s2 + $0x620] sm:$0xff]
      %v423 = vld [vmem:[%s2 + $0x628] sm:$0xff]
      %v424 = vld [vmem:[%s2 + $0x630] sm:$0xff]
      %v425 = vld [vmem:[%s2 + $0x638] sm:$0xff]
      %v426 = vld [vmem:[%s2 + $0x640] sm:$0xff]
      %v427 = vld [vmem:[%s2 + $0x648] sm:$0xff]
      %v428 = vld [vmem:[%s2 + $0x650] sm:$0xff]
      %v429 = vld [vmem:[%s2 + $0x658] sm:$0xff]
      %v430 = vld [vmem:[%s2 + $0x660] sm:$0xff]
      %v431 = vld [vmem:[%s2 + $0x668] sm:$0xff]
      %v432 = vld [vmem:[%s2 + $0x670] sm:$0xff]
      %v433 = vld [vmem:[%s2 + $0x678] sm:$0xff]
      %v434 = vld [vmem:[%s2 + $0x680] sm:$0xff]
      %v435 = vld [vmem:[%s2 + $0x688] sm:$0xff]
      %v436 = vld [vmem:[%s2 + $0x690] sm:$0xff]
      %v437 = vld [vmem:[%s2 + $0x698] sm:$0xff]
      %v438 = vld [vmem:[%s2 + $0x6a0] sm:$0xff]
      %v439 = vld [vmem:[%s2 + $0x6a8] sm:$0xff]
      %v440 = vld [vmem:[%s2 + $0x6b0] sm:$0xff]
      %v441 = vld [vmem:[%s2 + $0x6b8] sm:$0xff]
      %v442 = vld [vmem:[%s2 + $0x6c0] sm:$0xff]
      %v443 = vld [vmem:[%s2 + $0x6c8] sm:$0xff]
      %v444 = vld [vmem:[%s2 + $0x6d0] sm:$0xff]
      %v445 = vld [vmem:[%s2 + $0x6d8] sm:$0xff]
      %v446 = vld [vmem:[%s2 + $0x6e0] sm:$0xff]
      %v447 = vld [vmem:[%s2 + $0x6e8] sm:$0xff]
      %v448 = vld [vmem:[%s2 + $0x6f0] sm:$0xff]
      %v449 = vld [vmem:[%s2 + $0x6f8] sm:$0xff]
      %v450 = vld [vmem:[%s2 + $0x700] sm:$0xff]
      %v451 = vld [vmem:[%s2 + $0x708] sm:$0xff]
      %v452 = vld [vmem:[%s2 + $0x710] sm:$0xff]
      %v453 = vld [vmem:[%s2 + $0x718] sm:$0xff]
      %v454 = vld [vmem:[%s2 + $0x720] sm:$0xff]
      %v455 = vld [vmem:[%s2 + $0x728] sm:$0xff]
      %v456 = vld [vmem:[%s2 + $0x730] sm:$0xff]
      %v457 = vld [vmem:[%s2 + $0x738] sm:$0xff]
      %v458 = vld [vmem:[%s2 + $0x740] sm:$0xff]
      %v459 = vld [vmem:[%s2 + $0x748] sm:$0xff]
      %v460 = vld [vmem:[%s2 + $0x750] sm:$0xff]
      %v461 = vld [vmem:[%s2 + $0x758] sm:$0xff]
      %v462 = vld [vmem:[%s2 + $0x760] sm:$0xff]
      %v463 = vld [vmem:[%s2 + $0x768] sm:$0xff]
      %v464 = vld [vmem:[%s2 + $0x770] sm:$0xff]
      %v465 = vld [vmem:[%s2 + $0x778] sm:$0xff]
      %v466 = vld [vmem:[%s2 + $0x780] sm:$0xff]
      %v467 = vld [vmem:[%s2 + $0x788] sm:$0xff]
      %v468 = vld [vmem:[%s2 + $0x790] sm:$0xff]
      %v469 = vld [vmem:[%s2 + $0x798] sm:$0xff]
      %v470 = vld [vmem:[%s2 + $0x7a0] sm:$0xff]
      %v471 = vld [vmem:[%s2 + $0x7a8] sm:$0xff]
      %v472 = vld [vmem:[%s2 + $0x7b0] sm:$0xff]
      %v473 = vld [vmem:[%s2 + $0x7b8] sm:$0xff]
      %v474 = vld [vmem:[%s2 + $0x7c0] sm:$0xff]
      %v475 = vld [vmem:[%s2 + $0x7c8] sm:$0xff]
      %v476 = vld [vmem:[%s2 + $0x7d0] sm:$0xff]
      %v477 = vld [vmem:[%s2 + $0x7d8] sm:$0xff]
      %v478 = vld [vmem:[%s2 + $0x7e0] sm:$0xff]
      %v479 = vld [vmem:[%s2 + $0x7e8] sm:$0xff]
      %v480 = vld [vmem:[%s2 + $0x7f0] sm:$0xff]
      %v481 = vld [vmem:[%s2 + $0x7f8] sm:$0xff]
      %v484 = vunpack.c.l.b16 %v224
      %v485 = vunpack.c.l.b16 %v225
      %v486 = vpack.c.b16 %v485, %v484
      %v744 = vunpack.c.l.b16 %v226
      %v745 = vunpack.c.h.b16 %v226
      %v746 = vunpack.c.l.b16 %v227
      %v747 = vunpack.c.h.b16 %v227
      %v748 = vunpack.c.l.b16 %v228
      %v749 = vunpack.c.h.b16 %v228
      %v750 = vunpack.c.l.b16 %v229
      %v751 = vunpack.c.h.b16 %v229
      %v752 = vunpack.c.l.b16 %v230
      %v753 = vunpack.c.h.b16 %v230
      %v754 = vunpack.c.l.b16 %v231
      %v755 = vunpack.c.h.b16 %v231
      %v756 = vunpack.c.l.b16 %v232
      %v757 = vunpack.c.h.b16 %v232
      %v758 = vunpack.c.l.b16 %v233
      %v759 = vunpack.c.h.b16 %v233
      %v760 = vunpack.c.l.b16 %v234
      %v761 = vunpack.c.h.b16 %v234
      %v762 = vunpack.c.l.b16 %v235
      %v763 = vunpack.c.h.b16 %v235
      %v764 = vunpack.c.l.b16 %v236
      %v765 = vunpack.c.h.b16 %v236
      %v766 = vunpack.c.l.b16 %v237
      %v767 = vunpack.c.h.b16 %v237
      %v768 = vunpack.c.l.b16 %v238
      %v769 = vunpack.c.h.b16 %v238
      %v770 = vunpack.c.l.b16 %v239
      %v771 = vunpack.c.h.b16 %v239
      %v772 = vunpack.c.l.b16 %v240
      %v773 = vunpack.c.h.b16 %v240
      %v774 = vunpack.c.l.b16 %v241
      %v775 = vunpack.c.h.b16 %v241
      %v776 = vunpack.c.l.b16 %v242
      %v777 = vunpack.c.h.b16 %v242
      %v778 = vunpack.c.l.b16 %v243
      %v779 = vunpack.c.h.b16 %v243
      %v780 = vunpack.c.l.b16 %v244
      %v781 = vunpack.c.h.b16 %v244
      %v782 = vunpack.c.l.b16 %v245
      %v783 = vunpack.c.h.b16 %v245
      %v784 = vunpack.c.l.b16 %v246
      %v785 = vunpack.c.h.b16 %v246
      %v786 = vunpack.c.l.b16 %v247
      %v787 = vunpack.c.h.b16 %v247
      %v788 = vunpack.c.l.b16 %v248
      %v789 = vunpack.c.h.b16 %v248
      %v790 = vunpack.c.l.b16 %v249
      %v791 = vunpack.c.h.b16 %v249
      %v792 = vunpack.c.l.b16 %v250
      %v793 = vunpack.c.h.b16 %v250
      %v794 = vunpack.c.l.b16 %v251
      %v795 = vunpack.c.h.b16 %v251
      %v796 = vunpack.c.l.b16 %v252
      %v797 = vunpack.c.h.b16 %v252
      %v798 = vunpack.c.l.b16 %v253
      %v799 = vunpack.c.h.b16 %v253
      %v800 = vunpack.c.l.b16 %v254
      %v801 = vunpack.c.h.b16 %v254
      %v802 = vunpack.c.l.b16 %v255
      %v803 = vunpack.c.h.b16 %v255
      %v804 = vunpack.c.l.b16 %v256
      %v805 = vunpack.c.h.b16 %v256
      %v806 = vunpack.c.l.b16 %v257
      %v807 = vunpack.c.h.b16 %v257
      %v808 = vunpack.c.l.b16 %v258
      %v809 = vunpack.c.h.b16 %v258
      %v810 = vunpack.c.l.b16 %v259
      %v811 = vunpack.c.h.b16 %v259
      %v812 = vunpack.c.l.b16 %v260
      %v813 = vunpack.c.h.b16 %v260
      %v814 = vunpack.c.l.b16 %v261
      %v815 = vunpack.c.h.b16 %v261
      %v816 = vunpack.c.l.b16 %v262
      %v817 = vunpack.c.h.b16 %v262
      %v818 = vunpack.c.l.b16 %v263
      %v819 = vunpack.c.h.b16 %v263
      %v820 = vunpack.c.l.b16 %v264
      %v821 = vunpack.c.h.b16 %v264
      %v822 = vunpack.c.l.b16 %v265
      %v823 = vunpack.c.h.b16 %v265
      %v824 = vunpack.c.l.b16 %v266
      %v825 = vunpack.c.h.b16 %v266
      %v826 = vunpack.c.l.b16 %v267
      %v827 = vunpack.c.h.b16 %v267
      %v828 = vunpack.c.l.b16 %v268
      %v829 = vunpack.c.h.b16 %v268
      %v830 = vunpack.c.l.b16 %v269
      %v831 = vunpack.c.h.b16 %v269
      %v832 = vunpack.c.l.b16 %v270
      %v833 = vunpack.c.h.b16 %v270
      %v834 = vunpack.c.l.b16 %v271
      %v835 = vunpack.c.h.b16 %v271
      %v836 = vunpack.c.l.b16 %v272
      %v837 = vunpack.c.h.b16 %v272
      %v838 = vunpack.c.l.b16 %v273
      %v839 = vunpack.c.h.b16 %v273
      %v840 = vunpack.c.l.b16 %v274
      %v841 = vunpack.c.h.b16 %v274
      %v842 = vunpack.c.l.b16 %v275
      %v843 = vunpack.c.h.b16 %v275
      %v844 = vunpack.c.l.b16 %v276
      %v845 = vunpack.c.h.b16 %v276
      %v846 = vunpack.c.l.b16 %v277
      %v847 = vunpack.c.h.b16 %v277
      %v848 = vunpack.c.l.b16 %v278
      %v849 = vunpack.c.h.b16 %v278
      %v850 = vunpack.c.l.b16 %v279
      %v851 = vunpack.c.h.b16 %v279
      %v852 = vunpack.c.l.b16 %v280
      %v853 = vunpack.c.h.b16 %v280
      %v854 = vunpack.c.l.b16 %v281
      %v855 = vunpack.c.h.b16 %v281
      %v856 = vunpack.c.l.b16 %v282
      %v857 = vunpack.c.h.b16 %v282
      %v858 = vunpack.c.l.b16 %v283
      %v859 = vunpack.c.h.b16 %v283
      %v860 = vunpack.c.l.b16 %v284
      %v861 = vunpack.c.h.b16 %v284
      %v862 = vunpack.c.l.b16 %v285
      %v863 = vunpack.c.h.b16 %v285
      %v864 = vunpack.c.l.b16 %v286
      %v865 = vunpack.c.h.b16 %v286
      %v866 = vunpack.c.l.b16 %v287
      %v867 = vunpack.c.h.b16 %v287
      %v868 = vunpack.c.l.b16 %v288
      %v869 = vunpack.c.h.b16 %v288
      %v870 = vunpack.c.l.b16 %v289
      %v871 = vunpack.c.h.b16 %v289
      %v872 = vunpack.c.l.b16 %v290
      %v873 = vunpack.c.h.b16 %v290
      %v874 = vunpack.c.l.b16 %v291
      %v875 = vunpack.c.h.b16 %v291
      %v876 = vunpack.c.l.b16 %v292
      %v877 = vunpack.c.h.b16 %v292
      %v878 = vunpack.c.l.b16 %v293
      %v879 = vunpack.c.h.b16 %v293
      %v880 = vunpack.c.l.b16 %v294
      %v881 = vunpack.c.h.b16 %v294
      %v882 = vunpack.c.l.b16 %v295
      %v883 = vunpack.c.h.b16 %v295
      %v884 = vunpack.c.l.b16 %v296
      %v885 = vunpack.c.h.b16 %v296
      %v886 = vunpack.c.l.b16 %v297
      %v887 = vunpack.c.h.b16 %v297
      %v888 = vunpack.c.l.b16 %v298
      %v889 = vunpack.c.h.b16 %v298
      %v890 = vunpack.c.l.b16 %v299
      %v891 = vunpack.c.h.b16 %v299
      %v892 = vunpack.c.l.b16 %v300
      %v893 = vunpack.c.h.b16 %v300
      %v894 = vunpack.c.l.b16 %v301
      %v895 = vunpack.c.h.b16 %v301
      %v896 = vunpack.c.l.b16 %v302
      %v897 = vunpack.c.h.b16 %v302
      %v898 = vunpack.c.l.b16 %v303
      %v899 = vunpack.c.h.b16 %v303
      %v900 = vunpack.c.l.b16 %v304
      %v901 = vunpack.c.h.b16 %v304
      %v902 = vunpack.c.l.b16 %v305
      %v903 = vunpack.c.h.b16 %v305
      %v904 = vunpack.c.l.b16 %v306
      %v905 = vunpack.c.h.b16 %v306
      %v906 = vunpack.c.l.b16 %v307
      %v907 = vunpack.c.h.b16 %v307
      %v908 = vunpack.c.l.b16 %v308
      %v909 = vunpack.c.h.b16 %v308
      %v910 = vunpack.c.l.b16 %v309
      %v911 = vunpack.c.h.b16 %v309
      %v912 = vunpack.c.l.b16 %v310
      %v913 = vunpack.c.h.b16 %v310
      %v914 = vunpack.c.l.b16 %v311
      %v915 = vunpack.c.h.b16 %v311
      %v916 = vunpack.c.l.b16 %v312
      %v917 = vunpack.c.h.b16 %v312
      %v918 = vunpack.c.l.b16 %v313
      %v919 = vunpack.c.h.b16 %v313
      %v920 = vunpack.c.l.b16 %v314
      %v921 = vunpack.c.h.b16 %v314
      %v922 = vunpack.c.l.b16 %v315
      %v923 = vunpack.c.h.b16 %v315
      %v924 = vunpack.c.l.b16 %v316
      %v925 = vunpack.c.h.b16 %v316
      %v926 = vunpack.c.l.b16 %v317
      %v927 = vunpack.c.h.b16 %v317
      %v928 = vunpack.c.l.b16 %v318
      %v929 = vunpack.c.h.b16 %v318
      %v930 = vunpack.c.l.b16 %v319
      %v931 = vunpack.c.h.b16 %v319
      %v932 = vunpack.c.l.b16 %v320
      %v933 = vunpack.c.h.b16 %v320
      %v934 = vunpack.c.l.b16 %v321
      %v935 = vunpack.c.h.b16 %v321
      %v936 = vunpack.c.l.b16 %v322
      %v937 = vunpack.c.h.b16 %v322
      %v938 = vunpack.c.l.b16 %v323
      %v939 = vunpack.c.h.b16 %v323
      %v940 = vunpack.c.l.b16 %v324
      %v941 = vunpack.c.h.b16 %v324
      %v942 = vunpack.c.l.b16 %v325
      %v943 = vunpack.c.h.b16 %v325
      %v944 = vunpack.c.l.b16 %v326
      %v945 = vunpack.c.h.b16 %v326
      %v946 = vunpack.c.l.b16 %v327
      %v947 = vunpack.c.h.b16 %v327
      %v948 = vunpack.c.l.b16 %v328
      %v949 = vunpack.c.h.b16 %v328
      %v950 = vunpack.c.l.b16 %v329
      %v951 = vunpack.c.h.b16 %v329
      %v952 = vunpack.c.l.b16 %v330
      %v953 = vunpack.c.h.b16 %v330
      %v954 = vunpack.c.l.b16 %v331
      %v955 = vunpack.c.h.b16 %v331
      %v956 = vunpack.c.l.b16 %v332
      %v957 = vunpack.c.h.b16 %v332
      %v958 = vunpack.c.l.b16 %v333
      %v959 = vunpack.c.h.b16 %v333
      %v960 = vunpack.c.l.b16 %v334
      %v961 = vunpack.c.h.b16 %v334
      %v962 = vunpack.c.l.b16 %v335
      %v963 = vunpack.c.h.b16 %v335
      %v964 = vunpack.c.l.b16 %v336
      %v965 = vunpack.c.h.b16 %v336
      %v966 = vunpack.c.l.b16 %v337
      %v967 = vunpack.c.h.b16 %v337
      %v968 = vunpack.c.l.b16 %v338
      %v969 = vunpack.c.h.b16 %v338
      %v970 = vunpack.c.l.b16 %v339
      %v971 = vunpack.c.h.b16 %v339
      %v972 = vunpack.c.l.b16 %v340
      %v973 = vunpack.c.h.b16 %v340
      %v974 = vunpack.c.l.b16 %v341
      %v975 = vunpack.c.h.b16 %v341
      %v976 = vunpack.c.l.b16 %v342
      %v977 = vunpack.c.h.b16 %v342
      %v978 = vunpack.c.l.b16 %v343
      %v979 = vunpack.c.h.b16 %v343
      %v980 = vunpack.c.l.b16 %v344
      %v981 = vunpack.c.h.b16 %v344
      %v982 = vunpack.c.l.b16 %v345
      %v983 = vunpack.c.h.b16 %v345
      %v984 = vunpack.c.l.b16 %v346
      %v985 = vunpack.c.h.b16 %v346
      %v986 = vunpack.c.l.b16 %v347
      %v987 = vunpack.c.h.b16 %v347
      %v988 = vunpack.c.l.b16 %v348
      %v989 = vunpack.c.h.b16 %v348
      %v990 = vunpack.c.l.b16 %v349
      %v991 = vunpack.c.h.b16 %v349
      %v992 = vunpack.c.l.b16 %v350
      %v993 = vunpack.c.h.b16 %v350
      %v994 = vunpack.c.l.b16 %v351
      %v995 = vunpack.c.h.b16 %v351
      %v996 = vunpack.c.l.b16 %v352
      %v997 = vunpack.c.h.b16 %v352
      %v998 = vunpack.c.l.b16 %v353
      %v999 = vunpack.c.h.b16 %v353
      %v1000 = vunpack.c.l.b16 %v354
      %v1001 = vunpack.c.h.b16 %v354
      %v1002 = vunpack.c.l.b16 %v355
      %v1003 = vunpack.c.h.b16 %v355
      %v1004 = vunpack.c.l.b16 %v356
      %v1005 = vunpack.c.h.b16 %v356
      %v1006 = vunpack.c.l.b16 %v357
      %v1007 = vunpack.c.h.b16 %v357
      %v1008 = vunpack.c.l.b16 %v358
      %v1009 = vunpack.c.h.b16 %v358
      %v1010 = vunpack.c.l.b16 %v359
      %v1011 = vunpack.c.h.b16 %v359
      %v1012 = vunpack.c.l.b16 %v360
      %v1013 = vunpack.c.h.b16 %v360
      %v1014 = vunpack.c.l.b16 %v361
      %v1015 = vunpack.c.h.b16 %v361
      %v1016 = vunpack.c.l.b16 %v362
      %v1017 = vunpack.c.h.b16 %v362
      %v1018 = vunpack.c.l.b16 %v363
      %v1019 = vunpack.c.h.b16 %v363
      %v1020 = vunpack.c.l.b16 %v364
      %v1021 = vunpack.c.h.b16 %v364
      %v1022 = vunpack.c.l.b16 %v365
      %v1023 = vunpack.c.h.b16 %v365
      %v1024 = vunpack.c.l.b16 %v366
      %v1025 = vunpack.c.h.b16 %v366
      %v1026 = vunpack.c.l.b16 %v367
      %v1027 = vunpack.c.h.b16 %v367
      %v1028 = vunpack.c.l.b16 %v368
      %v1029 = vunpack.c.h.b16 %v368
      %v1030 = vunpack.c.l.b16 %v369
      %v1031 = vunpack.c.h.b16 %v369
      %v1032 = vunpack.c.l.b16 %v370
      %v1033 = vunpack.c.h.b16 %v370
      %v1034 = vunpack.c.l.b16 %v371
      %v1035 = vunpack.c.h.b16 %v371
      %v1036 = vunpack.c.l.b16 %v372
      %v1037 = vunpack.c.h.b16 %v372
      %v1038 = vunpack.c.l.b16 %v373
      %v1039 = vunpack.c.h.b16 %v373
      %v1040 = vunpack.c.l.b16 %v374
      %v1041 = vunpack.c.h.b16 %v374
      %v1042 = vunpack.c.l.b16 %v375
      %v1043 = vunpack.c.h.b16 %v375
      %v1044 = vunpack.c.l.b16 %v376
      %v1045 = vunpack.c.h.b16 %v376
      %v1046 = vunpack.c.l.b16 %v377
      %v1047 = vunpack.c.h.b16 %v377
      %v1048 = vunpack.c.l.b16 %v378
      %v1049 = vunpack.c.h.b16 %v378
      %v1050 = vunpack.c.l.b16 %v379
      %v1051 = vunpack.c.h.b16 %v379
      %v1052 = vunpack.c.l.b16 %v380
      %v1053 = vunpack.c.h.b16 %v380
      %v1054 = vunpack.c.l.b16 %v381
      %v1055 = vunpack.c.h.b16 %v381
      %v1056 = vunpack.c.l.b16 %v382
      %v1057 = vunpack.c.h.b16 %v382
      %v1058 = vunpack.c.l.b16 %v383
      %v1059 = vunpack.c.h.b16 %v383
      %v1060 = vunpack.c.l.b16 %v384
      %v1061 = vunpack.c.h.b16 %v384
      %v1062 = vunpack.c.l.b16 %v385
      %v1063 = vunpack.c.h.b16 %v385
      %v1064 = vunpack.c.l.b16 %v386
      %v1065 = vunpack.c.h.b16 %v386
      %v1066 = vunpack.c.l.b16 %v387
      %v1067 = vunpack.c.h.b16 %v387
      %v1068 = vunpack.c.l.b16 %v388
      %v1069 = vunpack.c.h.b16 %v388
      %v1070 = vunpack.c.l.b16 %v389
      %v1071 = vunpack.c.h.b16 %v389
      %v1072 = vunpack.c.l.b16 %v390
      %v1073 = vunpack.c.h.b16 %v390
      %v1074 = vunpack.c.l.b16 %v391
      %v1075 = vunpack.c.h.b16 %v391
      %v1076 = vunpack.c.l.b16 %v392
      %v1077 = vunpack.c.h.b16 %v392
      %v1078 = vunpack.c.l.b16 %v393
      %v1079 = vunpack.c.h.b16 %v393
      %v1080 = vunpack.c.l.b16 %v394
      %v1081 = vunpack.c.h.b16 %v394
      %v1082 = vunpack.c.l.b16 %v395
      %v1083 = vunpack.c.h.b16 %v395
      %v1084 = vunpack.c.l.b16 %v396
      %v1085 = vunpack.c.h.b16 %v396
      %v1086 = vunpack.c.l.b16 %v397
      %v1087 = vunpack.c.h.b16 %v397
      %v1088 = vunpack.c.l.b16 %v398
      %v1089 = vunpack.c.h.b16 %v398
      %v1090 = vunpack.c.l.b16 %v399
      %v1091 = vunpack.c.h.b16 %v399
      %v1092 = vunpack.c.l.b16 %v400
      %v1093 = vunpack.c.h.b16 %v400
      %v1094 = vunpack.c.l.b16 %v401
      %v1095 = vunpack.c.h.b16 %v401
      %v1096 = vunpack.c.l.b16 %v402
      %v1097 = vunpack.c.h.b16 %v402
      %v1098 = vunpack.c.l.b16 %v403
      %v1099 = vunpack.c.h.b16 %v403
      %v1100 = vunpack.c.l.b16 %v404
      %v1101 = vunpack.c.h.b16 %v404
      %v1102 = vunpack.c.l.b16 %v405
      %v1103 = vunpack.c.h.b16 %v405
      %v1104 = vunpack.c.l.b16 %v406
      %v1105 = vunpack.c.h.b16 %v406
      %v1106 = vunpack.c.l.b16 %v407
      %v1107 = vunpack.c.h.b16 %v407
      %v1108 = vunpack.c.l.b16 %v408
      %v1109 = vunpack.c.h.b16 %v408
      %v1110 = vunpack.c.l.b16 %v409
      %v1111 = vunpack.c.h.b16 %v409
      %v1112 = vunpack.c.l.b16 %v410
      %v1113 = vunpack.c.h.b16 %v410
      %v1114 = vunpack.c.l.b16 %v411
      %v1115 = vunpack.c.h.b16 %v411
      %v1116 = vunpack.c.l.b16 %v412
      %v1117 = vunpack.c.h.b16 %v412
      %v1118 = vunpack.c.l.b16 %v413
      %v1119 = vunpack.c.h.b16 %v413
      %v1120 = vunpack.c.l.b16 %v414
      %v1121 = vunpack.c.h.b16 %v414
      %v1122 = vunpack.c.l.b16 %v415
      %v1123 = vunpack.c.h.b16 %v415
      %v1124 = vunpack.c.l.b16 %v416
      %v1125 = vunpack.c.h.b16 %v416
      %v1126 = vunpack.c.l.b16 %v417
      %v1127 = vunpack.c.h.b16 %v417
      %v1128 = vunpack.c.l.b16 %v418
      %v1129 = vunpack.c.h.b16 %v418
      %v1130 = vunpack.c.l.b16 %v419
      %v1131 = vunpack.c.h.b16 %v419
      %v1132 = vunpack.c.l.b16 %v420
      %v1133 = vunpack.c.h.b16 %v420
      %v1134 = vunpack.c.l.b16 %v421
      %v1135 = vunpack.c.h.b16 %v421
      %v1136 = vunpack.c.l.b16 %v422
      %v1137 = vunpack.c.h.b16 %v422
      %v1138 = vunpack.c.l.b16 %v423
      %v1139 = vunpack.c.h.b16 %v423
      %v1140 = vunpack.c.l.b16 %v424
      %v1141 = vunpack.c.h.b16 %v424
      %v1142 = vunpack.c.l.b16 %v425
      %v1143 = vunpack.c.h.b16 %v425
      %v1144 = vunpack.c.l.b16 %v426
      %v1145 = vunpack.c.h.b16 %v426
      %v1146 = vunpack.c.l.b16 %v427
      %v1147 = vunpack.c.h.b16 %v427
      %v1148 = vunpack.c.l.b16 %v428
      %v1149 = vunpack.c.h.b16 %v428
      %v1150 = vunpack.c.l.b16 %v429
      %v1151 = vunpack.c.h.b16 %v429
      %v1152 = vunpack.c.l.b16 %v430
      %v1153 = vunpack.c.h.b16 %v430
      %v1154 = vunpack.c.l.b16 %v431
      %v1155 = vunpack.c.h.b16 %v431
      %v1156 = vunpack.c.l.b16 %v432
      %v1157 = vunpack.c.h.b16 %v432
      %v1158 = vunpack.c.l.b16 %v433
      %v1159 = vunpack.c.h.b16 %v433
      %v1160 = vunpack.c.l.b16 %v434
      %v1161 = vunpack.c.h.b16 %v434
      %v1162 = vunpack.c.l.b16 %v435
      %v1163 = vunpack.c.h.b16 %v435
      %v1164 = vunpack.c.l.b16 %v436
      %v1165 = vunpack.c.h.b16 %v436
      %v1166 = vunpack.c.l.b16 %v437
      %v1167 = vunpack.c.h.b16 %v437
      %v1168 = vunpack.c.l.b16 %v438
      %v1169 = vunpack.c.h.b16 %v438
      %v1170 = vunpack.c.l.b16 %v439
      %v1171 = vunpack.c.h.b16 %v439
      %v1172 = vunpack.c.l.b16 %v440
      %v1173 = vunpack.c.h.b16 %v440
      %v1174 = vunpack.c.l.b16 %v441
      %v1175 = vunpack.c.h.b16 %v441
      %v1176 = vunpack.c.l.b16 %v442
      %v1177 = vunpack.c.h.b16 %v442
      %v1178 = vunpack.c.l.b16 %v443
      %v1179 = vunpack.c.h.b16 %v443
      %v1180 = vunpack.c.l.b16 %v444
      %v1181 = vunpack.c.h.b16 %v444
      %v1182 = vunpack.c.l.b16 %v445
      %v1183 = vunpack.c.h.b16 %v445
      %v1184 = vunpack.c.l.b16 %v446
      %v1185 = vunpack.c.h.b16 %v446
      %v1186 = vunpack.c.l.b16 %v447
      %v1187 = vunpack.c.h.b16 %v447
      %v1188 = vunpack.c.l.b16 %v448
      %v1189 = vunpack.c.h.b16 %v448
      %v1190 = vunpack.c.l.b16 %v449
      %v1191 = vunpack.c.h.b16 %v449
      %v1192 = vunpack.c.l.b16 %v450
      %v1193 = vunpack.c.h.b16 %v450
      %v1194 = vunpack.c.l.b16 %v451
      %v1195 = vunpack.c.h.b16 %v451
      %v1196 = vunpack.c.l.b16 %v452
      %v1197 = vunpack.c.h.b16 %v452
      %v1198 = vunpack.c.l.b16 %v453
      %v1199 = vunpack.c.h.b16 %v453
      %v1200 = vunpack.c.l.b16 %v454
      %v1201 = vunpack.c.h.b16 %v454
      %v1202 = vunpack.c.l.b16 %v455
      %v1203 = vunpack.c.h.b16 %v455
      %v1204 = vunpack.c.l.b16 %v456
      %v1205 = vunpack.c.h.b16 %v456
      %v1206 = vunpack.c.l.b16 %v457
      %v1207 = vunpack.c.h.b16 %v457
      %v1208 = vunpack.c.l.b16 %v458
      %v1209 = vunpack.c.h.b16 %v458
      %v1210 = vunpack.c.l.b16 %v459
      %v1211 = vunpack.c.h.b16 %v459
      %v1212 = vunpack.c.l.b16 %v460
      %v1213 = vunpack.c.h.b16 %v460
      %v1214 = vunpack.c.l.b16 %v461
      %v1215 = vunpack.c.h.b16 %v461
      %v1216 = vunpack.c.l.b16 %v462
      %v1217 = vunpack.c.h.b16 %v462
      %v1218 = vunpack.c.l.b16 %v463
      %v1219 = vunpack.c.h.b16 %v463
      %v1220 = vunpack.c.l.b16 %v464
      %v1221 = vunpack.c.h.b16 %v464
      %v1222 = vunpack.c.l.b16 %v465
      %v1223 = vunpack.c.h.b16 %v465
      %v1224 = vunpack.c.l.b16 %v466
      %v1225 = vunpack.c.h.b16 %v466
      %v1226 = vunpack.c.l.b16 %v467
      %v1227 = vunpack.c.h.b16 %v467
      %v1228 = vunpack.c.l.b16 %v468
      %v1229 = vunpack.c.h.b16 %v468
      %v1230 = vunpack.c.l.b16 %v469
      %v1231 = vunpack.c.h.b16 %v469
      %v1232 = vunpack.c.l.b16 %v470
      %v1233 = vunpack.c.h.b16 %v470
      %v1234 = vunpack.c.l.b16 %v471
      %v1235 = vunpack.c.h.b16 %v471
      %v1236 = vunpack.c.l.b16 %v472
      %v1237 = vunpack.c.h.b16 %v472
      %v1238 = vunpack.c.l.b16 %v473
      %v1239 = vunpack.c.h.b16 %v473
      %v1240 = vunpack.c.l.b16 %v474
      %v1241 = vunpack.c.h.b16 %v474
      %v1242 = vunpack.c.l.b16 %v475
      %v1243 = vunpack.c.h.b16 %v475
      %v1244 = vunpack.c.l.b16 %v476
      %v1245 = vunpack.c.h.b16 %v476
      %v1246 = vunpack.c.l.b16 %v477
      %v1247 = vunpack.c.h.b16 %v477
      %v1248 = vunpack.c.l.b16 %v478
      %v1249 = vunpack.c.h.b16 %v478
      %v1250 = vunpack.c.l.b16 %v479
      %v1251 = vunpack.c.h.b16 %v479
      %v1252 = vunpack.c.l.b16 %v480
      %v1253 = vunpack.c.h.b16 %v480
      %v1254 = vunpack.c.l.b16 %v481
      %v1255 = vunpack.c.h.b16 %v481
      %v1256 = vpack.c.b16 %v776, %v744
      %v1257 = vpack.c.b16 %v777, %v745
      %v1258 = vpack.c.b16 %v778, %v746
      %v1259 = vpack.c.b16 %v779, %v747
      %v1260 = vpack.c.b16 %v780, %v748
      %v1261 = vpack.c.b16 %v781, %v749
      %v1262 = vpack.c.b16 %v782, %v750
      %v1263 = vpack.c.b16 %v783, %v751
      %v1264 = vpack.c.b16 %v784, %v752
      %v1265 = vpack.c.b16 %v785, %v753
      %v1266 = vpack.c.b16 %v786, %v754
      %v1267 = vpack.c.b16 %v787, %v755
      %v1268 = vpack.c.b16 %v788, %v756
      %v1269 = vpack.c.b16 %v789, %v757
      %v1270 = vpack.c.b16 %v790, %v758
      %v1271 = vpack.c.b16 %v791, %v759
      %v1272 = vpack.c.b16 %v792, %v760
      %v1273 = vpack.c.b16 %v793, %v761
      %v1274 = vpack.c.b16 %v794, %v762
      %v1275 = vpack.c.b16 %v795, %v763
      %v1276 = vpack.c.b16 %v796, %v764
      %v1277 = vpack.c.b16 %v797, %v765
      %v1278 = vpack.c.b16 %v798, %v766
      %v1279 = vpack.c.b16 %v799, %v767
      %v1280 = vpack.c.b16 %v800, %v768
      %v1281 = vpack.c.b16 %v801, %v769
      %v1282 = vpack.c.b16 %v802, %v770
      %v1283 = vpack.c.b16 %v803, %v771
      %v1284 = vpack.c.b16 %v804, %v772
      %v1285 = vpack.c.b16 %v805, %v773
      %v1286 = vpack.c.b16 %v806, %v774
      %v1287 = vpack.c.b16 %v807, %v775
      %v1288 = vpack.c.b16 %v840, %v808
      %v1289 = vpack.c.b16 %v841, %v809
      %v1290 = vpack.c.b16 %v842, %v810
      %v1291 = vpack.c.b16 %v843, %v811
      %v1292 = vpack.c.b16 %v844, %v812
      %v1293 = vpack.c.b16 %v845, %v813
      %v1294 = vpack.c.b16 %v846, %v814
      %v1295 = vpack.c.b16 %v847, %v815
      %v1296 = vpack.c.b16 %v848, %v816
      %v1297 = vpack.c.b16 %v849, %v817
      %v1298 = vpack.c.b16 %v850, %v818
      %v1299 = vpack.c.b16 %v851, %v819
      %v1300 = vpack.c.b16 %v852, %v820
      %v1301 = vpack.c.b16 %v853, %v821
      %v1302 = vpack.c.b16 %v854, %v822
      %v1303 = vpack.c.b16 %v855, %v823
      %v1304 = vpack.c.b16 %v856, %v824
      %v1305 = vpack.c.b16 %v857, %v825
      %v1306 = vpack.c.b16 %v858, %v826
      %v1307 = vpack.c.b16 %v859, %v827
      %v1308 = vpack.c.b16 %v860, %v828
      %v1309 = vpack.c.b16 %v861, %v829
      %v1310 = vpack.c.b16 %v862, %v830
      %v1311 = vpack.c.b16 %v863, %v831
      %v1312 = vpack.c.b16 %v864, %v832
      %v1313 = vpack.c.b16 %v865, %v833
      %v1314 = vpack.c.b16 %v866, %v834
      %v1315 = vpack.c.b16 %v867, %v835
      %v1316 = vpack.c.b16 %v868, %v836
      %v1317 = vpack.c.b16 %v869, %v837
      %v1318 = vpack.c.b16 %v870, %v838
      %v1319 = vpack.c.b16 %v871, %v839
      %v1320 = vpack.c.b16 %v904, %v872
      %v1321 = vpack.c.b16 %v905, %v873
      %v1322 = vpack.c.b16 %v906, %v874
      %v1323 = vpack.c.b16 %v907, %v875
      %v1324 = vpack.c.b16 %v908, %v876
      %v1325 = vpack.c.b16 %v909, %v877
      %v1326 = vpack.c.b16 %v910, %v878
      %v1327 = vpack.c.b16 %v911, %v879
      %v1328 = vpack.c.b16 %v912, %v880
      %v1329 = vpack.c.b16 %v913, %v881
      %v1330 = vpack.c.b16 %v914, %v882
      %v1331 = vpack.c.b16 %v915, %v883
      %v1332 = vpack.c.b16 %v916, %v884
      %v1333 = vpack.c.b16 %v917, %v885
      %v1334 = vpack.c.b16 %v918, %v886
      %v1335 = vpack.c.b16 %v919, %v887
      %v1336 = vpack.c.b16 %v920, %v888
      %v1337 = vpack.c.b16 %v921, %v889
      %v1338 = vpack.c.b16 %v922, %v890
      %v1339 = vpack.c.b16 %v923, %v891
      %v1340 = vpack.c.b16 %v924, %v892
      %v1341 = vpack.c.b16 %v925, %v893
      %v1342 = vpack.c.b16 %v926, %v894
      %v1343 = vpack.c.b16 %v927, %v895
      %v1344 = vpack.c.b16 %v928, %v896
      %v1345 = vpack.c.b16 %v929, %v897
      %v1346 = vpack.c.b16 %v930, %v898
      %v1347 = vpack.c.b16 %v931, %v899
      %v1348 = vpack.c.b16 %v932, %v900
      %v1349 = vpack.c.b16 %v933, %v901
      %v1350 = vpack.c.b16 %v934, %v902
      %v1351 = vpack.c.b16 %v935, %v903
      %v1352 = vpack.c.b16 %v968, %v936
      %v1353 = vpack.c.b16 %v969, %v937
      %v1354 = vpack.c.b16 %v970, %v938
      %v1355 = vpack.c.b16 %v971, %v939
      %v1356 = vpack.c.b16 %v972, %v940
      %v1357 = vpack.c.b16 %v973, %v941
      %v1358 = vpack.c.b16 %v974, %v942
      %v1359 = vpack.c.b16 %v975, %v943
      %v1360 = vpack.c.b16 %v976, %v944
      %v1361 = vpack.c.b16 %v977, %v945
      %v1362 = vpack.c.b16 %v978, %v946
      %v1363 = vpack.c.b16 %v979, %v947
      %v1364 = vpack.c.b16 %v980, %v948
      %v1365 = vpack.c.b16 %v981, %v949
      %v1366 = vpack.c.b16 %v982, %v950
      %v1367 = vpack.c.b16 %v983, %v951
      %v1368 = vpack.c.b16 %v984, %v952
      %v1369 = vpack.c.b16 %v985, %v953
      %v1370 = vpack.c.b16 %v986, %v954
      %v1371 = vpack.c.b16 %v987, %v955
      %v1372 = vpack.c.b16 %v988, %v956
      %v1373 = vpack.c.b16 %v989, %v957
      %v1374 = vpack.c.b16 %v990, %v958
      %v1375 = vpack.c.b16 %v991, %v959
      %v1376 = vpack.c.b16 %v992, %v960
      %v1377 = vpack.c.b16 %v993, %v961
      %v1378 = vpack.c.b16 %v994, %v962
      %v1379 = vpack.c.b16 %v995, %v963
      %v1380 = vpack.c.b16 %v996, %v964
      %v1381 = vpack.c.b16 %v997, %v965
      %v1382 = vpack.c.b16 %v998, %v966
      %v1383 = vpack.c.b16 %v999, %v967
      %v1384 = vpack.c.b16 %v1032, %v1000
      %v1385 = vpack.c.b16 %v1033, %v1001
      %v1386 = vpack.c.b16 %v1034, %v1002
      %v1387 = vpack.c.b16 %v1035, %v1003
      %v1388 = vpack.c.b16 %v1036, %v1004
      %v1389 = vpack.c.b16 %v1037, %v1005
      %v1390 = vpack.c.b16 %v1038, %v1006
      %v1391 = vpack.c.b16 %v1039, %v1007
      %v1392 = vpack.c.b16 %v1040, %v1008
      %v1393 = vpack.c.b16 %v1041, %v1009
      %v1394 = vpack.c.b16 %v1042, %v1010
      %v1395 = vpack.c.b16 %v1043, %v1011
      %v1396 = vpack.c.b16 %v1044, %v1012
      %v1397 = vpack.c.b16 %v1045, %v1013
      %v1398 = vpack.c.b16 %v1046, %v1014
      %v1399 = vpack.c.b16 %v1047, %v1015
      %v1400 = vpack.c.b16 %v1048, %v1016
      %v1401 = vpack.c.b16 %v1049, %v1017
      %v1402 = vpack.c.b16 %v1050, %v1018
      %v1403 = vpack.c.b16 %v1051, %v1019
      %v1404 = vpack.c.b16 %v1052, %v1020
      %v1405 = vpack.c.b16 %v1053, %v1021
      %v1406 = vpack.c.b16 %v1054, %v1022
      %v1407 = vpack.c.b16 %v1055, %v1023
      %v1408 = vpack.c.b16 %v1056, %v1024
      %v1409 = vpack.c.b16 %v1057, %v1025
      %v1410 = vpack.c.b16 %v1058, %v1026
      %v1411 = vpack.c.b16 %v1059, %v1027
      %v1412 = vpack.c.b16 %v1060, %v1028
      %v1413 = vpack.c.b16 %v1061, %v1029
      %v1414 = vpack.c.b16 %v1062, %v1030
      %v1415 = vpack.c.b16 %v1063, %v1031
      %v1416 = vpack.c.b16 %v1096, %v1064
      %v1417 = vpack.c.b16 %v1097, %v1065
      %v1418 = vpack.c.b16 %v1098, %v1066
      %v1419 = vpack.c.b16 %v1099, %v1067
      %v1420 = vpack.c.b16 %v1100, %v1068
      %v1421 = vpack.c.b16 %v1101, %v1069
      %v1422 = vpack.c.b16 %v1102, %v1070
      %v1423 = vpack.c.b16 %v1103, %v1071
      %v1424 = vpack.c.b16 %v1104, %v1072
      %v1425 = vpack.c.b16 %v1105, %v1073
      %v1426 = vpack.c.b16 %v1106, %v1074
      %v1427 = vpack.c.b16 %v1107, %v1075
      %v1428 = vpack.c.b16 %v1108, %v1076
      %v1429 = vpack.c.b16 %v1109, %v1077
      %v1430 = vpack.c.b16 %v1110, %v1078
      %v1431 = vpack.c.b16 %v1111, %v1079
      %v1432 = vpack.c.b16 %v1112, %v1080
      %v1433 = vpack.c.b16 %v1113, %v1081
      %v1434 = vpack.c.b16 %v1114, %v1082
      %v1435 = vpack.c.b16 %v1115, %v1083
      %v1436 = vpack.c.b16 %v1116, %v1084
      %v1437 = vpack.c.b16 %v1117, %v1085
      %v1438 = vpack.c.b16 %v1118, %v1086
      %v1439 = vpack.c.b16 %v1119, %v1087
      %v1440 = vpack.c.b16 %v1120, %v1088
      %v1441 = vpack.c.b16 %v1121, %v1089
      %v1442 = vpack.c.b16 %v1122, %v1090
      %v1443 = vpack.c.b16 %v1123, %v1091
      %v1444 = vpack.c.b16 %v1124, %v1092
      %v1445 = vpack.c.b16 %v1125, %v1093
      %v1446 = vpack.c.b16 %v1126, %v1094
      %v1447 = vpack.c.b16 %v1127, %v1095
      %v1448 = vpack.c.b16 %v1160, %v1128
      %v1449 = vpack.c.b16 %v1161, %v1129
      %v1450 = vpack.c.b16 %v1162, %v1130
      %v1451 = vpack.c.b16 %v1163, %v1131
      %v1452 = vpack.c.b16 %v1164, %v1132
      %v1453 = vpack.c.b16 %v1165, %v1133
      %v1454 = vpack.c.b16 %v1166, %v1134
      %v1455 = vpack.c.b16 %v1167, %v1135
      %v1456 = vpack.c.b16 %v1168, %v1136
      %v1457 = vpack.c.b16 %v1169, %v1137
      %v1458 = vpack.c.b16 %v1170, %v1138
      %v1459 = vpack.c.b16 %v1171, %v1139
      %v1460 = vpack.c.b16 %v1172, %v1140
      %v1461 = vpack.c.b16 %v1173, %v1141
      %v1462 = vpack.c.b16 %v1174, %v1142
      %v1463 = vpack.c.b16 %v1175, %v1143
      %v1464 = vpack.c.b16 %v1176, %v1144
      %v1465 = vpack.c.b16 %v1177, %v1145
      %v1466 = vpack.c.b16 %v1178, %v1146
      %v1467 = vpack.c.b16 %v1179, %v1147
      %v1468 = vpack.c.b16 %v1180, %v1148
      %v1469 = vpack.c.b16 %v1181, %v1149
      %v1470 = vpack.c.b16 %v1182, %v1150
      %v1471 = vpack.c.b16 %v1183, %v1151
      %v1472 = vpack.c.b16 %v1184, %v1152
      %v1473 = vpack.c.b16 %v1185, %v1153
      %v1474 = vpack.c.b16 %v1186, %v1154
      %v1475 = vpack.c.b16 %v1187, %v1155
      %v1476 = vpack.c.b16 %v1188, %v1156
      %v1477 = vpack.c.b16 %v1189, %v1157
      %v1478 = vpack.c.b16 %v1190, %v1158
      %v1479 = vpack.c.b16 %v1191, %v1159
      %v1480 = vpack.c.b16 %v1224, %v1192
      %v1481 = vpack.c.b16 %v1225, %v1193
      %v1482 = vpack.c.b16 %v1226, %v1194
      %v1483 = vpack.c.b16 %v1227, %v1195
      %v1484 = vpack.c.b16 %v1228, %v1196
      %v1485 = vpack.c.b16 %v1229, %v1197
      %v1486 = vpack.c.b16 %v1230, %v1198
      %v1487 = vpack.c.b16 %v1231, %v1199
      %v1488 = vpack.c.b16 %v1232, %v1200
      %v1489 = vpack.c.b16 %v1233, %v1201
      %v1490 = vpack.c.b16 %v1234, %v1202
      %v1491 = vpack.c.b16 %v1235, %v1203
      %v1492 = vpack.c.b16 %v1236, %v1204
      %v1493 = vpack.c.b16 %v1237, %v1205
      %v1494 = vpack.c.b16 %v1238, %v1206
      %v1495 = vpack.c.b16 %v1239, %v1207
      %v1496 = vpack.c.b16 %v1240, %v1208
      %v1497 = vpack.c.b16 %v1241, %v1209
      %v1498 = vpack.c.b16 %v1242, %v1210
      %v1499 = vpack.c.b16 %v1243, %v1211
      %v1500 = vpack.c.b16 %v1244, %v1212
      %v1501 = vpack.c.b16 %v1245, %v1213
      %v1502 = vpack.c.b16 %v1246, %v1214
      %v1503 = vpack.c.b16 %v1247, %v1215
      %v1504 = vpack.c.b16 %v1248, %v1216
      %v1505 = vpack.c.b16 %v1249, %v1217
      %v1506 = vpack.c.b16 %v1250, %v1218
      %v1507 = vpack.c.b16 %v1251, %v1219
      %v1508 = vpack.c.b16 %v1252, %v1220
      %v1509 = vpack.c.b16 %v1253, %v1221
      %v1510 = vpack.c.b16 %v1254, %v1222
      %v1511 = vpack.c.b16 %v1255, %v1223
      %1768 = vmatprep.subr.bf16.mxu0 %v1257
      %1769 = vmatpush1.bf16.msra.mxu0 %v1256
      %1770 = vmatprep.subr.bf16.mxu0 %v1289
      %1771 = vmatpush1.bf16.msra.mxu0 %v1288
      %1772 = vmatprep.subr.bf16.mxu0 %v1321
      %1773 = vmatpush1.bf16.msra.mxu0 %v1320
      %1774 = vmatprep.subr.bf16.mxu0 %v1353
      %1775 = vmatpush1.bf16.msra.mxu0 %v1352
      %1776 = vmatprep.subr.bf16.mxu0 %v1385
      %1777 = vmatpush1.bf16.msra.mxu0 %v1384
      %1778 = vmatprep.subr.bf16.mxu0 %v1417
      %1779 = vmatpush1.bf16.msra.mxu0 %v1416
      %1780 = vmatprep.subr.bf16.mxu0 %v1449
      %1781 = vmatpush1.bf16.msra.mxu0 %v1448
      %1782 = vmatprep.subr.bf16.mxu0 %v1481
      %1783 = vmatpush1.bf16.msra.mxu0 %v1480
      %1784 = vmatprep.subr.bf16.mxu0 0
      %1785 = vmatpush1.bf16.msra.mxu0 0
      %1786 = vmatprep.subr.bf16.mxu0 0
      %1787 = vmatpush1.bf16.msra.mxu0 0
      %1788 = vmatprep.subr.bf16.mxu0 0
      %1789 = vmatpush1.bf16.msra.mxu0 0
      %1790 = vmatprep.subr.bf16.mxu0 0
      %1791 = vmatpush1.bf16.msra.mxu0 0
      %1792 = vmatprep.subr.bf16.mxu0 0
      %1793 = vmatpush1.bf16.msra.mxu0 0
      %1794 = vmatprep.subr.bf16.mxu0 0
      %1795 = vmatpush1.bf16.msra.mxu0 0
      %1796 = vmatprep.subr.bf16.mxu0 0
      %1797 = vmatpush1.bf16.msra.mxu0 0
      %1798 = vmatprep.subr.bf16.mxu0 0
      %1799 = vmatpush1.bf16.msra.mxu0 0
      %1800 = vmatprep.mubr.bf16.mxu0 0
      %1801 = vmatmul.mubr.bf16.gmra.mrb[0].mxu0 %v486
      %v1802 = vpop.f32.mrb[0].mxu0
      %v1803 = vadd.f32 0.0, %v1802
      %v1804 = vpop.f32.mrb[0].mxu0
      %v1805 = vadd.f32 0.0, %v1804
      %v1806 = vpop.f32.mrb[0].mxu0
      %v1807 = vadd.f32 0.0, %v1806
      %v1808 = vpop.f32.mrb[0].mxu0
      %v1809 = vadd.f32 0.0, %v1808
      %1810 = vdwg.mxu0
      %1811 = vmatprep.subr.bf16.mxu0 %v1259
      %1812 = vmatpush1.bf16.msra.mxu0 %v1258
      %1813 = vmatprep.subr.bf16.mxu0 %v1291
      %1814 = vmatpush1.bf16.msra.mxu0 %v1290
      %1815 = vmatprep.subr.bf16.mxu0 %v1323
      %1816 = vmatpush1.bf16.msra.mxu0 %v1322
      %1817 = vmatprep.subr.bf16.mxu0 %v1355
      %1818 = vmatpush1.bf16.msra.mxu0 %v1354
      %1819 = vmatprep.subr.bf16.mxu0 %v1387
      %1820 = vmatpush1.bf16.msra.mxu0 %v1386
      %1821 = vmatprep.subr.bf16.mxu0 %v1419
      %1822 = vmatpush1.bf16.msra.mxu0 %v1418
      %1823 = vmatprep.subr.bf16.mxu0 %v1451
      %1824 = vmatpush1.bf16.msra.mxu0 %v1450
      %1825 = vmatprep.subr.bf16.mxu0 %v1483
      %1826 = vmatpush1.bf16.msra.mxu0 %v1482
      %1827 = vmatprep.subr.bf16.mxu0 0
      %1828 = vmatpush1.bf16.msra.mxu0 0
      %1829 = vmatprep.subr.bf16.mxu0 0
      %1830 = vmatpush1.bf16.msra.mxu0 0
      %1831 = vmatprep.subr.bf16.mxu0 0
      %1832 = vmatpush1.bf16.msra.mxu0 0
      %1833 = vmatprep.subr.bf16.mxu0 0
      %1834 = vmatpush1.bf16.msra.mxu0 0
      %1835 = vmatprep.subr.bf16.mxu0 0
      %1836 = vmatpush1.bf16.msra.mxu0 0
      %1837 = vmatprep.subr.bf16.mxu0 0
      %1838 = vmatpush1.bf16.msra.mxu0 0
      %1839 = vmatprep.subr.bf16.mxu0 0
      %1840 = vmatpush1.bf16.msra.mxu0 0
      %1841 = vmatprep.subr.bf16.mxu0 0
      %1842 = vmatpush1.bf16.msra.mxu0 0
      %1843 = vmatprep.mubr.bf16.mxu0 0
      %1844 = vmatmul.mubr.bf16.gmra.mrb[0].mxu0 %v486
      %v1845 = vpop.f32.mrb[0].mxu0
      %v1846 = vadd.f32 0.0, %v1845
      %v1847 = vpop.f32.mrb[0].mxu0
      %v1848 = vadd.f32 0.0, %v1847
      %v1849 = vpop.f32.mrb[0].mxu0
      %v1850 = vadd.f32 0.0, %v1849
      %v1851 = vpop.f32.mrb[0].mxu0
      %v1852 = vadd.f32 0.0, %v1851
      %1853 = vdwg.mxu0
      %1854 = vmatprep.subr.bf16.mxu0 %v1261
      %1855 = vmatpush1.bf16.msra.mxu0 %v1260
      %1856 = vmatprep.subr.bf16.mxu0 %v1293
      %1857 = vmatpush1.bf16.msra.mxu0 %v1292
      %1858 = vmatprep.subr.bf16.mxu0 %v1325
      %1859 = vmatpush1.bf16.msra.mxu0 %v1324
      %1860 = vmatprep.subr.bf16.mxu0 %v1357
      %1861 = vmatpush1.bf16.msra.mxu0 %v1356
      %1862 = vmatprep.subr.bf16.mxu0 %v1389
      %1863 = vmatpush1.bf16.msra.mxu0 %v1388
      %1864 = vmatprep.subr.bf16.mxu0 %v1421
      %1865 = vmatpush1.bf16.msra.mxu0 %v1420
      %1866 = vmatprep.subr.bf16.mxu0 %v1453
      %1867 = vmatpush1.bf16.msra.mxu0 %v1452
      %1868 = vmatprep.subr.bf16.mxu0 %v1485
      %1869 = vmatpush1.bf16.msra.mxu0 %v1484
      %1870 = vmatprep.subr.bf16.mxu0 0
      %1871 = vmatpush1.bf16.msra.mxu0 0
      %1872 = vmatprep.subr.bf16.mxu0 0
      %1873 = vmatpush1.bf16.msra.mxu0 0
      %1874 = vmatprep.subr.bf16.mxu0 0
      %1875 = vmatpush1.bf16.msra.mxu0 0
      %1876 = vmatprep.subr.bf16.mxu0 0
      %1877 = vmatpush1.bf16.msra.mxu0 0
      %1878 = vmatprep.subr.bf16.mxu0 0
      %1879 = vmatpush1.bf16.msra.mxu0 0
      %1880 = vmatprep.subr.bf16.mxu0 0
      %1881 = vmatpush1.bf16.msra.mxu0 0
      %1882 = vmatprep.subr.bf16.mxu0 0
      %1883 = vmatpush1.bf16.msra.mxu0 0
      %1884 = vmatprep.subr.bf16.mxu0 0
      %1885 = vmatpush1.bf16.msra.mxu0 0
      %1886 = vmatprep.mubr.bf16.mxu0 0
      %1887 = vmatmul.mubr.bf16.gmra.mrb[0].mxu0 %v486
      %v1888 = vpop.f32.mrb[0].mxu0
      %v1889 = vadd.f32 0.0, %v1888
      %v1890 = vpop.f32.mrb[0].mxu0
      %v1891 = vadd.f32 0.0, %v1890
      %v1892 = vpop.f32.mrb[0].mxu0
      %v1893 = vadd.f32 0.0, %v1892
      %v1894 = vpop.f32.mrb[0].mxu0
      %v1895 = vadd.f32 0.0, %v1894
      %1896 = vdwg.mxu0
      %1897 = vmatprep.subr.bf16.mxu0 %v1263
      %1898 = vmatpush1.bf16.msra.mxu0 %v1262
      %1899 = vmatprep.subr.bf16.mxu0 %v1295
      %1900 = vmatpush1.bf16.msra.mxu0 %v1294
      %1901 = vmatprep.subr.bf16.mxu0 %v1327
      %1902 = vmatpush1.bf16.msra.mxu0 %v1326
      %1903 = vmatprep.subr.bf16.mxu0 %v1359
      %1904 = vmatpush1.bf16.msra.mxu0 %v1358
      %1905 = vmatprep.subr.bf16.mxu0 %v1391
      %1906 = vmatpush1.bf16.msra.mxu0 %v1390
      %1907 = vmatprep.subr.bf16.mxu0 %v1423
      %1908 = vmatpush1.bf16.msra.mxu0 %v1422
      %1909 = vmatprep.subr.bf16.mxu0 %v1455
      %1910 = vmatpush1.bf16.msra.mxu0 %v1454
      %1911 = vmatprep.subr.bf16.mxu0 %v1487
      %1912 = vmatpush1.bf16.msra.mxu0 %v1486
      %1913 = vmatprep.subr.bf16.mxu0 0
      %1914 = vmatpush1.bf16.msra.mxu0 0
      %1915 = vmatprep.subr.bf16.mxu0 0
      %1916 = vmatpush1.bf16.msra.mxu0 0
      %1917 = vmatprep.subr.bf16.mxu0 0
      %1918 = vmatpush1.bf16.msra.mxu0 0
      %1919 = vmatprep.subr.bf16.mxu0 0
      %1920 = vmatpush1.bf16.msra.mxu0 0
      %1921 = vmatprep.subr.bf16.mxu0 0
      %1922 = vmatpush1.bf16.msra.mxu0 0
      %1923 = vmatprep.subr.bf16.mxu0 0
      %1924 = vmatpush1.bf16.msra.mxu0 0
      %1925 = vmatprep.subr.bf16.mxu0 0
      %1926 = vmatpush1.bf16.msra.mxu0 0
      %1927 = vmatprep.subr.bf16.mxu0 0
      %1928 = vmatpush1.bf16.msra.mxu0 0
      %1929 = vmatprep.mubr.bf16.mxu0 0
      %1930 = vmatmul.mubr.bf16.gmra.mrb[0].mxu0 %v486
      %v1931 = vpop.f32.mrb[0].mxu0
      %v1932 = vadd.f32 0.0, %v1931
      %v1933 = vpop.f32.mrb[0].mxu0
      %v1934 = vadd.f32 0.0, %v1933
      %v1935 = vpop.f32.mrb[0].mxu0
      %v1936 = vadd.f32 0.0, %v1935
      %v1937 = vpop.f32.mrb[0].mxu0
      %v1938 = vadd.f32 0.0, %v1937
      %1939 = vdwg.mxu0
      %1940 = vmatprep.subr.bf16.mxu0 %v1265
      %1941 = vmatpush1.bf16.msra.mxu0 %v1264
      %1942 = vmatprep.subr.bf16.mxu0 %v1297
      %1943 = vmatpush1.bf16.msra.mxu0 %v1296
      %1944 = vmatprep.subr.bf16.mxu0 %v1329
      %1945 = vmatpush1.bf16.msra.mxu0 %v1328
      %1946 = vmatprep.subr.bf16.mxu0 %v1361
      %1947 = vmatpush1.bf16.msra.mxu0 %v1360
      %1948 = vmatprep.subr.bf16.mxu0 %v1393
      %1949 = vmatpush1.bf16.msra.mxu0 %v1392
      %1950 = vmatprep.subr.bf16.mxu0 %v1425
      %1951 = vmatpush1.bf16.msra.mxu0 %v1424
      %1952 = vmatprep.subr.bf16.mxu0 %v1457
      %1953 = vmatpush1.bf16.msra.mxu0 %v1456
      %1954 = vmatprep.subr.bf16.mxu0 %v1489
      %1955 = vmatpush1.bf16.msra.mxu0 %v1488
      %1956 = vmatprep.subr.bf16.mxu0 0
      %1957 = vmatpush1.bf16.msra.mxu0 0
      %1958 = vmatprep.subr.bf16.mxu0 0
      %1959 = vmatpush1.bf16.msra.mxu0 0
      %1960 = vmatprep.subr.bf16.mxu0 0
      %1961 = vmatpush1.bf16.msra.mxu0 0
      %1962 = vmatprep.subr.bf16.mxu0 0
      %1963 = vmatpush1.bf16.msra.mxu0 0
      %1964 = vmatprep.subr.bf16.mxu0 0
      %1965 = vmatpush1.bf16.msra.mxu0 0
      %1966 = vmatprep.subr.bf16.mxu0 0
      %1967 = vmatpush1.bf16.msra.mxu0 0
      %1968 = vmatprep.subr.bf16.mxu0 0
      %1969 = vmatpush1.bf16.msra.mxu0 0
      %1970 = vmatprep.subr.bf16.mxu0 0
      %1971 = vmatpush1.bf16.msra.mxu0 0
      %1972 = vmatprep.mubr.bf16.mxu0 0
      %1973 = vmatmul.mubr.bf16.gmra.mrb[0].mxu0 %v486
      %v1974 = vpop.f32.mrb[0].mxu0
      %v1975 = vadd.f32 0.0, %v1974
      %v1976 = vpop.f32.mrb[0].mxu0
      %v1977 = vadd.f32 0.0, %v1976
      %v1978 = vpop.f32.mrb[0].mxu0
      %v1979 = vadd.f32 0.0, %v1978
      %v1980 = vpop.f32.mrb[0].mxu0
      %v1981 = vadd.f32 0.0, %v1980
      %1982 = vdwg.mxu0
      %1983 = vmatprep.subr.bf16.mxu0 %v1267
      %1984 = vmatpush1.bf16.msra.mxu0 %v1266
      %1985 = vmatprep.subr.bf16.mxu0 %v1299
      %1986 = vmatpush1.bf16.msra.mxu0 %v1298
      %1987 = vmatprep.subr.bf16.mxu0 %v1331
      %1988 = vmatpush1.bf16.msra.mxu0 %v1330
      %1989 = vmatprep.subr.bf16.mxu0 %v1363
      %1990 = vmatpush1.bf16.msra.mxu0 %v1362
      %1991 = vmatprep.subr.bf16.mxu0 %v1395
      %1992 = vmatpush1.bf16.msra.mxu0 %v1394
      %1993 = vmatprep.subr.bf16.mxu0 %v1427
      %1994 = vmatpush1.bf16.msra.mxu0 %v1426
      %1995 = vmatprep.subr.bf16.mxu0 %v1459
      %1996 = vmatpush1.bf16.msra.mxu0 %v1458
      %1997 = vmatprep.subr.bf16.mxu0 %v1491
      %1998 = vmatpush1.bf16.msra.mxu0 %v1490
      %1999 = vmatprep.subr.bf16.mxu0 0
      %2000 = vmatpush1.bf16.msra.mxu0 0
      %2001 = vmatprep.subr.bf16.mxu0 0
      %2002 = vmatpush1.bf16.msra.mxu0 0
      %2003 = vmatprep.subr.bf16.mxu0 0
      %2004 = vmatpush1.bf16.msra.mxu0 0
      %2005 = vmatprep.subr.bf16.mxu0 0
      %2006 = vmatpush1.bf16.msra.mxu0 0
      %2007 = vmatprep.subr.bf16.mxu0 0
      %2008 = vmatpush1.bf16.msra.mxu0 0
      %2009 = vmatprep.subr.bf16.mxu0 0
      %2010 = vmatpush1.bf16.msra.mxu0 0
      %2011 = vmatprep.subr.bf16.mxu0 0
      %2012 = vmatpush1.bf16.msra.mxu0 0
      %2013 = vmatprep.subr.bf16.mxu0 0
      %2014 = vmatpush1.bf16.msra.mxu0 0
      %2015 = vmatprep.mubr.bf16.mxu0 0
      %2016 = vmatmul.mubr.bf16.gmra.mrb[0].mxu0 %v486
      %v2017 = vpop.f32.mrb[0].mxu0
      %v2018 = vadd.f32 0.0, %v2017
      %v2019 = vpop.f32.mrb[0].mxu0
      %v2020 = vadd.f32 0.0, %v2019
      %v2021 = vpop.f32.mrb[0].mxu0
      %v2022 = vadd.f32 0.0, %v2021
      %v2023 = vpop.f32.mrb[0].mxu0
      %v2024 = vadd.f32 0.0, %v2023
      %2025 = vdwg.mxu0
      %2026 = vmatprep.subr.bf16.mxu0 %v1269
      %2027 = vmatpush1.bf16.msra.mxu0 %v1268
      %2028 = vmatprep.subr.bf16.mxu0 %v1301
      %2029 = vmatpush1.bf16.msra.mxu0 %v1300
      %2030 = vmatprep.subr.bf16.mxu0 %v1333
      %2031 = vmatpush1.bf16.msra.mxu0 %v1332
      %2032 = vmatprep.subr.bf16.mxu0 %v1365
      %2033 = vmatpush1.bf16.msra.mxu0 %v1364
      %2034 = vmatprep.subr.bf16.mxu0 %v1397
      %2035 = vmatpush1.bf16.msra.mxu0 %v1396
      %2036 = vmatprep.subr.bf16.mxu0 %v1429
      %2037 = vmatpush1.bf16.msra.mxu0 %v1428
      %2038 = vmatprep.subr.bf16.mxu0 %v1461
      %2039 = vmatpush1.bf16.msra.mxu0 %v1460
      %2040 = vmatprep.subr.bf16.mxu0 %v1493
      %2041 = vmatpush1.bf16.msra.mxu0 %v1492
      %2042 = vmatprep.subr.bf16.mxu0 0
      %2043 = vmatpush1.bf16.msra.mxu0 0
      %2044 = vmatprep.subr.bf16.mxu0 0
      %2045 = vmatpush1.bf16.msra.mxu0 0
      %2046 = vmatprep.subr.bf16.mxu0 0
      %2047 = vmatpush1.bf16.msra.mxu0 0
      %2048 = vmatprep.subr.bf16.mxu0 0
      %2049 = vmatpush1.bf16.msra.mxu0 0
      %2050 = vmatprep.subr.bf16.mxu0 0
      %2051 = vmatpush1.bf16.msra.mxu0 0
      %2052 = vmatprep.subr.bf16.mxu0 0
      %2053 = vmatpush1.bf16.msra.mxu0 0
      %2054 = vmatprep.subr.bf16.mxu0 0
      %2055 = vmatpush1.bf16.msra.mxu0 0
      %2056 = vmatprep.subr.bf16.mxu0 0
      %2057 = vmatpush1.bf16.msra.mxu0 0
      %2058 = vmatprep.mubr.bf16.mxu0 0
      %2059 = vmatmul.mubr.bf16.gmra.mrb[0].mxu0 %v486
      %v2060 = vpop.f32.mrb[0].mxu0
      %v2061 = vadd.f32 0.0, %v2060
      %v2062 = vpop.f32.mrb[0].mxu0
      %v2063 = vadd.f32 0.0, %v2062
      %v2064 = vpop.f32.mrb[0].mxu0
      %v2065 = vadd.f32 0.0, %v2064
      %v2066 = vpop.f32.mrb[0].mxu0
      %v2067 = vadd.f32 0.0, %v2066
      %2068 = vdwg.mxu0
      %2069 = vmatprep.subr.bf16.mxu0 %v1271
      %2070 = vmatpush1.bf16.msra.mxu0 %v1270
      %2071 = vmatprep.subr.bf16.mxu0 %v1303
      %2072 = vmatpush1.bf16.msra.mxu0 %v1302
      %2073 = vmatprep.subr.bf16.mxu0 %v1335
      %2074 = vmatpush1.bf16.msra.mxu0 %v1334
      %2075 = vmatprep.subr.bf16.mxu0 %v1367
      %2076 = vmatpush1.bf16.msra.mxu0 %v1366
      %2077 = vmatprep.subr.bf16.mxu0 %v1399
      %2078 = vmatpush1.bf16.msra.mxu0 %v1398
      %2079 = vmatprep.subr.bf16.mxu0 %v1431
      %2080 = vmatpush1.bf16.msra.mxu0 %v1430
      %2081 = vmatprep.subr.bf16.mxu0 %v1463
      %2082 = vmatpush1.bf16.msra.mxu0 %v1462
      %2083 = vmatprep.subr.bf16.mxu0 %v1495
      %2084 = vmatpush1.bf16.msra.mxu0 %v1494
      %2085 = vmatprep.subr.bf16.mxu0 0
      %2086 = vmatpush1.bf16.msra.mxu0 0
      %2087 = vmatprep.subr.bf16.mxu0 0
      %2088 = vmatpush1.bf16.msra.mxu0 0
      %2089 = vmatprep.subr.bf16.mxu0 0
      %2090 = vmatpush1.bf16.msra.mxu0 0
      %2091 = vmatprep.subr.bf16.mxu0 0
      %2092 = vmatpush1.bf16.msra.mxu0 0
      %2093 = vmatprep.subr.bf16.mxu0 0
      %2094 = vmatpush1.bf16.msra.mxu0 0
      %2095 = vmatprep.subr.bf16.mxu0 0
      %2096 = vmatpush1.bf16.msra.mxu0 0
      %2097 = vmatprep.subr.bf16.mxu0 0
      %2098 = vmatpush1.bf16.msra.mxu0 0
      %2099 = vmatprep.subr.bf16.mxu0 0
      %2100 = vmatpush1.bf16.msra.mxu0 0
      %2101 = vmatprep.mubr.bf16.mxu0 0
      %2102 = vmatmul.mubr.bf16.gmra.mrb[0].mxu0 %v486
      %v2103 = vpop.f32.mrb[0].mxu0
      %v2104 = vadd.f32 0.0, %v2103
      %v2105 = vpop.f32.mrb[0].mxu0
      %v2106 = vadd.f32 0.0, %v2105
      %v2107 = vpop.f32.mrb[0].mxu0
      %v2108 = vadd.f32 0.0, %v2107
      %v2109 = vpop.f32.mrb[0].mxu0
      %v2110 = vadd.f32 0.0, %v2109
      %2111 = vdwg.mxu0
      %2112 = vmatprep.subr.bf16.mxu0 %v1273
      %2113 = vmatpush1.bf16.msra.mxu0 %v1272
      %2114 = vmatprep.subr.bf16.mxu0 %v1305
      %2115 = vmatpush1.bf16.msra.mxu0 %v1304
      %2116 = vmatprep.subr.bf16.mxu0 %v1337
      %2117 = vmatpush1.bf16.msra.mxu0 %v1336
      %2118 = vmatprep.subr.bf16.mxu0 %v1369
      %2119 = vmatpush1.bf16.msra.mxu0 %v1368
      %2120 = vmatprep.subr.bf16.mxu0 %v1401
      %2121 = vmatpush1.bf16.msra.mxu0 %v1400
      %2122 = vmatprep.subr.bf16.mxu0 %v1433
      %2123 = vmatpush1.bf16.msra.mxu0 %v1432
      %2124 = vmatprep.subr.bf16.mxu0 %v1465
      %2125 = vmatpush1.bf16.msra.mxu0 %v1464
      %2126 = vmatprep.subr.bf16.mxu0 %v1497
      %2127 = vmatpush1.bf16.msra.mxu0 %v1496
      %2128 = vmatprep.subr.bf16.mxu0 0
      %2129 = vmatpush1.bf16.msra.mxu0 0
      %2130 = vmatprep.subr.bf16.mxu0 0
      %2131 = vmatpush1.bf16.msra.mxu0 0
      %2132 = vmatprep.subr.bf16.mxu0 0
      %2133 = vmatpush1.bf16.msra.mxu0 0
      %2134 = vmatprep.subr.bf16.mxu0 0
      %2135 = vmatpush1.bf16.msra.mxu0 0
      %2136 = vmatprep.subr.bf16.mxu0 0
      %2137 = vmatpush1.bf16.msra.mxu0 0
      %2138 = vmatprep.subr.bf16.mxu0 0
      %2139 = vmatpush1.bf16.msra.mxu0 0
      %2140 = vmatprep.subr.bf16.mxu0 0
      %2141 = vmatpush1.bf16.msra.mxu0 0
      %2142 = vmatprep.subr.bf16.mxu0 0
      %2143 = vmatpush1.bf16.msra.mxu0 0
      %2144 = vmatprep.mubr.bf16.mxu0 0
      %2145 = vmatmul.mubr.bf16.gmra.mrb[0].mxu0 %v486
      %v2146 = vpop.f32.mrb[0].mxu0
      %v2147 = vadd.f32 0.0, %v2146
      %v2148 = vpop.f32.mrb[0].mxu0
      %v2149 = vadd.f32 0.0, %v2148
      %v2150 = vpop.f32.mrb[0].mxu0
      %v2151 = vadd.f32 0.0, %v2150
      %v2152 = vpop.f32.mrb[0].mxu0
      %v2153 = vadd.f32 0.0, %v2152
      %2154 = vdwg.mxu0
      %2155 = vmatprep.subr.bf16.mxu0 %v1275
      %2156 = vmatpush1.bf16.msra.mxu0 %v1274
      %2157 = vmatprep.subr.bf16.mxu0 %v1307
      %2158 = vmatpush1.bf16.msra.mxu0 %v1306
      %2159 = vmatprep.subr.bf16.mxu0 %v1339
      %2160 = vmatpush1.bf16.msra.mxu0 %v1338
      %2161 = vmatprep.subr.bf16.mxu0 %v1371
      %2162 = vmatpush1.bf16.msra.mxu0 %v1370
      %2163 = vmatprep.subr.bf16.mxu0 %v1403
      %2164 = vmatpush1.bf16.msra.mxu0 %v1402
      %2165 = vmatprep.subr.bf16.mxu0 %v1435
      %2166 = vmatpush1.bf16.msra.mxu0 %v1434
      %2167 = vmatprep.subr.bf16.mxu0 %v1467
      %2168 = vmatpush1.bf16.msra.mxu0 %v1466
      %2169 = vmatprep.subr.bf16.mxu0 %v1499
      %2170 = vmatpush1.bf16.msra.mxu0 %v1498
      %2171 = vmatprep.subr.bf16.mxu0 0
      %2172 = vmatpush1.bf16.msra.mxu0 0
      %2173 = vmatprep.subr.bf16.mxu0 0
      %2174 = vmatpush1.bf16.msra.mxu0 0
      %2175 = vmatprep.subr.bf16.mxu0 0
      %2176 = vmatpush1.bf16.msra.mxu0 0
      %2177 = vmatprep.subr.bf16.mxu0 0
      %2178 = vmatpush1.bf16.msra.mxu0 0
      %2179 = vmatprep.subr.bf16.mxu0 0
      %2180 = vmatpush1.bf16.msra.mxu0 0
      %2181 = vmatprep.subr.bf16.mxu0 0
      %2182 = vmatpush1.bf16.msra.mxu0 0
      %2183 = vmatprep.subr.bf16.mxu0 0
      %2184 = vmatpush1.bf16.msra.mxu0 0
      %2185 = vmatprep.subr.bf16.mxu0 0
      %2186 = vmatpush1.bf16.msra.mxu0 0
      %2187 = vmatprep.mubr.bf16.mxu0 0
      %2188 = vmatmul.mubr.bf16.gmra.mrb[0].mxu0 %v486
      %v2189 = vpop.f32.mrb[0].mxu0
      %v2190 = vadd.f32 0.0, %v2189
      %v2191 = vpop.f32.mrb[0].mxu0
      %v2192 = vadd.f32 0.0, %v2191
      %v2193 = vpop.f32.mrb[0].mxu0
      %v2194 = vadd.f32 0.0, %v2193
      %v2195 = vpop.f32.mrb[0].mxu0
      %v2196 = vadd.f32 0.0, %v2195
      %2197 = vdwg.mxu0
      %2198 = vmatprep.subr.bf16.mxu0 %v1277
      %2199 = vmatpush1.bf16.msra.mxu0 %v1276
      %2200 = vmatprep.subr.bf16.mxu0 %v1309
      %2201 = vmatpush1.bf16.msra.mxu0 %v1308
      %2202 = vmatprep.subr.bf16.mxu0 %v1341
      %2203 = vmatpush1.bf16.msra.mxu0 %v1340
      %2204 = vmatprep.subr.bf16.mxu0 %v1373
      %2205 = vmatpush1.bf16.msra.mxu0 %v1372
      %2206 = vmatprep.subr.bf16.mxu0 %v1405
      %2207 = vmatpush1.bf16.msra.mxu0 %v1404
      %2208 = vmatprep.subr.bf16.mxu0 %v1437
      %2209 = vmatpush1.bf16.msra.mxu0 %v1436
      %2210 = vmatprep.subr.bf16.mxu0 %v1469
      %2211 = vmatpush1.bf16.msra.mxu0 %v1468
      %2212 = vmatprep.subr.bf16.mxu0 %v1501
      %2213 = vmatpush1.bf16.msra.mxu0 %v1500
      %2214 = vmatprep.subr.bf16.mxu0 0
      %2215 = vmatpush1.bf16.msra.mxu0 0
      %2216 = vmatprep.subr.bf16.mxu0 0
      %2217 = vmatpush1.bf16.msra.mxu0 0
      %2218 = vmatprep.subr.bf16.mxu0 0
      %2219 = vmatpush1.bf16.msra.mxu0 0
      %2220 = vmatprep.subr.bf16.mxu0 0
      %2221 = vmatpush1.bf16.msra.mxu0 0
      %2222 = vmatprep.subr.bf16.mxu0 0
      %2223 = vmatpush1.bf16.msra.mxu0 0
      %2224 = vmatprep.subr.bf16.mxu0 0
      %2225 = vmatpush1.bf16.msra.mxu0 0
      %2226 = vmatprep.subr.bf16.mxu0 0
      %2227 = vmatpush1.bf16.msra.mxu0 0
      %2228 = vmatprep.subr.bf16.mxu0 0
      %2229 = vmatpush1.bf16.msra.mxu0 0
      %2230 = vmatprep.mubr.bf16.mxu0 0
      %2231 = vmatmul.mubr.bf16.gmra.mrb[0].mxu0 %v486
      %v2232 = vpop.f32.mrb[0].mxu0
      %v2233 = vadd.f32 0.0, %v2232
      %v2234 = vpop.f32.mrb[0].mxu0
      %v2235 = vadd.f32 0.0, %v2234
      %v2236 = vpop.f32.mrb[0].mxu0
      %v2237 = vadd.f32 0.0, %v2236
      %v2238 = vpop.f32.mrb[0].mxu0
      %v2239 = vadd.f32 0.0, %v2238
      %2240 = vdwg.mxu0
      %2241 = vmatprep.subr.bf16.mxu0 %v1279
      %2242 = vmatpush1.bf16.msra.mxu0 %v1278
      %2243 = vmatprep.subr.bf16.mxu0 %v1311
      %2244 = vmatpush1.bf16.msra.mxu0 %v1310
      %2245 = vmatprep.subr.bf16.mxu0 %v1343
      %2246 = vmatpush1.bf16.msra.mxu0 %v1342
      %2247 = vmatprep.subr.bf16.mxu0 %v1375
      %2248 = vmatpush1.bf16.msra.mxu0 %v1374
      %2249 = vmatprep.subr.bf16.mxu0 %v1407
      %2250 = vmatpush1.bf16.msra.mxu0 %v1406
      %2251 = vmatprep.subr.bf16.mxu0 %v1439
      %2252 = vmatpush1.bf16.msra.mxu0 %v1438
      %2253 = vmatprep.subr.bf16.mxu0 %v1471
      %2254 = vmatpush1.bf16.msra.mxu0 %v1470
      %2255 = vmatprep.subr.bf16.mxu0 %v1503
      %2256 = vmatpush1.bf16.msra.mxu0 %v1502
      %2257 = vmatprep.subr.bf16.mxu0 0
      %2258 = vmatpush1.bf16.msra.mxu0 0
      %2259 = vmatprep.subr.bf16.mxu0 0
      %2260 = vmatpush1.bf16.msra.mxu0 0
      %2261 = vmatprep.subr.bf16.mxu0 0
      %2262 = vmatpush1.bf16.msra.mxu0 0
      %2263 = vmatprep.subr.bf16.mxu0 0
      %2264 = vmatpush1.bf16.msra.mxu0 0
      %2265 = vmatprep.subr.bf16.mxu0 0
      %2266 = vmatpush1.bf16.msra.mxu0 0
      %2267 = vmatprep.subr.bf16.mxu0 0
      %2268 = vmatpush1.bf16.msra.mxu0 0
      %2269 = vmatprep.subr.bf16.mxu0 0
      %2270 = vmatpush1.bf16.msra.mxu0 0
      %2271 = vmatprep.subr.bf16.mxu0 0
      %2272 = vmatpush1.bf16.msra.mxu0 0
      %2273 = vmatprep.mubr.bf16.mxu0 0
      %2274 = vmatmul.mubr.bf16.gmra.mrb[0].mxu0 %v486
      %v2275 = vpop.f32.mrb[0].mxu0
      %v2276 = vadd.f32 0.0, %v2275
      %v2277 = vpop.f32.mrb[0].mxu0
      %v2278 = vadd.f32 0.0, %v2277
      %v2279 = vpop.f32.mrb[0].mxu0
      %v2280 = vadd.f32 0.0, %v2279
      %v2281 = vpop.f32.mrb[0].mxu0
      %v2282 = vadd.f32 0.0, %v2281
      %2283 = vdwg.mxu0
      %2284 = vmatprep.subr.bf16.mxu0 %v1281
      %2285 = vmatpush1.bf16.msra.mxu0 %v1280
      %2286 = vmatprep.subr.bf16.mxu0 %v1313
      %2287 = vmatpush1.bf16.msra.mxu0 %v1312
      %2288 = vmatprep.subr.bf16.mxu0 %v1345
      %2289 = vmatpush1.bf16.msra.mxu0 %v1344
      %2290 = vmatprep.subr.bf16.mxu0 %v1377
      %2291 = vmatpush1.bf16.msra.mxu0 %v1376
      %2292 = vmatprep.subr.bf16.mxu0 %v1409
      %2293 = vmatpush1.bf16.msra.mxu0 %v1408
      %2294 = vmatprep.subr.bf16.mxu0 %v1441
      %2295 = vmatpush1.bf16.msra.mxu0 %v1440
      %2296 = vmatprep.subr.bf16.mxu0 %v1473
      %2297 = vmatpush1.bf16.msra.mxu0 %v1472
      %2298 = vmatprep.subr.bf16.mxu0 %v1505
      %2299 = vmatpush1.bf16.msra.mxu0 %v1504
      %2300 = vmatprep.subr.bf16.mxu0 0
      %2301 = vmatpush1.bf16.msra.mxu0 0
      %2302 = vmatprep.subr.bf16.mxu0 0
      %2303 = vmatpush1.bf16.msra.mxu0 0
      %2304 = vmatprep.subr.bf16.mxu0 0
      %2305 = vmatpush1.bf16.msra.mxu0 0
      %2306 = vmatprep.subr.bf16.mxu0 0
      %2307 = vmatpush1.bf16.msra.mxu0 0
      %2308 = vmatprep.subr.bf16.mxu0 0
      %2309 = vmatpush1.bf16.msra.mxu0 0
      %2310 = vmatprep.subr.bf16.mxu0 0
      %2311 = vmatpush1.bf16.msra.mxu0 0
      %2312 = vmatprep.subr.bf16.mxu0 0
      %2313 = vmatpush1.bf16.msra.mxu0 0
      %2314 = vmatprep.subr.bf16.mxu0 0
      %2315 = vmatpush1.bf16.msra.mxu0 0
      %2316 = vmatprep.mubr.bf16.mxu0 0
      %2317 = vmatmul.mubr.bf16.gmra.mrb[0].mxu0 %v486
      %v2318 = vpop.f32.mrb[0].mxu0
      %v2319 = vadd.f32 0.0, %v2318
      %v2320 = vpop.f32.mrb[0].mxu0
      %v2321 = vadd.f32 0.0, %v2320
      %v2322 = vpop.f32.mrb[0].mxu0
      %v2323 = vadd.f32 0.0, %v2322
      %v2324 = vpop.f32.mrb[0].mxu0
      %v2325 = vadd.f32 0.0, %v2324
      %2326 = vdwg.mxu0
      %2327 = vmatprep.subr.bf16.mxu0 %v1283
      %2328 = vmatpush1.bf16.msra.mxu0 %v1282
      %2329 = vmatprep.subr.bf16.mxu0 %v1315
      %2330 = vmatpush1.bf16.msra.mxu0 %v1314
      %2331 = vmatprep.subr.bf16.mxu0 %v1347
      %2332 = vmatpush1.bf16.msra.mxu0 %v1346
      %2333 = vmatprep.subr.bf16.mxu0 %v1379
      %2334 = vmatpush1.bf16.msra.mxu0 %v1378
      %2335 = vmatprep.subr.bf16.mxu0 %v1411
      %2336 = vmatpush1.bf16.msra.mxu0 %v1410
      %2337 = vmatprep.subr.bf16.mxu0 %v1443
      %2338 = vmatpush1.bf16.msra.mxu0 %v1442
      %2339 = vmatprep.subr.bf16.mxu0 %v1475
      %2340 = vmatpush1.bf16.msra.mxu0 %v1474
      %2341 = vmatprep.subr.bf16.mxu0 %v1507
      %2342 = vmatpush1.bf16.msra.mxu0 %v1506
      %2343 = vmatprep.subr.bf16.mxu0 0
      %2344 = vmatpush1.bf16.msra.mxu0 0
      %2345 = vmatprep.subr.bf16.mxu0 0
      %2346 = vmatpush1.bf16.msra.mxu0 0
      %2347 = vmatprep.subr.bf16.mxu0 0
      %2348 = vmatpush1.bf16.msra.mxu0 0
      %2349 = vmatprep.subr.bf16.mxu0 0
      %2350 = vmatpush1.bf16.msra.mxu0 0
      %2351 = vmatprep.subr.bf16.mxu0 0
      %2352 = vmatpush1.bf16.msra.mxu0 0
      %2353 = vmatprep.subr.bf16.mxu0 0
      %2354 = vmatpush1.bf16.msra.mxu0 0
      %2355 = vmatprep.subr.bf16.mxu0 0
      %2356 = vmatpush1.bf16.msra.mxu0 0
      %2357 = vmatprep.subr.bf16.mxu0 0
      %2358 = vmatpush1.bf16.msra.mxu0 0
      %2359 = vmatprep.mubr.bf16.mxu0 0
      %2360 = vmatmul.mubr.bf16.gmra.mrb[0].mxu0 %v486
      %v2361 = vpop.f32.mrb[0].mxu0
      %v2362 = vadd.f32 0.0, %v2361
      %v2363 = vpop.f32.mrb[0].mxu0
      %v2364 = vadd.f32 0.0, %v2363
      %v2365 = vpop.f32.mrb[0].mxu0
      %v2366 = vadd.f32 0.0, %v2365
      %v2367 = vpop.f32.mrb[0].mxu0
      %v2368 = vadd.f32 0.0, %v2367
      %2369 = vdwg.mxu0
      %2370 = vmatprep.subr.bf16.mxu0 %v1285
      %2371 = vmatpush1.bf16.msra.mxu0 %v1284
      %2372 = vmatprep.subr.bf16.mxu0 %v1317
      %2373 = vmatpush1.bf16.msra.mxu0 %v1316
      %2374 = vmatprep.subr.bf16.mxu0 %v1349
      %2375 = vmatpush1.bf16.msra.mxu0 %v1348
      %2376 = vmatprep.subr.bf16.mxu0 %v1381
      %2377 = vmatpush1.bf16.msra.mxu0 %v1380
      %2378 = vmatprep.subr.bf16.mxu0 %v1413
      %2379 = vmatpush1.bf16.msra.mxu0 %v1412
      %2380 = vmatprep.subr.bf16.mxu0 %v1445
      %2381 = vmatpush1.bf16.msra.mxu0 %v1444
      %2382 = vmatprep.subr.bf16.mxu0 %v1477
      %2383 = vmatpush1.bf16.msra.mxu0 %v1476
      %2384 = vmatprep.subr.bf16.mxu0 %v1509
      %2385 = vmatpush1.bf16.msra.mxu0 %v1508
      %2386 = vmatprep.subr.bf16.mxu0 0
      %2387 = vmatpush1.bf16.msra.mxu0 0
      %2388 = vmatprep.subr.bf16.mxu0 0
      %2389 = vmatpush1.bf16.msra.mxu0 0
      %2390 = vmatprep.subr.bf16.mxu0 0
      %2391 = vmatpush1.bf16.msra.mxu0 0
      %2392 = vmatprep.subr.bf16.mxu0 0
      %2393 = vmatpush1.bf16.msra.mxu0 0
      %2394 = vmatprep.subr.bf16.mxu0 0
      %2395 = vmatpush1.bf16.msra.mxu0 0
      %2396 = vmatprep.subr.bf16.mxu0 0
      %2397 = vmatpush1.bf16.msra.mxu0 0
      %2398 = vmatprep.subr.bf16.mxu0 0
      %2399 = vmatpush1.bf16.msra.mxu0 0
      %2400 = vmatprep.subr.bf16.mxu0 0
      %2401 = vmatpush1.bf16.msra.mxu0 0
      %2402 = vmatprep.mubr.bf16.mxu0 0
      %2403 = vmatmul.mubr.bf16.gmra.mrb[0].mxu0 %v486
      %v2404 = vpop.f32.mrb[0].mxu0
      %v2405 = vadd.f32 0.0, %v2404
      %v2406 = vpop.f32.mrb[0].mxu0
      %v2407 = vadd.f32 0.0, %v2406
      %v2408 = vpop.f32.mrb[0].mxu0
      %v2409 = vadd.f32 0.0, %v2408
      %v2410 = vpop.f32.mrb[0].mxu0
      %v2411 = vadd.f32 0.0, %v2410
      %2412 = vdwg.mxu0
      %2413 = vmatprep.subr.bf16.mxu0 %v1287
      %2414 = vmatpush1.bf16.msra.mxu0 %v1286
      %2415 = vmatprep.subr.bf16.mxu0 %v1319
      %2416 = vmatpush1.bf16.msra.mxu0 %v1318
      %2417 = vmatprep.subr.bf16.mxu0 %v1351
      %2418 = vmatpush1.bf16.msra.mxu0 %v1350
      %2419 = vmatprep.subr.bf16.mxu0 %v1383
      %2420 = vmatpush1.bf16.msra.mxu0 %v1382
      %2421 = vmatprep.subr.bf16.mxu0 %v1415
      %2422 = vmatpush1.bf16.msra.mxu0 %v1414
      %2423 = vmatprep.subr.bf16.mxu0 %v1447
      %2424 = vmatpush1.bf16.msra.mxu0 %v1446
      %2425 = vmatprep.subr.bf16.mxu0 %v1479
      %2426 = vmatpush1.bf16.msra.mxu0 %v1478
      %2427 = vmatprep.subr.bf16.mxu0 %v1511
      %2428 = vmatpush1.bf16.msra.mxu0 %v1510
      %2429 = vmatprep.subr.bf16.mxu0 0
      %2430 = vmatpush1.bf16.msra.mxu0 0
      %2431 = vmatprep.subr.bf16.mxu0 0
      %2432 = vmatpush1.bf16.msra.mxu0 0
      %2433 = vmatprep.subr.bf16.mxu0 0
      %2434 = vmatpush1.bf16.msra.mxu0 0
      %2435 = vmatprep.subr.bf16.mxu0 0
      %2436 = vmatpush1.bf16.msra.mxu0 0
      %2437 = vmatprep.subr.bf16.mxu0 0
      %2438 = vmatpush1.bf16.msra.mxu0 0
      %2439 = vmatprep.subr.bf16.mxu0 0
      %2440 = vmatpush1.bf16.msra.mxu0 0
      %2441 = vmatprep.subr.bf16.mxu0 0
      %2442 = vmatpush1.bf16.msra.mxu0 0
      %2443 = vmatprep.subr.bf16.mxu0 0
      %2444 = vmatpush1.bf16.msra.mxu0 0
      %2445 = vmatprep.mubr.bf16.mxu0 0
      %2446 = vmatmul.mubr.bf16.gmra.mrb[0].mxu0 %v486
      %v2447 = vpop.f32.mrb[0].mxu0
      %v2448 = vadd.f32 0.0, %v2447
      %v2449 = vpop.f32.mrb[0].mxu0
      %v2450 = vadd.f32 0.0, %v2449
      %v2451 = vpop.f32.mrb[0].mxu0
      %v2452 = vadd.f32 0.0, %v2451
      %v2453 = vpop.f32.mrb[0].mxu0
      %v2454 = vadd.f32 0.0, %v2453
      %2455 = vdwg.mxu0
      %2456 = vst [vmem:[#allocation2] sm:$0xff] %v1803
      %2457 = vst [vmem:[#allocation2 + $0x8] sm:$0xff] %v1805
      %2458 = vst [vmem:[#allocation2 + $0x10] sm:$0xff] %v1846
      %2459 = vst [vmem:[#allocation2 + $0x18] sm:$0xff] %v1848
      %2460 = vst [vmem:[#allocation2 + $0x20] sm:$0xff] %v1889
      %2461 = vst [vmem:[#allocation2 + $0x28] sm:$0xff] %v1891
      %2462 = vst [vmem:[#allocation2 + $0x30] sm:$0xff] %v1932
      %2463 = vst [vmem:[#allocation2 + $0x38] sm:$0xff] %v1934
      %2464 = vst [vmem:[#allocation2 + $0x40] sm:$0xff] %v1975
      %2465 = vst [vmem:[#allocation2 + $0x48] sm:$0xff] %v1977
      %2466 = vst [vmem:[#allocation2 + $0x50] sm:$0xff] %v2018
      %2467 = vst [vmem:[#allocation2 + $0x58] sm:$0xff] %v2020
      %2468 = vst [vmem:[#allocation2 + $0x60] sm:$0xff] %v2061
      %2469 = vst [vmem:[#allocation2 + $0x68] sm:$0xff] %v2063
      %2470 = vst [vmem:[#allocation2 + $0x70] sm:$0xff] %v2104
      %2471 = vst [vmem:[#allocation2 + $0x78] sm:$0xff] %v2106
      %2472 = vst [vmem:[#allocation2 + $0x80] sm:$0xff] %v2147
      %2473 = vst [vmem:[#allocation2 + $0x88] sm:$0xff] %v2149
      %2474 = vst [vmem:[#allocation2 + $0x90] sm:$0xff] %v2190
      %2475 = vst [vmem:[#allocation2 + $0x98] sm:$0xff] %v2192
      %2476 = vst [vmem:[#allocation2 + $0xa0] sm:$0xff] %v2233
      %2477 = vst [vmem:[#allocation2 + $0xa8] sm:$0xff] %v2235
      %2478 = vst [vmem:[#allocation2 + $0xb0] sm:$0xff] %v2276
      %2479 = vst [vmem:[#allocation2 + $0xb8] sm:$0xff] %v2278
      %2480 = vst [vmem:[#allocation2 + $0xc0] sm:$0xff] %v2319
      %2481 = vst [vmem:[#allocation2 + $0xc8] sm:$0xff] %v2321
      %2482 = vst [vmem:[#allocation2 + $0xd0] sm:$0xff] %v2362
      %2483 = vst [vmem:[#allocation2 + $0xd8] sm:$0xff] %v2364
      %2484 = vst [vmem:[#allocation2 + $0xe0] sm:$0xff] %v2405
      %2485 = vst [vmem:[#allocation2 + $0xe8] sm:$0xff] %v2407
      %2486 = vst [vmem:[#allocation2 + $0xf0] sm:$0xff] %v2448
      %2487 = vst [vmem:[#allocation2 + $0xf8] sm:$0xff] %v2450
      %2488 = vst [vmem:[#allocation2 + $0x100] sm:$0xff] %v1807
      %2489 = vst [vmem:[#allocation2 + $0x108] sm:$0xff] %v1809
      %2490 = vst [vmem:[#allocation2 + $0x110] sm:$0xff] %v1850
      %2491 = vst [vmem:[#allocation2 + $0x118] sm:$0xff] %v1852
      %2492 = vst [vmem:[#allocation2 + $0x120] sm:$0xff] %v1893
      %2493 = vst [vmem:[#allocation2 + $0x128] sm:$0xff] %v1895
      %2494 = vst [vmem:[#allocation2 + $0x130] sm:$0xff] %v1936
      %2495 = vst [vmem:[#allocation2 + $0x138] sm:$0xff] %v1938
      %2496 = vst [vmem:[#allocation2 + $0x140] sm:$0xff] %v1979
      %2497 = vst [vmem:[#allocation2 + $0x148] sm:$0xff] %v1981
      %2498 = vst [vmem:[#allocation2 + $0x150] sm:$0xff] %v2022
      %2499 = vst [vmem:[#allocation2 + $0x158] sm:$0xff] %v2024
      %2500 = vst [vmem:[#allocation2 + $0x160] sm:$0xff] %v2065
      %2501 = vst [vmem:[#allocation2 + $0x168] sm:$0xff] %v2067
      %2502 = vst [vmem:[#allocation2 + $0x170] sm:$0xff] %v2108
      %2503 = vst [vmem:[#allocation2 + $0x178] sm:$0xff] %v2110
      %2504 = vst [vmem:[#allocation2 + $0x180] sm:$0xff] %v2151
      %2505 = vst [vmem:[#allocation2 + $0x188] sm:$0xff] %v2153
      %2506 = vst [vmem:[#allocation2 + $0x190] sm:$0xff] %v2194
      %2507 = vst [vmem:[#allocation2 + $0x198] sm:$0xff] %v2196
      %2508 = vst [vmem:[#allocation2 + $0x1a0] sm:$0xff] %v2237
      %2509 = vst [vmem:[#allocation2 + $0x1a8] sm:$0xff] %v2239
      %2510 = vst [vmem:[#allocation2 + $0x1b0] sm:$0xff] %v2280
      %2511 = vst [vmem:[#allocation2 + $0x1b8] sm:$0xff] %v2282
      %2512 = vst [vmem:[#allocation2 + $0x1c0] sm:$0xff] %v2323
      %2513 = vst [vmem:[#allocation2 + $0x1c8] sm:$0xff] %v2325
      %2514 = vst [vmem:[#allocation2 + $0x1d0] sm:$0xff] %v2366
      %2515 = vst [vmem:[#allocation2 + $0x1d8] sm:$0xff] %v2368
      %2516 = vst [vmem:[#allocation2 + $0x1e0] sm:$0xff] %v2409
      %2517 = vst [vmem:[#allocation2 + $0x1e8] sm:$0xff] %v2411
      %2518 = vst [vmem:[#allocation2 + $0x1f0] sm:$0xff] %v2452
      %2519 = vst [vmem:[#allocation2 + $0x1f8] sm:$0xff] %v2454
      %v2520 = vld [vmem:[%s209] sm:$0xf]
      %v2521 = vld [vmem:[%s209 + $0x4] sm:$0xf]
      %v2522 = vld [vmem:[%s3] sm:$0xf]
      %v2523 = vld [vmem:[%s3 + $0x4] sm:$0xf]
      %v2524 = vld [vmem:[%s3 + $0x8] sm:$0xf]
      %v2525 = vld [vmem:[%s3 + $0xc] sm:$0xf]
      %v2526 = vld [vmem:[%s3 + $0x10] sm:$0xf]
      %v2527 = vld [vmem:[%s3 + $0x14] sm:$0xf]
      %v2528 = vld [vmem:[%s3 + $0x18] sm:$0xf]
      %v2529 = vld [vmem:[%s3 + $0x1c] sm:$0xf]
      %v2530 = vunpack.c.l.bf16 %v2520
      %v2531 = vunpack.c.l.bf16 %v2521
      %v2532 = vld [vmem:[#allocation2] sm:$0xff]
      %v2533 = vld [vmem:[#allocation2 + $0x100] sm:$0xff]
      %2535 = vset.pattern.permute.xlu0 0
      %2536 = vperm.xlu0 %2535, %v2530
      %v2537 = vpop.permute.xlu0 %2536
      %2540 = vset.pattern.permute.xlu0 0
      %2541 = vperm.xlu0 %2540, %v2531
      %v2542 = vpop.permute.xlu0 %2541
      %v2544 = vmul.f32 %v2537, %v2532
      %v2545 = vmul.f32 %v2542, %v2533
      %v2548 = vunpack.c.l.b16 %v2520
      %v2549 = vunpack.c.l.b16 %v2521
      %v2550 = vpack.c.b16 %v2549, %v2548
      %v2559 = vunpack.c.l.b16 %v2522
      %v2560 = vunpack.c.l.b16 %v2523
      %v2561 = vunpack.c.l.b16 %v2524
      %v2562 = vunpack.c.l.b16 %v2525
      %v2563 = vunpack.c.l.b16 %v2526
      %v2564 = vunpack.c.l.b16 %v2527
      %v2565 = vunpack.c.l.b16 %v2528
      %v2566 = vunpack.c.l.b16 %v2529
      %v2567 = vpack.c.b16 %v2560, %v2559
      %v2568 = vpack.c.b16 %v2562, %v2561
      %v2569 = vpack.c.b16 %v2564, %v2563
      %v2570 = vpack.c.b16 %v2566, %v2565
      %vm2575 = vcmask 523264
      %v2577 = vsel %vm2575, %v2550, 0
      %2579 = vmatprep.subr.bf16.mxu0 0
      %2580 = vmatpush1.bf16.msra.mxu0 %v2567
      %2581 = vmatprep.subr.bf16.mxu0 0
      %2582 = vmatpush1.bf16.msra.mxu0 %v2568
      %2583 = vmatprep.subr.bf16.mxu0 0
      %2584 = vmatpush1.bf16.msra.mxu0 %v2569
      %2585 = vmatprep.subr.bf16.mxu0 0
      %2586 = vmatpush1.bf16.msra.mxu0 %v2570
      %2587 = vmatprep.subr.bf16.mxu0 0
      %2588 = vmatpush1.bf16.msra.mxu0 0
      %2589 = vmatprep.subr.bf16.mxu0 0
      %2590 = vmatpush1.bf16.msra.mxu0 0
      %2591 = vmatprep.subr.bf16.mxu0 0
      %2592 = vmatpush1.bf16.msra.mxu0 0
      %2593 = vmatprep.subr.bf16.mxu0 0
      %2594 = vmatpush1.bf16.msra.mxu0 0
      %2595 = vmatprep.subr.bf16.mxu0 0
      %2596 = vmatpush1.bf16.msra.mxu0 0
      %2597 = vmatprep.subr.bf16.mxu0 0
      %2598 = vmatpush1.bf16.msra.mxu0 0
      %2599 = vmatprep.subr.bf16.mxu0 0
      %2600 = vmatpush1.bf16.msra.mxu0 0
      %2601 = vmatprep.subr.bf16.mxu0 0
      %2602 = vmatpush1.bf16.msra.mxu0 0
      %2603 = vmatprep.subr.bf16.mxu0 0
      %2604 = vmatpush1.bf16.msra.mxu0 0
      %2605 = vmatprep.subr.bf16.mxu0 0
      %2606 = vmatpush1.bf16.msra.mxu0 0
      %2607 = vmatprep.subr.bf16.mxu0 0
      %2608 = vmatpush1.bf16.msra.mxu0 0
      %2609 = vmatprep.subr.bf16.mxu0 0
      %2610 = vmatpush1.bf16.msra.mxu0 0
      %2611 = vmatprep.mubr.bf16.mxu0 0
      %2612 = vmatmul.mubr.bf16.gmra.mrb[0].mxu0 %v2577
      %v2613 = vpop.f32.mrb[0].mxu0
      %v2614 = vadd.f32 %v2544, %v2613
      %v2615 = vpop.f32.mrb[0].mxu0
      %v2616 = vpop.f32.mrb[0].mxu0
      %v2617 = vadd.f32 %v2545, %v2616
      %v2618 = vpop.f32.mrb[0].mxu0
      %2619 = vdwg.mxu0
      %2620 = vset.pattern.permute.xlu0 1
      %2621 = vperm.xlu0 %2620, %v2530
      %v2622 = vpop.permute.xlu0 %2621
      %2624 = vset.pattern.permute.xlu0 1
      %2625 = vperm.xlu0 %2624, %v2531
      %v2626 = vpop.permute.xlu0 %2625
      %v2628 = vmul.f32 %v2622, %v2532
      %v2629 = vmul.f32 %v2626, %v2533
      %2632 = vrot.lane.b32.xlu0 %v2628, 64
      %v2633 = vpop.permute.xlu0 %2632
      %2634 = vrot.lane.b32.xlu0 %v2629, 64
      %v2635 = vpop.permute.xlu0 %2634
      %v2638 = vadd.f32 %v2614, %v2633
      %v2639 = vadd.f32 %v2617, %v2635
      %v2640 = vld [vmem:[#allocation2 + $0x8] sm:$0xff]
      %v2641 = vld [vmem:[#allocation2 + $0x108] sm:$0xff]
      %2642 = vset.pattern.permute.xlu0 2
      %2643 = vperm.xlu0 %2642, %v2530
      %v2644 = vpop.permute.xlu0 %2643
      %2646 = vset.pattern.permute.xlu0 2
      %2647 = vperm.xlu0 %2646, %v2531
      %v2648 = vpop.permute.xlu0 %2647
      %v2650 = vmul.f32 %v2644, %v2640
      %v2651 = vmul.f32 %v2648, %v2641
      %v2652 = vadd.f32 %v2638, %v2650
      %v2653 = vadd.f32 %v2639, %v2651
      %2654 = vset.pattern.permute.xlu0 3
      %2655 = vperm.xlu0 %2654, %v2530
      %v2656 = vpop.permute.xlu0 %2655
      %2658 = vset.pattern.permute.xlu0 3
      %2659 = vperm.xlu0 %2658, %v2531
      %v2660 = vpop.permute.xlu0 %2659
      %v2662 = vmul.f32 %v2656, %v2640
      %v2663 = vmul.f32 %v2660, %v2641
      %2666 = vrot.lane.b32.xlu0 %v2662, 64
      %v2667 = vpop.permute.xlu0 %2666
      %2668 = vrot.lane.b32.xlu0 %v2663, 64
      %v2669 = vpop.permute.xlu0 %2668
      %v2672 = vadd.f32 %v2652, %v2667
      %v2673 = vadd.f32 %v2653, %v2669
      %v2674 = vld [vmem:[#allocation2 + $0x10] sm:$0xff]
      %v2675 = vld [vmem:[#allocation2 + $0x110] sm:$0xff]
      %2676 = vset.pattern.permute.xlu0 4
      %2677 = vperm.xlu0 %2676, %v2530
      %v2678 = vpop.permute.xlu0 %2677
      %2680 = vset.pattern.permute.xlu0 4
      %2681 = vperm.xlu0 %2680, %v2531
      %v2682 = vpop.permute.xlu0 %2681
      %v2684 = vmul.f32 %v2678, %v2674
      %v2685 = vmul.f32 %v2682, %v2675
      %v2686 = vadd.f32 %v2672, %v2684
      %v2687 = vadd.f32 %v2673, %v2685
      %2688 = vset.pattern.permute.xlu0 5
      %2689 = vperm.xlu0 %2688, %v2530
      %v2690 = vpop.permute.xlu0 %2689
      %2692 = vset.pattern.permute.xlu0 5
      %2693 = vperm.xlu0 %2692, %v2531
      %v2694 = vpop.permute.xlu0 %2693
      %v2696 = vmul.f32 %v2690, %v2674
      %v2697 = vmul.f32 %v2694, %v2675
      %2700 = vrot.lane.b32.xlu0 %v2696, 64
      %v2701 = vpop.permute.xlu0 %2700
      %2702 = vrot.lane.b32.xlu0 %v2697, 64
      %v2703 = vpop.permute.xlu0 %2702
      %v2706 = vadd.f32 %v2686, %v2701
      %v2707 = vadd.f32 %v2687, %v2703
      %v2708 = vld [vmem:[#allocation2 + $0x18] sm:$0xff]
      %v2709 = vld [vmem:[#allocation2 + $0x118] sm:$0xff]
      %2710 = vset.pattern.permute.xlu0 6
      %2711 = vperm.xlu0 %2710, %v2530
      %v2712 = vpop.permute.xlu0 %2711
      %2714 = vset.pattern.permute.xlu0 6
      %2715 = vperm.xlu0 %2714, %v2531
      %v2716 = vpop.permute.xlu0 %2715
      %v2718 = vmul.f32 %v2712, %v2708
      %v2719 = vmul.f32 %v2716, %v2709
      %v2720 = vadd.f32 %v2706, %v2718
      %v2721 = vadd.f32 %v2707, %v2719
      %2722 = vset.pattern.permute.xlu0 7
      %2723 = vperm.xlu0 %2722, %v2530
      %v2724 = vpop.permute.xlu0 %2723
      %2726 = vset.pattern.permute.xlu0 7
      %2727 = vperm.xlu0 %2726, %v2531
      %v2728 = vpop.permute.xlu0 %2727
      %v2730 = vmul.f32 %v2724, %v2708
      %v2731 = vmul.f32 %v2728, %v2709
      %2734 = vrot.lane.b32.xlu0 %v2730, 64
      %v2735 = vpop.permute.xlu0 %2734
      %2736 = vrot.lane.b32.xlu0 %v2731, 64
      %v2737 = vpop.permute.xlu0 %2736
      %v2740 = vadd.f32 %v2720, %v2735
      %v2741 = vadd.f32 %v2721, %v2737
      %v2742 = vld [vmem:[#allocation2 + $0x20] sm:$0xff]
      %v2743 = vld [vmem:[#allocation2 + $0x120] sm:$0xff]
      %2744 = vset.pattern.permute.xlu0 8
      %2745 = vperm.xlu0 %2744, %v2530
      %v2746 = vpop.permute.xlu0 %2745
      %2748 = vset.pattern.permute.xlu0 8
      %2749 = vperm.xlu0 %2748, %v2531
      %v2750 = vpop.permute.xlu0 %2749
      %v2752 = vmul.f32 %v2746, %v2742
      %v2753 = vmul.f32 %v2750, %v2743
      %v2754 = vadd.f32 %v2740, %v2752
      %v2755 = vadd.f32 %v2741, %v2753
      %2756 = vset.pattern.permute.xlu0 9
      %2757 = vperm.xlu0 %2756, %v2530
      %v2758 = vpop.permute.xlu0 %2757
      %2760 = vset.pattern.permute.xlu0 9
      %2761 = vperm.xlu0 %2760, %v2531
      %v2762 = vpop.permute.xlu0 %2761
      %v2764 = vmul.f32 %v2758, %v2742
      %v2765 = vmul.f32 %v2762, %v2743
      %2768 = vrot.lane.b32.xlu0 %v2764, 64
      %v2769 = vpop.permute.xlu0 %2768
      %2770 = vrot.lane.b32.xlu0 %v2765, 64
      %v2771 = vpop.permute.xlu0 %2770
      %v2774 = vadd.f32 %v2754, %v2769
      %v2775 = vadd.f32 %v2755, %v2771
      %v2776 = vld [vmem:[#allocation2 + $0x28] sm:$0xff]
      %v2777 = vld [vmem:[#allocation2 + $0x128] sm:$0xff]
      %2778 = vset.pattern.permute.xlu0 10
      %2779 = vperm.xlu0 %2778, %v2530
      %v2780 = vpop.permute.xlu0 %2779
      %2782 = vset.pattern.permute.xlu0 10
      %2783 = vperm.xlu0 %2782, %v2531
      %v2784 = vpop.permute.xlu0 %2783
      %v2786 = vmul.f32 %v2780, %v2776
      %v2787 = vmul.f32 %v2784, %v2777
      %v2788 = vadd.f32 %v2774, %v2786
      %v2789 = vadd.f32 %v2775, %v2787
      %2790 = vset.pattern.permute.xlu0 11
      %2791 = vperm.xlu0 %2790, %v2530
      %v2792 = vpop.permute.xlu0 %2791
      %2794 = vset.pattern.permute.xlu0 11
      %2795 = vperm.xlu0 %2794, %v2531
      %v2796 = vpop.permute.xlu0 %2795
      %v2798 = vmul.f32 %v2792, %v2776
      %v2799 = vmul.f32 %v2796, %v2777
      %2802 = vrot.lane.b32.xlu0 %v2798, 64
      %v2803 = vpop.permute.xlu0 %2802
      %2804 = vrot.lane.b32.xlu0 %v2799, 64
      %v2805 = vpop.permute.xlu0 %2804
      %v2808 = vadd.f32 %v2788, %v2803
      %v2809 = vadd.f32 %v2789, %v2805
      %v2810 = vld [vmem:[#allocation2 + $0x30] sm:$0xff]
      %v2811 = vld [vmem:[#allocation2 + $0x130] sm:$0xff]
      %2812 = vset.pattern.permute.xlu0 12
      %2813 = vperm.xlu0 %2812, %v2530
      %v2814 = vpop.permute.xlu0 %2813
      %2816 = vset.pattern.permute.xlu0 12
      %2817 = vperm.xlu0 %2816, %v2531
      %v2818 = vpop.permute.xlu0 %2817
      %v2820 = vmul.f32 %v2814, %v2810
      %v2821 = vmul.f32 %v2818, %v2811
      %v2822 = vadd.f32 %v2808, %v2820
      %v2823 = vadd.f32 %v2809, %v2821
      %2824 = vset.pattern.permute.xlu0 13
      %2825 = vperm.xlu0 %2824, %v2530
      %v2826 = vpop.permute.xlu0 %2825
      %2828 = vset.pattern.permute.xlu0 13
      %2829 = vperm.xlu0 %2828, %v2531
      %v2830 = vpop.permute.xlu0 %2829
      %v2832 = vmul.f32 %v2826, %v2810
      %v2833 = vmul.f32 %v2830, %v2811
      %2836 = vrot.lane.b32.xlu0 %v2832, 64
      %v2837 = vpop.permute.xlu0 %2836
      %2838 = vrot.lane.b32.xlu0 %v2833, 64
      %v2839 = vpop.permute.xlu0 %2838
      %v2842 = vadd.f32 %v2822, %v2837
      %v2843 = vadd.f32 %v2823, %v2839
      %v2844 = vld [vmem:[#allocation2 + $0x38] sm:$0xff]
      %v2845 = vld [vmem:[#allocation2 + $0x138] sm:$0xff]
      %2846 = vset.pattern.permute.xlu0 14
      %2847 = vperm.xlu0 %2846, %v2530
      %v2848 = vpop.permute.xlu0 %2847
      %2850 = vset.pattern.permute.xlu0 14
      %2851 = vperm.xlu0 %2850, %v2531
      %v2852 = vpop.permute.xlu0 %2851
      %v2854 = vmul.f32 %v2848, %v2844
      %v2855 = vmul.f32 %v2852, %v2845
      %v2856 = vadd.f32 %v2842, %v2854
      %v2857 = vadd.f32 %v2843, %v2855
      %2858 = vset.pattern.permute.xlu0 15
      %2859 = vperm.xlu0 %2858, %v2530
      %v2860 = vpop.permute.xlu0 %2859
      %2862 = vset.pattern.permute.xlu0 15
      %2863 = vperm.xlu0 %2862, %v2531
      %v2864 = vpop.permute.xlu0 %2863
      %v2866 = vmul.f32 %v2860, %v2844
      %v2867 = vmul.f32 %v2864, %v2845
      %2870 = vrot.lane.b32.xlu0 %v2866, 64
      %v2871 = vpop.permute.xlu0 %2870
      %2872 = vrot.lane.b32.xlu0 %v2867, 64
      %v2873 = vpop.permute.xlu0 %2872
      %v2876 = vadd.f32 %v2856, %v2871
      %v2877 = vadd.f32 %v2857, %v2873
      %v2878 = vld [vmem:[#allocation2 + $0x40] sm:$0xff]
      %v2879 = vld [vmem:[#allocation2 + $0x140] sm:$0xff]
      %2880 = vset.pattern.permute.xlu0 16
      %2881 = vperm.xlu0 %2880, %v2530
      %v2882 = vpop.permute.xlu0 %2881
      %2884 = vset.pattern.permute.xlu0 16
      %2885 = vperm.xlu0 %2884, %v2531
      %v2886 = vpop.permute.xlu0 %2885
      %v2888 = vmul.f32 %v2882, %v2878
      %v2889 = vmul.f32 %v2886, %v2879
      %v2890 = vadd.f32 %v2876, %v2888
      %v2891 = vadd.f32 %v2877, %v2889
      %2892 = vset.pattern.permute.xlu0 17
      %2893 = vperm.xlu0 %2892, %v2530
      %v2894 = vpop.permute.xlu0 %2893
      %2896 = vset.pattern.permute.xlu0 17
      %2897 = vperm.xlu0 %2896, %v2531
      %v2898 = vpop.permute.xlu0 %2897
      %v2900 = vmul.f32 %v2894, %v2878
      %v2901 = vmul.f32 %v2898, %v2879
      %2904 = vrot.lane.b32.xlu0 %v2900, 64
      %v2905 = vpop.permute.xlu0 %2904
      %2906 = vrot.lane.b32.xlu0 %v2901, 64
      %v2907 = vpop.permute.xlu0 %2906
      %v2910 = vadd.f32 %v2890, %v2905
      %v2911 = vadd.f32 %v2891, %v2907
      %v2912 = vld [vmem:[#allocation2 + $0x48] sm:$0xff]
      %v2913 = vld [vmem:[#allocation2 + $0x148] sm:$0xff]
      %2914 = vset.pattern.permute.xlu0 18
      %2915 = vperm.xlu0 %2914, %v2530
      %v2916 = vpop.permute.xlu0 %2915
      %2918 = vset.pattern.permute.xlu0 18
      %2919 = vperm.xlu0 %2918, %v2531
      %v2920 = vpop.permute.xlu0 %2919
      %v2922 = vmul.f32 %v2916, %v2912
      %v2923 = vmul.f32 %v2920, %v2913
      %v2924 = vadd.f32 %v2910, %v2922
      %v2925 = vadd.f32 %v2911, %v2923
      %2926 = vset.pattern.permute.xlu0 19
      %2927 = vperm.xlu0 %2926, %v2530
      %v2928 = vpop.permute.xlu0 %2927
      %2930 = vset.pattern.permute.xlu0 19
      %2931 = vperm.xlu0 %2930, %v2531
      %v2932 = vpop.permute.xlu0 %2931
      %v2934 = vmul.f32 %v2928, %v2912
      %v2935 = vmul.f32 %v2932, %v2913
      %2938 = vrot.lane.b32.xlu0 %v2934, 64
      %v2939 = vpop.permute.xlu0 %2938
      %2940 = vrot.lane.b32.xlu0 %v2935, 64
      %v2941 = vpop.permute.xlu0 %2940
      %v2944 = vadd.f32 %v2924, %v2939
      %v2945 = vadd.f32 %v2925, %v2941
      %v2946 = vld [vmem:[#allocation2 + $0x50] sm:$0xff]
      %v2947 = vld [vmem:[#allocation2 + $0x150] sm:$0xff]
      %2948 = vset.pattern.permute.xlu0 20
      %2949 = vperm.xlu0 %2948, %v2530
      %v2950 = vpop.permute.xlu0 %2949
      %2952 = vset.pattern.permute.xlu0 20
      %2953 = vperm.xlu0 %2952, %v2531
      %v2954 = vpop.permute.xlu0 %2953
      %v2956 = vmul.f32 %v2950, %v2946
      %v2957 = vmul.f32 %v2954, %v2947
      %v2958 = vadd.f32 %v2944, %v2956
      %v2959 = vadd.f32 %v2945, %v2957
      %2960 = vset.pattern.permute.xlu0 21
      %2961 = vperm.xlu0 %2960, %v2530
      %v2962 = vpop.permute.xlu0 %2961
      %2964 = vset.pattern.permute.xlu0 21
      %2965 = vperm.xlu0 %2964, %v2531
      %v2966 = vpop.permute.xlu0 %2965
      %v2968 = vmul.f32 %v2962, %v2946
      %v2969 = vmul.f32 %v2966, %v2947
      %2972 = vrot.lane.b32.xlu0 %v2968, 64
      %v2973 = vpop.permute.xlu0 %2972
      %2974 = vrot.lane.b32.xlu0 %v2969, 64
      %v2975 = vpop.permute.xlu0 %2974
      %v2978 = vadd.f32 %v2958, %v2973
      %v2979 = vadd.f32 %v2959, %v2975
      %v2980 = vld [vmem:[#allocation2 + $0x58] sm:$0xff]
      %v2981 = vld [vmem:[#allocation2 + $0x158] sm:$0xff]
      %2982 = vset.pattern.permute.xlu0 22
      %2983 = vperm.xlu0 %2982, %v2530
      %v2984 = vpop.permute.xlu0 %2983
      %2986 = vset.pattern.permute.xlu0 22
      %2987 = vperm.xlu0 %2986, %v2531
      %v2988 = vpop.permute.xlu0 %2987
      %v2990 = vmul.f32 %v2984, %v2980
      %v2991 = vmul.f32 %v2988, %v2981
      %v2992 = vadd.f32 %v2978, %v2990
      %v2993 = vadd.f32 %v2979, %v2991
      %2994 = vset.pattern.permute.xlu0 23
      %2995 = vperm.xlu0 %2994, %v2530
      %v2996 = vpop.permute.xlu0 %2995
      %2998 = vset.pattern.permute.xlu0 23
      %2999 = vperm.xlu0 %2998, %v2531
      %v3000 = vpop.permute.xlu0 %2999
      %v3002 = vmul.f32 %v2996, %v2980
      %v3003 = vmul.f32 %v3000, %v2981
      %3006 = vrot.lane.b32.xlu0 %v3002, 64
      %v3007 = vpop.permute.xlu0 %3006
      %3008 = vrot.lane.b32.xlu0 %v3003, 64
      %v3009 = vpop.permute.xlu0 %3008
      %v3012 = vadd.f32 %v2992, %v3007
      %v3013 = vadd.f32 %v2993, %v3009
      %v3014 = vld [vmem:[#allocation2 + $0x60] sm:$0xff]
      %v3015 = vld [vmem:[#allocation2 + $0x160] sm:$0xff]
      %3016 = vset.pattern.permute.xlu0 24
      %3017 = vperm.xlu0 %3016, %v2530
      %v3018 = vpop.permute.xlu0 %3017
      %3020 = vset.pattern.permute.xlu0 24
      %3021 = vperm.xlu0 %3020, %v2531
      %v3022 = vpop.permute.xlu0 %3021
      %v3024 = vmul.f32 %v3018, %v3014
      %v3025 = vmul.f32 %v3022, %v3015
      %v3026 = vadd.f32 %v3012, %v3024
      %v3027 = vadd.f32 %v3013, %v3025
      %3028 = vset.pattern.permute.xlu0 25
      %3029 = vperm.xlu0 %3028, %v2530
      %v3030 = vpop.permute.xlu0 %3029
      %3032 = vset.pattern.permute.xlu0 25
      %3033 = vperm.xlu0 %3032, %v2531
      %v3034 = vpop.permute.xlu0 %3033
      %v3036 = vmul.f32 %v3030, %v3014
      %v3037 = vmul.f32 %v3034, %v3015
      %3040 = vrot.lane.b32.xlu0 %v3036, 64
      %v3041 = vpop.permute.xlu0 %3040
      %3042 = vrot.lane.b32.xlu0 %v3037, 64
      %v3043 = vpop.permute.xlu0 %3042
      %v3046 = vadd.f32 %v3026, %v3041
      %v3047 = vadd.f32 %v3027, %v3043
      %v3048 = vld [vmem:[#allocation2 + $0x68] sm:$0xff]
      %v3049 = vld [vmem:[#allocation2 + $0x168] sm:$0xff]
      %3050 = vset.pattern.permute.xlu0 26
      %3051 = vperm.xlu0 %3050, %v2530
      %v3052 = vpop.permute.xlu0 %3051
      %3054 = vset.pattern.permute.xlu0 26
      %3055 = vperm.xlu0 %3054, %v2531
      %v3056 = vpop.permute.xlu0 %3055
      %v3058 = vmul.f32 %v3052, %v3048
      %v3059 = vmul.f32 %v3056, %v3049
      %v3060 = vadd.f32 %v3046, %v3058
      %v3061 = vadd.f32 %v3047, %v3059
      %3062 = vset.pattern.permute.xlu0 27
      %3063 = vperm.xlu0 %3062, %v2530
      %v3064 = vpop.permute.xlu0 %3063
      %3066 = vset.pattern.permute.xlu0 27
      %3067 = vperm.xlu0 %3066, %v2531
      %v3068 = vpop.permute.xlu0 %3067
      %v3070 = vmul.f32 %v3064, %v3048
      %v3071 = vmul.f32 %v3068, %v3049
      %3074 = vrot.lane.b32.xlu0 %v3070, 64
      %v3075 = vpop.permute.xlu0 %3074
      %3076 = vrot.lane.b32.xlu0 %v3071, 64
      %v3077 = vpop.permute.xlu0 %3076
      %v3080 = vadd.f32 %v3060, %v3075
      %v3081 = vadd.f32 %v3061, %v3077
      %v3082 = vld [vmem:[#allocation2 + $0x70] sm:$0xff]
      %v3083 = vld [vmem:[#allocation2 + $0x170] sm:$0xff]
      %3084 = vset.pattern.permute.xlu0 28
      %3085 = vperm.xlu0 %3084, %v2530
      %v3086 = vpop.permute.xlu0 %3085
      %3088 = vset.pattern.permute.xlu0 28
      %3089 = vperm.xlu0 %3088, %v2531
      %v3090 = vpop.permute.xlu0 %3089
      %v3092 = vmul.f32 %v3086, %v3082
      %v3093 = vmul.f32 %v3090, %v3083
      %v3094 = vadd.f32 %v3080, %v3092
      %v3095 = vadd.f32 %v3081, %v3093
      %3096 = vset.pattern.permute.xlu0 29
      %3097 = vperm.xlu0 %3096, %v2530
      %v3098 = vpop.permute.xlu0 %3097
      %3100 = vset.pattern.permute.xlu0 29
      %3101 = vperm.xlu0 %3100, %v2531
      %v3102 = vpop.permute.xlu0 %3101
      %v3104 = vmul.f32 %v3098, %v3082
      %v3105 = vmul.f32 %v3102, %v3083
      %3108 = vrot.lane.b32.xlu0 %v3104, 64
      %v3109 = vpop.permute.xlu0 %3108
      %3110 = vrot.lane.b32.xlu0 %v3105, 64
      %v3111 = vpop.permute.xlu0 %3110
      %v3114 = vadd.f32 %v3094, %v3109
      %v3115 = vadd.f32 %v3095, %v3111
      %v3116 = vld [vmem:[#allocation2 + $0x78] sm:$0xff]
      %v3117 = vld [vmem:[#allocation2 + $0x178] sm:$0xff]
      %3118 = vset.pattern.permute.xlu0 30
      %3119 = vperm.xlu0 %3118, %v2530
      %v3120 = vpop.permute.xlu0 %3119
      %3122 = vset.pattern.permute.xlu0 30
      %3123 = vperm.xlu0 %3122, %v2531
      %v3124 = vpop.permute.xlu0 %3123
      %v3126 = vmul.f32 %v3120, %v3116
      %v3127 = vmul.f32 %v3124, %v3117
      %v3128 = vadd.f32 %v3114, %v3126
      %v3129 = vadd.f32 %v3115, %v3127
      %3130 = vset.pattern.permute.xlu0 31
      %3131 = vperm.xlu0 %3130, %v2530
      %v3132 = vpop.permute.xlu0 %3131
      %3134 = vset.pattern.permute.xlu0 31
      %3135 = vperm.xlu0 %3134, %v2531
      %v3136 = vpop.permute.xlu0 %3135
      %v3138 = vmul.f32 %v3132, %v3116
      %v3139 = vmul.f32 %v3136, %v3117
      %3142 = vrot.lane.b32.xlu0 %v3138, 64
      %v3143 = vpop.permute.xlu0 %3142
      %3144 = vrot.lane.b32.xlu0 %v3139, 64
      %v3145 = vpop.permute.xlu0 %3144
      %v3148 = vadd.f32 %v3128, %v3143
      %v3149 = vadd.f32 %v3129, %v3145
      %v3150 = vld [vmem:[#allocation2 + $0x80] sm:$0xff]
      %v3151 = vld [vmem:[#allocation2 + $0x180] sm:$0xff]
      %3152 = vset.pattern.permute.xlu0 32
      %3153 = vperm.xlu0 %3152, %v2530
      %v3154 = vpop.permute.xlu0 %3153
      %3156 = vset.pattern.permute.xlu0 32
      %3157 = vperm.xlu0 %3156, %v2531
      %v3158 = vpop.permute.xlu0 %3157
      %v3160 = vmul.f32 %v3154, %v3150
      %v3161 = vmul.f32 %v3158, %v3151
      %v3162 = vadd.f32 %v3148, %v3160
      %v3163 = vadd.f32 %v3149, %v3161
      %3164 = vset.pattern.permute.xlu0 33
      %3165 = vperm.xlu0 %3164, %v2530
      %v3166 = vpop.permute.xlu0 %3165
      %3168 = vset.pattern.permute.xlu0 33
      %3169 = vperm.xlu0 %3168, %v2531
      %v3170 = vpop.permute.xlu0 %3169
      %v3172 = vmul.f32 %v3166, %v3150
      %v3173 = vmul.f32 %v3170, %v3151
      %3176 = vrot.lane.b32.xlu0 %v3172, 64
      %v3177 = vpop.permute.xlu0 %3176
      %3178 = vrot.lane.b32.xlu0 %v3173, 64
      %v3179 = vpop.permute.xlu0 %3178
      %v3182 = vadd.f32 %v3162, %v3177
      %v3183 = vadd.f32 %v3163, %v3179
      %v3184 = vld [vmem:[#allocation2 + $0x88] sm:$0xff]
      %v3185 = vld [vmem:[#allocation2 + $0x188] sm:$0xff]
      %3186 = vset.pattern.permute.xlu0 34
      %3187 = vperm.xlu0 %3186, %v2530
      %v3188 = vpop.permute.xlu0 %3187
      %3190 = vset.pattern.permute.xlu0 34
      %3191 = vperm.xlu0 %3190, %v2531
      %v3192 = vpop.permute.xlu0 %3191
      %v3194 = vmul.f32 %v3188, %v3184
      %v3195 = vmul.f32 %v3192, %v3185
      %v3196 = vadd.f32 %v3182, %v3194
      %v3197 = vadd.f32 %v3183, %v3195
      %3198 = vset.pattern.permute.xlu0 35
      %3199 = vperm.xlu0 %3198, %v2530
      %v3200 = vpop.permute.xlu0 %3199
      %3202 = vset.pattern.permute.xlu0 35
      %3203 = vperm.xlu0 %3202, %v2531
      %v3204 = vpop.permute.xlu0 %3203
      %v3206 = vmul.f32 %v3200, %v3184
      %v3207 = vmul.f32 %v3204, %v3185
      %3210 = vrot.lane.b32.xlu0 %v3206, 64
      %v3211 = vpop.permute.xlu0 %3210
      %3212 = vrot.lane.b32.xlu0 %v3207, 64
      %v3213 = vpop.permute.xlu0 %3212
      %v3216 = vadd.f32 %v3196, %v3211
      %v3217 = vadd.f32 %v3197, %v3213
      %v3218 = vld [vmem:[#allocation2 + $0x90] sm:$0xff]
      %v3219 = vld [vmem:[#allocation2 + $0x190] sm:$0xff]
      %3220 = vset.pattern.permute.xlu0 36
      %3221 = vperm.xlu0 %3220, %v2530
      %v3222 = vpop.permute.xlu0 %3221
      %3224 = vset.pattern.permute.xlu0 36
      %3225 = vperm.xlu0 %3224, %v2531
      %v3226 = vpop.permute.xlu0 %3225
      %v3228 = vmul.f32 %v3222, %v3218
      %v3229 = vmul.f32 %v3226, %v3219
      %v3230 = vadd.f32 %v3216, %v3228
      %v3231 = vadd.f32 %v3217, %v3229
      %3232 = vset.pattern.permute.xlu0 37
      %3233 = vperm.xlu0 %3232, %v2530
      %v3234 = vpop.permute.xlu0 %3233
      %3236 = vset.pattern.permute.xlu0 37
      %3237 = vperm.xlu0 %3236, %v2531
      %v3238 = vpop.permute.xlu0 %3237
      %v3240 = vmul.f32 %v3234, %v3218
      %v3241 = vmul.f32 %v3238, %v3219
      %3244 = vrot.lane.b32.xlu0 %v3240, 64
      %v3245 = vpop.permute.xlu0 %3244
      %3246 = vrot.lane.b32.xlu0 %v3241, 64
      %v3247 = vpop.permute.xlu0 %3246
      %v3250 = vadd.f32 %v3230, %v3245
      %v3251 = vadd.f32 %v3231, %v3247
      %v3252 = vld [vmem:[#allocation2 + $0x98] sm:$0xff]
      %v3253 = vld [vmem:[#allocation2 + $0x198] sm:$0xff]
      %3254 = vset.pattern.permute.xlu0 38
      %3255 = vperm.xlu0 %3254, %v2530
      %v3256 = vpop.permute.xlu0 %3255
      %3258 = vset.pattern.permute.xlu0 38
      %3259 = vperm.xlu0 %3258, %v2531
      %v3260 = vpop.permute.xlu0 %3259
      %v3262 = vmul.f32 %v3256, %v3252
      %v3263 = vmul.f32 %v3260, %v3253
      %v3264 = vadd.f32 %v3250, %v3262
      %v3265 = vadd.f32 %v3251, %v3263
      %3266 = vset.pattern.permute.xlu0 39
      %3267 = vperm.xlu0 %3266, %v2530
      %v3268 = vpop.permute.xlu0 %3267
      %3270 = vset.pattern.permute.xlu0 39
      %3271 = vperm.xlu0 %3270, %v2531
      %v3272 = vpop.permute.xlu0 %3271
      %v3274 = vmul.f32 %v3268, %v3252
      %v3275 = vmul.f32 %v3272, %v3253
      %3278 = vrot.lane.b32.xlu0 %v3274, 64
      %v3279 = vpop.permute.xlu0 %3278
      %3280 = vrot.lane.b32.xlu0 %v3275, 64
      %v3281 = vpop.permute.xlu0 %3280
      %v3284 = vadd.f32 %v3264, %v3279
      %v3285 = vadd.f32 %v3265, %v3281
      %v3286 = vld [vmem:[#allocation2 + $0xa0] sm:$0xff]
      %v3287 = vld [vmem:[#allocation2 + $0x1a0] sm:$0xff]
      %3288 = vset.pattern.permute.xlu0 40
      %3289 = vperm.xlu0 %3288, %v2530
      %v3290 = vpop.permute.xlu0 %3289
      %3292 = vset.pattern.permute.xlu0 40
      %3293 = vperm.xlu0 %3292, %v2531
      %v3294 = vpop.permute.xlu0 %3293
      %v3296 = vmul.f32 %v3290, %v3286
      %v3297 = vmul.f32 %v3294, %v3287
      %v3298 = vadd.f32 %v3284, %v3296
      %v3299 = vadd.f32 %v3285, %v3297
      %3300 = vset.pattern.permute.xlu0 41
      %3301 = vperm.xlu0 %3300, %v2530
      %v3302 = vpop.permute.xlu0 %3301
      %3304 = vset.pattern.permute.xlu0 41
      %3305 = vperm.xlu0 %3304, %v2531
      %v3306 = vpop.permute.xlu0 %3305
      %v3308 = vmul.f32 %v3302, %v3286
      %v3309 = vmul.f32 %v3306, %v3287
      %3312 = vrot.lane.b32.xlu0 %v3308, 64
      %v3313 = vpop.permute.xlu0 %3312
      %3314 = vrot.lane.b32.xlu0 %v3309, 64
      %v3315 = vpop.permute.xlu0 %3314
      %v3318 = vadd.f32 %v3298, %v3313
      %v3319 = vadd.f32 %v3299, %v3315
      %v3320 = vld [vmem:[#allocation2 + $0xa8] sm:$0xff]
      %v3321 = vld [vmem:[#allocation2 + $0x1a8] sm:$0xff]
      %3322 = vset.pattern.permute.xlu0 42
      %3323 = vperm.xlu0 %3322, %v2530
      %v3324 = vpop.permute.xlu0 %3323
      %3326 = vset.pattern.permute.xlu0 42
      %3327 = vperm.xlu0 %3326, %v2531
      %v3328 = vpop.permute.xlu0 %3327
      %v3330 = vmul.f32 %v3324, %v3320
      %v3331 = vmul.f32 %v3328, %v3321
      %v3332 = vadd.f32 %v3318, %v3330
      %v3333 = vadd.f32 %v3319, %v3331
      %3334 = vset.pattern.permute.xlu0 43
      %3335 = vperm.xlu0 %3334, %v2530
      %v3336 = vpop.permute.xlu0 %3335
      %3338 = vset.pattern.permute.xlu0 43
      %3339 = vperm.xlu0 %3338, %v2531
      %v3340 = vpop.permute.xlu0 %3339
      %v3342 = vmul.f32 %v3336, %v3320
      %v3343 = vmul.f32 %v3340, %v3321
      %3346 = vrot.lane.b32.xlu0 %v3342, 64
      %v3347 = vpop.permute.xlu0 %3346
      %3348 = vrot.lane.b32.xlu0 %v3343, 64
      %v3349 = vpop.permute.xlu0 %3348
      %v3352 = vadd.f32 %v3332, %v3347
      %v3353 = vadd.f32 %v3333, %v3349
      %v3354 = vld [vmem:[#allocation2 + $0xb0] sm:$0xff]
      %v3355 = vld [vmem:[#allocation2 + $0x1b0] sm:$0xff]
      %3356 = vset.pattern.permute.xlu0 44
      %3357 = vperm.xlu0 %3356, %v2530
      %v3358 = vpop.permute.xlu0 %3357
      %3360 = vset.pattern.permute.xlu0 44
      %3361 = vperm.xlu0 %3360, %v2531
      %v3362 = vpop.permute.xlu0 %3361
      %v3364 = vmul.f32 %v3358, %v3354
      %v3365 = vmul.f32 %v3362, %v3355
      %v3366 = vadd.f32 %v3352, %v3364
      %v3367 = vadd.f32 %v3353, %v3365
      %3368 = vset.pattern.permute.xlu0 45
      %3369 = vperm.xlu0 %3368, %v2530
      %v3370 = vpop.permute.xlu0 %3369
      %3372 = vset.pattern.permute.xlu0 45
      %3373 = vperm.xlu0 %3372, %v2531
      %v3374 = vpop.permute.xlu0 %3373
      %v3376 = vmul.f32 %v3370, %v3354
      %v3377 = vmul.f32 %v3374, %v3355
      %3380 = vrot.lane.b32.xlu0 %v3376, 64
      %v3381 = vpop.permute.xlu0 %3380
      %3382 = vrot.lane.b32.xlu0 %v3377, 64
      %v3383 = vpop.permute.xlu0 %3382
      %v3386 = vadd.f32 %v3366, %v3381
      %v3387 = vadd.f32 %v3367, %v3383
      %v3388 = vld [vmem:[#allocation2 + $0xb8] sm:$0xff]
      %v3389 = vld [vmem:[#allocation2 + $0x1b8] sm:$0xff]
      %3390 = vset.pattern.permute.xlu0 46
      %3391 = vperm.xlu0 %3390, %v2530
      %v3392 = vpop.permute.xlu0 %3391
      %3394 = vset.pattern.permute.xlu0 46
      %3395 = vperm.xlu0 %3394, %v2531
      %v3396 = vpop.permute.xlu0 %3395
      %v3398 = vmul.f32 %v3392, %v3388
      %v3399 = vmul.f32 %v3396, %v3389
      %v3400 = vadd.f32 %v3386, %v3398
      %v3401 = vadd.f32 %v3387, %v3399
      %3402 = vset.pattern.permute.xlu0 47
      %3403 = vperm.xlu0 %3402, %v2530
      %v3404 = vpop.permute.xlu0 %3403
      %3406 = vset.pattern.permute.xlu0 47
      %3407 = vperm.xlu0 %3406, %v2531
      %v3408 = vpop.permute.xlu0 %3407
      %v3410 = vmul.f32 %v3404, %v3388
      %v3411 = vmul.f32 %v3408, %v3389
      %3414 = vrot.lane.b32.xlu0 %v3410, 64
      %v3415 = vpop.permute.xlu0 %3414
      %3416 = vrot.lane.b32.xlu0 %v3411, 64
      %v3417 = vpop.permute.xlu0 %3416
      %v3420 = vadd.f32 %v3400, %v3415
      %v3421 = vadd.f32 %v3401, %v3417
      %v3422 = vld [vmem:[#allocation2 + $0xc0] sm:$0xff]
      %v3423 = vld [vmem:[#allocation2 + $0x1c0] sm:$0xff]
      %3424 = vset.pattern.permute.xlu0 48
      %3425 = vperm.xlu0 %3424, %v2530
      %v3426 = vpop.permute.xlu0 %3425
      %3428 = vset.pattern.permute.xlu0 48
      %3429 = vperm.xlu0 %3428, %v2531
      %v3430 = vpop.permute.xlu0 %3429
      %v3432 = vmul.f32 %v3426, %v3422
      %v3433 = vmul.f32 %v3430, %v3423
      %v3434 = vadd.f32 %v3420, %v3432
      %v3435 = vadd.f32 %v3421, %v3433
      %3436 = vset.pattern.permute.xlu0 49
      %3437 = vperm.xlu0 %3436, %v2530
      %v3438 = vpop.permute.xlu0 %3437
      %3440 = vset.pattern.permute.xlu0 49
      %3441 = vperm.xlu0 %3440, %v2531
      %v3442 = vpop.permute.xlu0 %3441
      %v3444 = vmul.f32 %v3438, %v3422
      %v3445 = vmul.f32 %v3442, %v3423
      %3448 = vrot.lane.b32.xlu0 %v3444, 64
      %v3449 = vpop.permute.xlu0 %3448
      %3450 = vrot.lane.b32.xlu0 %v3445, 64
      %v3451 = vpop.permute.xlu0 %3450
      %v3454 = vadd.f32 %v3434, %v3449
      %v3455 = vadd.f32 %v3435, %v3451
      %v3456 = vld [vmem:[#allocation2 + $0xc8] sm:$0xff]
      %v3457 = vld [vmem:[#allocation2 + $0x1c8] sm:$0xff]
      %3458 = vset.pattern.permute.xlu0 50
      %3459 = vperm.xlu0 %3458, %v2530
      %v3460 = vpop.permute.xlu0 %3459
      %3462 = vset.pattern.permute.xlu0 50
      %3463 = vperm.xlu0 %3462, %v2531
      %v3464 = vpop.permute.xlu0 %3463
      %v3466 = vmul.f32 %v3460, %v3456
      %v3467 = vmul.f32 %v3464, %v3457
      %v3468 = vadd.f32 %v3454, %v3466
      %v3469 = vadd.f32 %v3455, %v3467
      %3470 = vset.pattern.permute.xlu0 51
      %3471 = vperm.xlu0 %3470, %v2530
      %v3472 = vpop.permute.xlu0 %3471
      %3474 = vset.pattern.permute.xlu0 51
      %3475 = vperm.xlu0 %3474, %v2531
      %v3476 = vpop.permute.xlu0 %3475
      %v3478 = vmul.f32 %v3472, %v3456
      %v3479 = vmul.f32 %v3476, %v3457
      %3482 = vrot.lane.b32.xlu0 %v3478, 64
      %v3483 = vpop.permute.xlu0 %3482
      %3484 = vrot.lane.b32.xlu0 %v3479, 64
      %v3485 = vpop.permute.xlu0 %3484
      %v3488 = vadd.f32 %v3468, %v3483
      %v3489 = vadd.f32 %v3469, %v3485
      %v3490 = vld [vmem:[#allocation2 + $0xd0] sm:$0xff]
      %v3491 = vld [vmem:[#allocation2 + $0x1d0] sm:$0xff]
      %3492 = vset.pattern.permute.xlu0 52
      %3493 = vperm.xlu0 %3492, %v2530
      %v3494 = vpop.permute.xlu0 %3493
      %3496 = vset.pattern.permute.xlu0 52
      %3497 = vperm.xlu0 %3496, %v2531
      %v3498 = vpop.permute.xlu0 %3497
      %v3500 = vmul.f32 %v3494, %v3490
      %v3501 = vmul.f32 %v3498, %v3491
      %v3502 = vadd.f32 %v3488, %v3500
      %v3503 = vadd.f32 %v3489, %v3501
      %3504 = vset.pattern.permute.xlu0 53
      %3505 = vperm.xlu0 %3504, %v2530
      %v3506 = vpop.permute.xlu0 %3505
      %3508 = vset.pattern.permute.xlu0 53
      %3509 = vperm.xlu0 %3508, %v2531
      %v3510 = vpop.permute.xlu0 %3509
      %v3512 = vmul.f32 %v3506, %v3490
      %v3513 = vmul.f32 %v3510, %v3491
      %3516 = vrot.lane.b32.xlu0 %v3512, 64
      %v3517 = vpop.permute.xlu0 %3516
      %3518 = vrot.lane.b32.xlu0 %v3513, 64
      %v3519 = vpop.permute.xlu0 %3518
      %v3522 = vadd.f32 %v3502, %v3517
      %v3523 = vadd.f32 %v3503, %v3519
      %v3524 = vld [vmem:[#allocation2 + $0xd8] sm:$0xff]
      %v3525 = vld [vmem:[#allocation2 + $0x1d8] sm:$0xff]
      %3526 = vset.pattern.permute.xlu0 54
      %3527 = vperm.xlu0 %3526, %v2530
      %v3528 = vpop.permute.xlu0 %3527
      %3530 = vset.pattern.permute.xlu0 54
      %3531 = vperm.xlu0 %3530, %v2531
      %v3532 = vpop.permute.xlu0 %3531
      %v3534 = vmul.f32 %v3528, %v3524
      %v3535 = vmul.f32 %v3532, %v3525
      %v3536 = vadd.f32 %v3522, %v3534
      %v3537 = vadd.f32 %v3523, %v3535
      %3538 = vset.pattern.permute.xlu0 55
      %3539 = vperm.xlu0 %3538, %v2530
      %v3540 = vpop.permute.xlu0 %3539
      %3542 = vset.pattern.permute.xlu0 55
      %3543 = vperm.xlu0 %3542, %v2531
      %v3544 = vpop.permute.xlu0 %3543
      %v3546 = vmul.f32 %v3540, %v3524
      %v3547 = vmul.f32 %v3544, %v3525
      %3550 = vrot.lane.b32.xlu0 %v3546, 64
      %v3551 = vpop.permute.xlu0 %3550
      %3552 = vrot.lane.b32.xlu0 %v3547, 64
      %v3553 = vpop.permute.xlu0 %3552
      %v3556 = vadd.f32 %v3536, %v3551
      %v3557 = vadd.f32 %v3537, %v3553
      %v3558 = vld [vmem:[#allocation2 + $0xe0] sm:$0xff]
      %v3559 = vld [vmem:[#allocation2 + $0x1e0] sm:$0xff]
      %3560 = vset.pattern.permute.xlu0 56
      %3561 = vperm.xlu0 %3560, %v2530
      %v3562 = vpop.permute.xlu0 %3561
      %3564 = vset.pattern.permute.xlu0 56
      %3565 = vperm.xlu0 %3564, %v2531
      %v3566 = vpop.permute.xlu0 %3565
      %v3568 = vmul.f32 %v3562, %v3558
      %v3569 = vmul.f32 %v3566, %v3559
      %v3570 = vadd.f32 %v3556, %v3568
      %v3571 = vadd.f32 %v3557, %v3569
      %3572 = vset.pattern.permute.xlu0 57
      %3573 = vperm.xlu0 %3572, %v2530
      %v3574 = vpop.permute.xlu0 %3573
      %3576 = vset.pattern.permute.xlu0 57
      %3577 = vperm.xlu0 %3576, %v2531
      %v3578 = vpop.permute.xlu0 %3577
      %v3580 = vmul.f32 %v3574, %v3558
      %v3581 = vmul.f32 %v3578, %v3559
      %3584 = vrot.lane.b32.xlu0 %v3580, 64
      %v3585 = vpop.permute.xlu0 %3584
      %3586 = vrot.lane.b32.xlu0 %v3581, 64
      %v3587 = vpop.permute.xlu0 %3586
      %v3590 = vadd.f32 %v3570, %v3585
      %v3591 = vadd.f32 %v3571, %v3587
      %v3592 = vld [vmem:[#allocation2 + $0xe8] sm:$0xff]
      %v3593 = vld [vmem:[#allocation2 + $0x1e8] sm:$0xff]
      %3594 = vset.pattern.permute.xlu0 58
      %3595 = vperm.xlu0 %3594, %v2530
      %v3596 = vpop.permute.xlu0 %3595
      %3598 = vset.pattern.permute.xlu0 58
      %3599 = vperm.xlu0 %3598, %v2531
      %v3600 = vpop.permute.xlu0 %3599
      %v3602 = vmul.f32 %v3596, %v3592
      %v3603 = vmul.f32 %v3600, %v3593
      %v3604 = vadd.f32 %v3590, %v3602
      %v3605 = vadd.f32 %v3591, %v3603
      %3606 = vset.pattern.permute.xlu0 59
      %3607 = vperm.xlu0 %3606, %v2530
      %v3608 = vpop.permute.xlu0 %3607
      %3610 = vset.pattern.permute.xlu0 59
      %3611 = vperm.xlu0 %3610, %v2531
      %v3612 = vpop.permute.xlu0 %3611
      %v3614 = vmul.f32 %v3608, %v3592
      %v3615 = vmul.f32 %v3612, %v3593
      %3618 = vrot.lane.b32.xlu0 %v3614, 64
      %v3619 = vpop.permute.xlu0 %3618
      %3620 = vrot.lane.b32.xlu0 %v3615, 64
      %v3621 = vpop.permute.xlu0 %3620
      %v3624 = vadd.f32 %v3604, %v3619
      %v3625 = vadd.f32 %v3605, %v3621
      %v3626 = vld [vmem:[#allocation2 + $0xf0] sm:$0xff]
      %v3627 = vld [vmem:[#allocation2 + $0x1f0] sm:$0xff]
      %3628 = vset.pattern.permute.xlu0 60
      %3629 = vperm.xlu0 %3628, %v2530
      %v3630 = vpop.permute.xlu0 %3629
      %3632 = vset.pattern.permute.xlu0 60
      %3633 = vperm.xlu0 %3632, %v2531
      %v3634 = vpop.permute.xlu0 %3633
      %v3636 = vmul.f32 %v3630, %v3626
      %v3637 = vmul.f32 %v3634, %v3627
      %v3638 = vadd.f32 %v3624, %v3636
      %v3639 = vadd.f32 %v3625, %v3637
      %3640 = vset.pattern.permute.xlu0 61
      %3641 = vperm.xlu0 %3640, %v2530
      %v3642 = vpop.permute.xlu0 %3641
      %3644 = vset.pattern.permute.xlu0 61
      %3645 = vperm.xlu0 %3644, %v2531
      %v3646 = vpop.permute.xlu0 %3645
      %v3648 = vmul.f32 %v3642, %v3626
      %v3649 = vmul.f32 %v3646, %v3627
      %3652 = vrot.lane.b32.xlu0 %v3648, 64
      %v3653 = vpop.permute.xlu0 %3652
      %3654 = vrot.lane.b32.xlu0 %v3649, 64
      %v3655 = vpop.permute.xlu0 %3654
      %v3658 = vadd.f32 %v3638, %v3653
      %v3659 = vadd.f32 %v3639, %v3655
      %v3660 = vld [vmem:[#allocation2 + $0xf8] sm:$0xff]
      %v3661 = vld [vmem:[#allocation2 + $0x1f8] sm:$0xff]
      %3662 = vset.pattern.permute.xlu0 62
      %3663 = vperm.xlu0 %3662, %v2530
      %v3664 = vpop.permute.xlu0 %3663
      %3666 = vset.pattern.permute.xlu0 62
      %3667 = vperm.xlu0 %3666, %v2531
      %v3668 = vpop.permute.xlu0 %3667
      %v3670 = vmul.f32 %v3664, %v3660
      %v3671 = vmul.f32 %v3668, %v3661
      %v3672 = vadd.f32 %v3658, %v3670
      %v3673 = vadd.f32 %v3659, %v3671
      %3674 = vset.pattern.permute.xlu0 63
      %3675 = vperm.xlu0 %3674, %v2530
      %v3676 = vpop.permute.xlu0 %3675
      %3678 = vset.pattern.permute.xlu0 63
      %3679 = vperm.xlu0 %3678, %v2531
      %v3680 = vpop.permute.xlu0 %3679
      %v3682 = vmul.f32 %v3676, %v3660
      %v3683 = vmul.f32 %v3680, %v3661
      %3686 = vrot.lane.b32.xlu0 %v3682, 64
      %v3687 = vpop.permute.xlu0 %3686
      %3688 = vrot.lane.b32.xlu0 %v3683, 64
      %v3689 = vpop.permute.xlu0 %3688
      %v3692 = vadd.f32 %v3672, %v3687
      %v3693 = vadd.f32 %v3673, %v3689
      %3694 = vst.msk [vmem:[%s221] sm:$0xff] %vm2575, %v3692
      %3695 = vst.msk [vmem:[%s221 + $0x8] sm:$0xff] %vm2575, %v3693
      %s3696 = smul.u32 2, %s15
      %p3697 = scmp.lt.s32.totalorder %s3696, 3
      %s3698 = scalar_select %p3697, %s3696, 3
      %s3699 = smul.addr %s3698, 8
      %s3700 = scalar_lea.vmem %s4, %s3699
      // Predicated region
      $region37: #{mpnn_forward.23} parent=35 // pred_check
        %p3701 = pneg %p127
      $region38: #{mpnn_forward.23} parent=35 // pred_check_branch
        %3703 = sbr.rel (%p3701) target = $region40
      $region39: #{mpnn_forward.23} parent=35 // pred_region
        %s3704 = smul.u32 2, %s15
      $region40: #{mpnn_forward.23} parent=35 // pred_fallthru
        _
    $region36: #{mpnn_forward.23} parent=5 // pred_fallthru
      _
    %p3705 = scmp.le.s32.totalorder 2, %s10
    // Predicated region
    $region41: #{mpnn_forward.23} parent=5 // pred_check
      %p3706 = pneg %p3705
    $region42: #{mpnn_forward.23} parent=5 // pred_check_branch
      %3708 = sbr.rel (%p3706) target = $region44
    $region43: #{mpnn_forward.23} parent=5 // pred_region
      %s3709 = ssub.s32 %s10, 2
      // Predicated region
      $region45: #{mpnn_forward.23} parent=43 // pred_check
        %p3710 = pneg %p133
      $region46: #{mpnn_forward.23} parent=43 // pred_check_branch
        %3712 = sbr.rel (%p3710) target = $region48
      $region47: #{mpnn_forward.23} parent=43 // pred_region
        %s3713 = smul.u32 2, %s16
        %p3714 = scmp.lt.s32.totalorder %s3713, 3
        %s3715 = scalar_select %p3714, %s3713, 3
        %s3716 = smul.addr %s3715, 8
        %s3717 = scalar_lea.vmem %s4, %s3716
      $region48: #{mpnn_forward.23} parent=43 // pred_fallthru
        _
    $region44: #{mpnn_forward.23} parent=5 // pred_fallthru
      _
  $region6: #{mpnn_forward.23} parent=0 // loop_footer
    %s14 = sadd.s32 1, %s10
  $region7: #{mpnn_forward.23} parent=0 // loop_footer_branch
    %9 = sbr.rel target = $region3
  $region8: #{mpnn_forward.23} parent=0 // loop_exit
    _

// kernel: mpnn_forward.40
$region0: #{mpnn_forward.40}
  #allocation0 [shape = 'u32[]', space=smem, size = 0x4, offset = 0x4, fixed_abs, tag = 'smem constant byte address 0x4 - core index']
  #allocation1 [shape = 'u32[144,128]{1,0:T(1,128)}', space=vmem, size = 0x12000, scoped, tag = 'internal scratch']
  %s0 = inlined_call_operand.vmem [shape: f32[8,128], index: 0, kind: input, shape index: {}]
  %s1 = inlined_call_operand.vmem [shape: f32[8,64], index: 1, kind: input, shape index: {}]
  %s2 = inlined_call_operand.vmem [shape: f32[8,64], index: 2, kind: input, shape index: {}]
  %s3 = inlined_call_operand.vmem [shape: bf16[192,256], index: 3, kind: input, shape index: {}]
  %s4 = inlined_call_operand.vmem [shape: f32[1,256], index: 4, kind: input, shape index: {}]
  %s5 = inlined_call_operand.vmem [shape: f32[8,64], index: 5, kind: output, shape index: {0}]
  %s6 = inlined_call_operand.hbm [shape: f32[8,64], index: 6, kind: output, shape index: {1}]
  %7 = xla_tuple %s5, %s6
  %s8 = sld [smem:[#allocation0]]
  $region38: #{mpnn_forward.40} parent=0
    _
  %s10 = ssub.s32 1, %s8
  %s11 = scalar_select 0, %s10, %s8
  $region1: #{mpnn_forward.40} parent=0
    #allocation2 [shape = 'u8[4096]{0}', space=vmem, size = 0x1000, scoped, tag = 'output window, operand 1, single buffered']
    #allocation3 [shape = 's32[1]{0}', space=sflag, size = 0x4, scoped, tag = 'scoped memory for mpnn_forward.40']
    %12 = vsyncpa [#allocation3], 0
    // Predicated region
    $region2: #{mpnn_forward.40} parent=1 // pred_check
      _
    $region3: #{mpnn_forward.40} parent=1 // pred_check_branch
      %14 = sbr.rel (0) target = $region5
    $region4: #{mpnn_forward.40} parent=1 // pred_region
      _
    $region5: #{mpnn_forward.40} parent=1 // pred_fallthru
      _
    // Predicated region
    $region6: #{mpnn_forward.40} parent=1 // pred_check
      _
    $region7: #{mpnn_forward.40} parent=1 // pred_check_branch
      %16 = sbr.rel (0) target = $region9
    $region8: #{mpnn_forward.40} parent=1 // pred_region
      _
    $region9: #{mpnn_forward.40} parent=1 // pred_fallthru
      _
    // Predicated region
    $region10: #{mpnn_forward.40} parent=1 // pred_check
      _
    $region11: #{mpnn_forward.40} parent=1 // pred_check_branch
      %18 = sbr.rel (0) target = $region13
    $region12: #{mpnn_forward.40} parent=1 // pred_region
      _
    $region13: #{mpnn_forward.40} parent=1 // pred_fallthru
      _
    // Predicated region
    $region14: #{mpnn_forward.40} parent=1 // pred_check
      _
    $region15: #{mpnn_forward.40} parent=1 // pred_check_branch
      %20 = sbr.rel (0) target = $region17
    $region16: #{mpnn_forward.40} parent=1 // pred_region
      _
    $region17: #{mpnn_forward.40} parent=1 // pred_fallthru
      _
    // Predicated region
    $region18: #{mpnn_forward.40} parent=1 // pred_check
      _
    $region19: #{mpnn_forward.40} parent=1 // pred_check_branch
      %22 = sbr.rel (0) target = $region21
    $region20: #{mpnn_forward.40} parent=1 // pred_region
      _
    $region21: #{mpnn_forward.40} parent=1 // pred_fallthru
      _
    %v24 = vld [vmem:[%s1] sm:$0xff]
    %v25 = vld [vmem:[%s2] sm:$0xff]
    %v26 = vld [vmem:[%s0] sm:$0xff]
    %v27 = vpack.c.bf16 %v26, %v26
    %v28 = vpack.c.bf16 %v24, %v24
    %v29 = vld [vmem:[%s3] sm:$0xff]
    %v30 = vld [vmem:[%s3 + $0x8] sm:$0xff]
    %v31 = vld [vmem:[%s3 + $0x10] sm:$0xff]
    %v32 = vld [vmem:[%s3 + $0x18] sm:$0xff]
    %v33 = vld [vmem:[%s3 + $0x20] sm:$0xff]
    %v34 = vld [vmem:[%s3 + $0x28] sm:$0xff]
    %v35 = vld [vmem:[%s3 + $0x30] sm:$0xff]
    %v36 = vld [vmem:[%s3 + $0x38] sm:$0xff]
    %v37 = vld [vmem:[%s3 + $0x40] sm:$0xff]
    %v38 = vld [vmem:[%s3 + $0x48] sm:$0xff]
    %v39 = vld [vmem:[%s3 + $0x50] sm:$0xff]
    %v40 = vld [vmem:[%s3 + $0x58] sm:$0xff]
    %v41 = vld [vmem:[%s3 + $0x60] sm:$0xff]
    %v42 = vld [vmem:[%s3 + $0x68] sm:$0xff]
    %v43 = vld [vmem:[%s3 + $0x70] sm:$0xff]
    %v44 = vld [vmem:[%s3 + $0x78] sm:$0xff]
    %v45 = vld [vmem:[%s3 + $0x80] sm:$0xff]
    %v46 = vld [vmem:[%s3 + $0x88] sm:$0xff]
    %v47 = vld [vmem:[%s3 + $0x90] sm:$0xff]
    %v48 = vld [vmem:[%s3 + $0x98] sm:$0xff]
    %v49 = vld [vmem:[%s3 + $0xa0] sm:$0xff]
    %v50 = vld [vmem:[%s3 + $0xa8] sm:$0xff]
    %v51 = vld [vmem:[%s3 + $0xb0] sm:$0xff]
    %v52 = vld [vmem:[%s3 + $0xb8] sm:$0xff]
    %v53 = vld [vmem:[%s4] sm:$0x3]
    %v55 = vlaneseq
    %v56 = vshrl.u32 %v55, 7
    %v57 = vsub.s32 0, %v56
    %v58 = vrot.slane %v53, %v57
    %v59 = vlaneseq
    %v60 = vshrl.u32 %v59, 7
    %v61 = vsub.s32 1, %v60
    %v62 = vrot.slane %v53, %v61
    %v89 = vunpack.c.l.b16 %v29
    %v90 = vunpack.c.h.b16 %v29
    %v91 = vunpack.c.l.b16 %v30
    %v92 = vunpack.c.h.b16 %v30
    %v93 = vunpack.c.l.b16 %v31
    %v94 = vunpack.c.h.b16 %v31
    %v95 = vunpack.c.l.b16 %v32
    %v96 = vunpack.c.h.b16 %v32
    %v97 = vunpack.c.l.b16 %v33
    %v98 = vunpack.c.h.b16 %v33
    %v99 = vunpack.c.l.b16 %v34
    %v100 = vunpack.c.h.b16 %v34
    %v101 = vunpack.c.l.b16 %v35
    %v102 = vunpack.c.h.b16 %v35
    %v103 = vunpack.c.l.b16 %v36
    %v104 = vunpack.c.h.b16 %v36
    %v105 = vunpack.c.l.b16 %v37
    %v106 = vunpack.c.h.b16 %v37
    %v107 = vunpack.c.l.b16 %v38
    %v108 = vunpack.c.h.b16 %v38
    %v109 = vunpack.c.l.b16 %v39
    %v110 = vunpack.c.h.b16 %v39
    %v111 = vunpack.c.l.b16 %v40
    %v112 = vunpack.c.h.b16 %v40
    %v113 = vunpack.c.l.b16 %v41
    %v114 = vunpack.c.h.b16 %v41
    %v115 = vunpack.c.l.b16 %v42
    %v116 = vunpack.c.h.b16 %v42
    %v117 = vunpack.c.l.b16 %v43
    %v118 = vunpack.c.h.b16 %v43
    %v119 = vunpack.c.l.b16 %v44
    %v120 = vunpack.c.h.b16 %v44
    %v121 = vunpack.c.l.b16 %v45
    %v122 = vunpack.c.h.b16 %v45
    %v123 = vunpack.c.l.b16 %v46
    %v124 = vunpack.c.h.b16 %v46
    %v125 = vunpack.c.l.b16 %v47
    %v126 = vunpack.c.h.b16 %v47
    %v127 = vunpack.c.l.b16 %v48
    %v128 = vunpack.c.h.b16 %v48
    %v129 = vunpack.c.l.b16 %v49
    %v130 = vunpack.c.h.b16 %v49
    %v131 = vunpack.c.l.b16 %v50
    %v132 = vunpack.c.h.b16 %v50
    %v133 = vunpack.c.l.b16 %v51
    %v134 = vunpack.c.h.b16 %v51
    %v135 = vunpack.c.l.b16 %v52
    %v136 = vunpack.c.h.b16 %v52
    %v137 = vpack.c.b16 %v91, %v89
    %v138 = vpack.c.b16 %v92, %v90
    %v139 = vpack.c.b16 %v95, %v93
    %v140 = vpack.c.b16 %v96, %v94
    %v141 = vpack.c.b16 %v99, %v97
    %v142 = vpack.c.b16 %v100, %v98
    %v143 = vpack.c.b16 %v103, %v101
    %v144 = vpack.c.b16 %v104, %v102
    %v145 = vpack.c.b16 %v107, %v105
    %v146 = vpack.c.b16 %v108, %v106
    %v147 = vpack.c.b16 %v111, %v109
    %v148 = vpack.c.b16 %v112, %v110
    %v149 = vpack.c.b16 %v115, %v113
    %v150 = vpack.c.b16 %v116, %v114
    %v151 = vpack.c.b16 %v119, %v117
    %v152 = vpack.c.b16 %v120, %v118
    %v153 = vpack.c.b16 %v123, %v121
    %v154 = vpack.c.b16 %v124, %v122
    %v155 = vpack.c.b16 %v127, %v125
    %v156 = vpack.c.b16 %v128, %v126
    %v157 = vpack.c.b16 %v131, %v129
    %v158 = vpack.c.b16 %v132, %v130
    %v159 = vpack.c.b16 %v135, %v133
    %v160 = vpack.c.b16 %v136, %v134
    %vm185 = vcmask 523264
    %v187 = vsel %vm185, %v28, 0
    %189 = vmatprep.subr.bf16.mxu0 %v138
    %190 = vmatpush1.bf16.msra.mxu0 %v137
    %191 = vmatprep.subr.bf16.mxu0 %v140
    %192 = vmatpush1.bf16.msra.mxu0 %v139
    %193 = vmatprep.subr.bf16.mxu0 %v142
    %194 = vmatpush1.bf16.msra.mxu0 %v141
    %195 = vmatprep.subr.bf16.mxu0 %v144
    %196 = vmatpush1.bf16.msra.mxu0 %v143
    %197 = vmatprep.subr.bf16.mxu0 %v146
    %198 = vmatpush1.bf16.msra.mxu0 %v145
    %199 = vmatprep.subr.bf16.mxu0 %v148
    %200 = vmatpush1.bf16.msra.mxu0 %v147
    %201 = vmatprep.subr.bf16.mxu0 %v150
    %202 = vmatpush1.bf16.msra.mxu0 %v149
    %203 = vmatprep.subr.bf16.mxu0 %v152
    %204 = vmatpush1.bf16.msra.mxu0 %v151
    %205 = vmatprep.subr.bf16.mxu0 %v154
    %206 = vmatpush1.bf16.msra.mxu0 %v153
    %207 = vmatprep.subr.bf16.mxu0 %v156
    %208 = vmatpush1.bf16.msra.mxu0 %v155
    %209 = vmatprep.subr.bf16.mxu0 %v158
    %210 = vmatpush1.bf16.msra.mxu0 %v157
    %211 = vmatprep.subr.bf16.mxu0 %v160
    %212 = vmatpush1.bf16.msra.mxu0 %v159
    %213 = vmatprep.subr.bf16.mxu0 0
    %214 = vmatpush1.bf16.msra.mxu0 0
    %215 = vmatprep.subr.bf16.mxu0 0
    %216 = vmatpush1.bf16.msra.mxu0 0
    %217 = vmatprep.subr.bf16.mxu0 0
    %218 = vmatpush1.bf16.msra.mxu0 0
    %219 = vmatprep.subr.bf16.mxu0 0
    %220 = vmatpush1.bf16.msra.mxu0 0
    %221 = vmatprep.mubr.bf16.mxu0 %v187
    %222 = vmatmul.mubr.bf16.gmra.mrb[0].mxu0 %v27
    %v223 = vpop.f32.mrb[0].mxu0
    %v224 = vadd.f32 %v58, %v223
    %v225 = vpop.f32.mrb[0].mxu0
    %v226 = vadd.f32 %v62, %v225
    %v227 = vpop.f32.mrb[0].mxu0
    %v228 = vpop.f32.mrb[0].mxu0
    %229 = vdwg.mxu0
    %v230 = vxor.u32 %v224, 2147483648
    %v231 = vmul.f32 %v230, 1.442695
    %v232 = vpow.pop %v231
    %v233 = vadd.f32 %v232, 1.0
    %v234 = vrcp.pop %v233
    %v235 = vmul.f32 1.0, %v234
    %v236 = vtanh.pop %v226
    %v237 = vxor.u32 %v226, 2147483648
    %v238 = vmul.f32 %v237, 1.442695
    %v239 = vpow.pop %v238
    %v240 = vadd.f32 %v239, 1.0
    %v241 = vrcp.pop %v240
    %v242 = vmul.f32 1.0, %v241
    %244 = vrot.lane.b32.xlu0 %v25, 64
    %v245 = vpop.permute.xlu0 %244
    %v247 = vmul.f32 %v235, %v245
    %v248 = vmul.f32 %v235, %v236
    %250 = vrot.lane.b32.xlu0 %v248, 64
    %v251 = vpop.permute.xlu0 %250
    %v253 = vadd.f32 %v247, %v251
    %v254 = vtanh.pop %v253
    %v255 = vmul.f32 %v242, %v254
    %257 = vrot.lane.b32.xlu0 %v255, 64
    %v258 = vpop.permute.xlu0 %257
    %260 = vst.msk [vmem:[%s5] sm:$0xff] %vm185, %v258
    %262 = vrot.lane.b32.xlu0 %v253, 64
    %v263 = vpop.permute.xlu0 %262
    %265 = vst.msk [vmem:[#allocation2] sm:$0xff] %vm185, %v263
    // Predicated region
    $region22: #{mpnn_forward.40} parent=1 // pred_check
      _
    $region23: #{mpnn_forward.40} parent=1 // pred_check_branch
      %267 = sbr.rel (0) target = $region25
    $region24: #{mpnn_forward.40} parent=1 // pred_region
      _
    $region25: #{mpnn_forward.40} parent=1 // pred_fallthru
      _
    // Predicated region
    $region26: #{mpnn_forward.40} parent=1 // pred_check
      _
    $region27: #{mpnn_forward.40} parent=1 // pred_check_branch
      %269 = sbr.rel (0) target = $region29
    $region28: #{mpnn_forward.40} parent=1 // pred_region
      %s271 = ssub.s32 128, 128
      %272 = vsyncadd [#allocation3], %s271
      %s274 = sshll.u32 [#allocation2], 4
      %s275 = int_to_ptr.vmem [resolvable:$true] %s274
      %277 = dma.vmem_to_hbm [thread:$0]  %s275, 128, %s6, [#allocation3]
    $region29: #{mpnn_forward.40} parent=1 // pred_fallthru
      _
    // Predicated region
    $region30: #{mpnn_forward.40} parent=1 // pred_check
      _
    $region31: #{mpnn_forward.40} parent=1 // pred_check_branch
      %279 = sbr.rel (0) target = $region33
    $region32: #{mpnn_forward.40} parent=1 // pred_region
      _
    $region33: #{mpnn_forward.40} parent=1 // pred_fallthru
      _
    // Predicated region
    $region34: #{mpnn_forward.40} parent=1 // pred_check
      _
    $region35: #{mpnn_forward.40} parent=1 // pred_check_branch
      %281 = sbr.rel (0) target = $region37
    $region36: #{mpnn_forward.40} parent=1 // pred_region
      %282 = dma.done [#allocation3], 128
    $region37: #{mpnn_forward.40} parent=1 // pred_fallthru
      _
    %283 = vsyncpa [#allocation3], 1

// kernel: mpnn_forward.41
$region0: #{mpnn_forward.41}
  #allocation0 [shape = 'u32[]', space=smem, size = 0x4, offset = 0x4, fixed_abs, tag = 'smem constant byte address 0x4 - core index']
  #allocation1 [shape = 'u32[144,128]{1,0:T(1,128)}', space=vmem, size = 0x12000, scoped, tag = 'internal scratch']
  %s0 = inlined_call_operand.vmem [shape: f32[8,128], index: 0, kind: input, shape index: {}]
  %s1 = inlined_call_operand.vmem [shape: bf16[128,64], index: 1, kind: input, shape index: {}]
  %s2 = inlined_call_operand.vmem [shape: f32[1,64], index: 2, kind: input, shape index: {}]
  %s3 = inlined_call_operand.vmem [shape: bf16[64,12], index: 3, kind: input, shape index: {}]
  %s4 = inlined_call_operand.vmem [shape: f32[1,12], index: 4, kind: input, shape index: {}]
  %s5 = inlined_call_operand.vmem [shape: f32[8,12], index: 5, kind: output, shape index: {}]
  %s6 = sld [smem:[#allocation0]]
  $region30: #{mpnn_forward.41} parent=0
    _
  %s8 = ssub.s32 1, %s6
  %s9 = scalar_select 0, %s8, %s6
  // Predicated region
  $region2: #{mpnn_forward.41} parent=0 // pred_check
    _
  $region3: #{mpnn_forward.41} parent=0 // pred_check_branch
    %11 = sbr.rel (0) target = $region5
  $region4: #{mpnn_forward.41} parent=0 // pred_region
    _
  $region5: #{mpnn_forward.41} parent=0 // pred_fallthru
    _
  // Predicated region
  $region6: #{mpnn_forward.41} parent=0 // pred_check
    _
  $region7: #{mpnn_forward.41} parent=0 // pred_check_branch
    %13 = sbr.rel (0) target = $region9
  $region8: #{mpnn_forward.41} parent=0 // pred_region
    _
  $region9: #{mpnn_forward.41} parent=0 // pred_fallthru
    _
  // Predicated region
  $region10: #{mpnn_forward.41} parent=0 // pred_check
    _
  $region11: #{mpnn_forward.41} parent=0 // pred_check_branch
    %15 = sbr.rel (0) target = $region13
  $region12: #{mpnn_forward.41} parent=0 // pred_region
    _
  $region13: #{mpnn_forward.41} parent=0 // pred_fallthru
    _
  // Predicated region
  $region14: #{mpnn_forward.41} parent=0 // pred_check
    _
  $region15: #{mpnn_forward.41} parent=0 // pred_check_branch
    %17 = sbr.rel (0) target = $region17
  $region16: #{mpnn_forward.41} parent=0 // pred_region
    _
  $region17: #{mpnn_forward.41} parent=0 // pred_fallthru
    _
  // Predicated region
  $region18: #{mpnn_forward.41} parent=0 // pred_check
    _
  $region19: #{mpnn_forward.41} parent=0 // pred_check_branch
    %19 = sbr.rel (0) target = $region21
  $region20: #{mpnn_forward.41} parent=0 // pred_region
    _
  $region21: #{mpnn_forward.41} parent=0 // pred_fallthru
    _
  %v21 = vld [vmem:[%s0] sm:$0xff]
  %v22 = vpack.c.bf16 %v21, %v21
  %v23 = vld [vmem:[%s1] sm:$0xf]
  %v24 = vld [vmem:[%s1 + $0x4] sm:$0xf]
  %v25 = vld [vmem:[%s1 + $0x8] sm:$0xf]
  %v26 = vld [vmem:[%s1 + $0xc] sm:$0xf]
  %v27 = vld [vmem:[%s1 + $0x10] sm:$0xf]
  %v28 = vld [vmem:[%s1 + $0x14] sm:$0xf]
  %v29 = vld [vmem:[%s1 + $0x18] sm:$0xf]
  %v30 = vld [vmem:[%s1 + $0x1c] sm:$0xf]
  %v31 = vld [vmem:[%s1 + $0x20] sm:$0xf]
  %v32 = vld [vmem:[%s1 + $0x24] sm:$0xf]
  %v33 = vld [vmem:[%s1 + $0x28] sm:$0xf]
  %v34 = vld [vmem:[%s1 + $0x2c] sm:$0xf]
  %v35 = vld [vmem:[%s1 + $0x30] sm:$0xf]
  %v36 = vld [vmem:[%s1 + $0x34] sm:$0xf]
  %v37 = vld [vmem:[%s1 + $0x38] sm:$0xf]
  %v38 = vld [vmem:[%s1 + $0x3c] sm:$0xf]
  %v39 = vld [vmem:[%s2] sm:$0x1]
  %v41 = vlaneseq
  %v42 = vshrl.u32 %v41, 7
  %v43 = vsub.s32 0, %v42
  %v44 = vrot.slane %v39, %v43
  %v62 = vunpack.c.l.b16 %v23
  %v63 = vunpack.c.l.b16 %v24
  %v64 = vunpack.c.l.b16 %v25
  %v65 = vunpack.c.l.b16 %v26
  %v66 = vunpack.c.l.b16 %v27
  %v67 = vunpack.c.l.b16 %v28
  %v68 = vunpack.c.l.b16 %v29
  %v69 = vunpack.c.l.b16 %v30
  %v70 = vunpack.c.l.b16 %v31
  %v71 = vunpack.c.l.b16 %v32
  %v72 = vunpack.c.l.b16 %v33
  %v73 = vunpack.c.l.b16 %v34
  %v74 = vunpack.c.l.b16 %v35
  %v75 = vunpack.c.l.b16 %v36
  %v76 = vunpack.c.l.b16 %v37
  %v77 = vunpack.c.l.b16 %v38
  %v78 = vpack.c.b16 %v63, %v62
  %v79 = vpack.c.b16 %v65, %v64
  %v80 = vpack.c.b16 %v67, %v66
  %v81 = vpack.c.b16 %v69, %v68
  %v82 = vpack.c.b16 %v71, %v70
  %v83 = vpack.c.b16 %v73, %v72
  %v84 = vpack.c.b16 %v75, %v74
  %v85 = vpack.c.b16 %v77, %v76
  %94 = vmatprep.subr.bf16.mxu0 0
  %95 = vmatpush1.bf16.msra.mxu0 %v78
  %96 = vmatprep.subr.bf16.mxu0 0
  %97 = vmatpush1.bf16.msra.mxu0 %v79
  %98 = vmatprep.subr.bf16.mxu0 0
  %99 = vmatpush1.bf16.msra.mxu0 %v80
  %100 = vmatprep.subr.bf16.mxu0 0
  %101 = vmatpush1.bf16.msra.mxu0 %v81
  %102 = vmatprep.subr.bf16.mxu0 0
  %103 = vmatpush1.bf16.msra.mxu0 %v82
  %104 = vmatprep.subr.bf16.mxu0 0
  %105 = vmatpush1.bf16.msra.mxu0 %v83
  %106 = vmatprep.subr.bf16.mxu0 0
  %107 = vmatpush1.bf16.msra.mxu0 %v84
  %108 = vmatprep.subr.bf16.mxu0 0
  %109 = vmatpush1.bf16.msra.mxu0 %v85
  %110 = vmatprep.subr.bf16.mxu0 0
  %111 = vmatpush1.bf16.msra.mxu0 0
  %112 = vmatprep.subr.bf16.mxu0 0
  %113 = vmatpush1.bf16.msra.mxu0 0
  %114 = vmatprep.subr.bf16.mxu0 0
  %115 = vmatpush1.bf16.msra.mxu0 0
  %116 = vmatprep.subr.bf16.mxu0 0
  %117 = vmatpush1.bf16.msra.mxu0 0
  %118 = vmatprep.subr.bf16.mxu0 0
  %119 = vmatpush1.bf16.msra.mxu0 0
  %120 = vmatprep.subr.bf16.mxu0 0
  %121 = vmatpush1.bf16.msra.mxu0 0
  %122 = vmatprep.subr.bf16.mxu0 0
  %123 = vmatpush1.bf16.msra.mxu0 0
  %124 = vmatprep.subr.bf16.mxu0 0
  %125 = vmatpush1.bf16.msra.mxu0 0
  %126 = vmatprep.mubr.bf16.mxu0 0
  %127 = vmatmul.mubr.bf16.gmra.mrb[0].mxu0 %v22
  %v128 = vpop.f32.mrb[0].mxu0
  %v129 = vadd.f32 %v44, %v128
  %v130 = vpop.f32.mrb[0].mxu0
  %v131 = vpop.f32.mrb[0].mxu0
  %v132 = vpop.f32.mrb[0].mxu0
  %133 = vdwg.mxu0
  %v134 = vmax.f32 %v129, 0.0
  %v135 = vpack.c.bf16 %v134, %v134
  %v136 = vld [vmem:[%s3] sm:$0xf]
  %v137 = vld [vmem:[%s3 + $0x4] sm:$0xf]
  %v138 = vld [vmem:[%s3 + $0x8] sm:$0xf]
  %v139 = vld [vmem:[%s3 + $0xc] sm:$0xf]
  %v140 = vld [vmem:[%s3 + $0x10] sm:$0xf]
  %v141 = vld [vmem:[%s3 + $0x14] sm:$0xf]
  %v142 = vld [vmem:[%s3 + $0x18] sm:$0xf]
  %v143 = vld [vmem:[%s3 + $0x1c] sm:$0xf]
  %v144 = vld [vmem:[%s4] sm:$0x1]
  %v146 = vlaneseq
  %v147 = vshrl.u32 %v146, 7
  %v148 = vsub.s32 0, %v147
  %v149 = vrot.slane %v144, %v148
  %v159 = vunpack.c.l.b16 %v136
  %v160 = vunpack.c.l.b16 %v137
  %v161 = vunpack.c.l.b16 %v138
  %v162 = vunpack.c.l.b16 %v139
  %v163 = vunpack.c.l.b16 %v140
  %v164 = vunpack.c.l.b16 %v141
  %v165 = vunpack.c.l.b16 %v142
  %v166 = vunpack.c.l.b16 %v143
  %v167 = vpack.c.b16 %v160, %v159
  %v168 = vpack.c.b16 %v162, %v161
  %v169 = vpack.c.b16 %v164, %v163
  %v170 = vpack.c.b16 %v166, %v165
  %vm175 = vcmask 523264
  %v177 = vsel %vm175, %v135, 0
  %179 = vmatprep.subr.bf16.mxu0 0
  %180 = vmatpush1.bf16.msra.mxu0 %v167
  %181 = vmatprep.subr.bf16.mxu0 0
  %182 = vmatpush1.bf16.msra.mxu0 %v168
  %183 = vmatprep.subr.bf16.mxu0 0
  %184 = vmatpush1.bf16.msra.mxu0 %v169
  %185 = vmatprep.subr.bf16.mxu0 0
  %186 = vmatpush1.bf16.msra.mxu0 %v170
  %187 = vmatprep.subr.bf16.mxu0 0
  %188 = vmatpush1.bf16.msra.mxu0 0
  %189 = vmatprep.subr.bf16.mxu0 0
  %190 = vmatpush1.bf16.msra.mxu0 0
  %191 = vmatprep.subr.bf16.mxu0 0
  %192 = vmatpush1.bf16.msra.mxu0 0
  %193 = vmatprep.subr.bf16.mxu0 0
  %194 = vmatpush1.bf16.msra.mxu0 0
  %195 = vmatprep.subr.bf16.mxu0 0
  %196 = vmatpush1.bf16.msra.mxu0 0
  %197 = vmatprep.subr.bf16.mxu0 0
  %198 = vmatpush1.bf16.msra.mxu0 0
  %199 = vmatprep.subr.bf16.mxu0 0
  %200 = vmatpush1.bf16.msra.mxu0 0
  %201 = vmatprep.subr.bf16.mxu0 0
  %202 = vmatpush1.bf16.msra.mxu0 0
  %203 = vmatprep.subr.bf16.mxu0 0
  %204 = vmatpush1.bf16.msra.mxu0 0
  %205 = vmatprep.subr.bf16.mxu0 0
  %206 = vmatpush1.bf16.msra.mxu0 0
  %207 = vmatprep.subr.bf16.mxu0 0
  %208 = vmatpush1.bf16.msra.mxu0 0
  %209 = vmatprep.subr.bf16.mxu0 0
  %210 = vmatpush1.bf16.msra.mxu0 0
  %211 = vmatprep.mubr.bf16.mxu0 0
  %212 = vmatmul.mubr.bf16.gmra.mrb[0].mxu0 %v177
  %v213 = vpop.f32.mrb[0].mxu0
  %v214 = vadd.f32 %v149, %v213
  %v215 = vpop.f32.mrb[0].mxu0
  %v216 = vpop.f32.mrb[0].mxu0
  %v217 = vpop.f32.mrb[0].mxu0
  %218 = vdwg.mxu0
  %vm219 = vcmask 97280
  %220 = vst.msk [vmem:[%s5] sm:$0xff] %vm219, %v214
  // Predicated region
  $region22: #{mpnn_forward.41} parent=0 // pred_check
    _
  $region23: #{mpnn_forward.41} parent=0 // pred_check_branch
    %222 = sbr.rel (0) target = $region25
  $region24: #{mpnn_forward.41} parent=0 // pred_region
    _
  $region25: #{mpnn_forward.41} parent=0 // pred_fallthru
    _
  // Predicated region
  $region26: #{mpnn_forward.41} parent=0 // pred_check
    _
  $region27: #{mpnn_forward.41} parent=0 // pred_check_branch
    %224 = sbr.rel (0) target = $region29
  $region28: #{mpnn_forward.41} parent=0 // pred_region
    _
  $region29: #{mpnn_forward.41} parent=0 // pred_fallthru
    _

</llo_original>
